<compile_context>
chip_gen: v7x
topology: tpu7x:2x2x1
jax: 0.10.0
libtpu: 0.0.40
codegen_flags: <defaults>
</compile_context>

<pallas_src>
import jax
import jax.numpy as jnp
from jax.experimental import pallas as pl
from jax.experimental.pallas import tpu as pltpu


def _round_up(n, m):
    return -(-n // m) * m


def _linear_sigmoid_kernel(x_ref, w_ref, b_ref, o_ref):
    # x_ref: (tile_rows, PACK*D) VMEM — each row packs PACK batch items, lane-dense
    # w_ref: (PACK*D, PACK) VMEM    — block-diagonal copies of the (D,) weight
    # b_ref: (1, 1) SMEM            — scalar bias
    # o_ref: (tile_rows, PACK) VMEM — o[r, p] = sigmoid(<x[r*PACK + p, :], w> + b)
    z = jnp.dot(
        x_ref[...], w_ref[...],
        preferred_element_type=jnp.float32,
        precision=jax.lax.Precision.HIGHEST,   # full-f32 MXU accumulation
    )
    zb = z + b_ref[0, 0]                        # scalar bias from SMEM
    y = 1.0 / (1.0 + jnp.exp(-zb))              # sigmoid (EUP exp), compact layout
    o_ref[...] = y.astype(o_ref.dtype)


def _packed_forward(x2, wp, b2):
    """x2: (R, K) packed rows, wp: (K, PACK) block-diag weight, b2: (1,1) bias."""
    R, K = x2.shape
    PACK = wp.shape[1]

    # Tile sizing: ~4 MiB of x per pipeline buffer (double-buffered -> ~8 MiB,
    # well under the 16 MiB v5e default scoped-VMEM limit), rows a multiple of 8
    # sublanes, and >= 2 grid steps when possible so v7x's 2 TCs share the batch.
    if R <= 8:
        tile_rows = R                                   # full-dim block is allowed
    else:
        budget_rows = max(8, ((4 << 20) // (K * 4)) // 8 * 8)
        half_rows = _round_up(_round_up(R, 2) // 2, 8)  # cdiv(R, 2) rounded to 8
        tile_rows = max(8, min(budget_rows, half_rows))
    grid_r = -(-R // tile_rows)
    r_pad = grid_r * tile_rows

    out = pl.pallas_call(
        _linear_sigmoid_kernel,
        out_shape=jax.ShapeDtypeStruct((r_pad, PACK), jnp.float32),
        grid=(grid_r,),
        in_specs=[
            pl.BlockSpec((tile_rows, K), lambda i: (i, 0)),     # batch-tiled, pipelined
            pl.BlockSpec((K, PACK), lambda i: (0, 0)),          # weight resident
            pl.BlockSpec(memory_space=pltpu.MemorySpace.SMEM),  # scalar bias
        ],
        out_specs=pl.BlockSpec((tile_rows, PACK), lambda i: (i, 0)),
        compiler_params=pltpu.CompilerParams(
            dimension_semantics=("parallel",),   # shard batch tiles across TCs (v7x)
        ),
    )(x2, wp, b2)
    return out


def net_forward(x, w, b):
    """Pallas equivalent of torch.sigmoid(nn.Linear(D, 1)(x)).

    x: (B, D) float32
    w: (1, D) float32   (PyTorch nn.Linear weight layout, out_features=1)
    b: (1,) or scalar float32 bias
    returns: (B, 1) float32
    """
    x = jnp.asarray(x, jnp.float32)
    B, D = x.shape
    w_row = jnp.asarray(w, jnp.float32).reshape(1, D)
    b_val = jnp.asarray(b, jnp.float32).reshape(())

    # Batch items packed per LHS row; K = PACK*D capped ~1024 so the block-diagonal
    # MXU waste stays hidden under the HBM read of x on all TPU generations.
    PACK = max(1, min(128, 1024 // D))
    B_main = (B // PACK) * PACK

    pieces = []
    if B_main > 0:
        x_main = x if B_main == B else x[:B_main]
        # Free, contiguous row-major repack: (B_main, D) -> (B_main/PACK, PACK*D)
        x2 = x_main.reshape(B_main // PACK, PACK * D)
        # Block-diagonal weight: wp[i*D + d, j] = w[d] if i == j else 0
        eye = jnp.eye(PACK, dtype=jnp.float32)
        wp = (eye[:, None, :] * w_row.reshape(D)[None, :, None]).reshape(PACK * D, PACK)
        out2 = _packed_forward(x2, wp, b_val.reshape(1, 1))
        # Row-major flatten of (rows, PACK) is exactly batch order; drop pad rows.
        pieces.append(out2.reshape(-1, 1)[:B_main])
    if B_main < B:
        # Ragged tail (< PACK rows): plain JAX — avoids padding/copying the full array.
        xt = x[B_main:]
        zt = jnp.sum(xt * w_row, axis=-1, keepdims=True) + b_val
        pieces.append(1.0 / (1.0 + jnp.exp(-zt)))

    if not pieces:
        return jnp.zeros((0, 1), jnp.float32)
    return pieces[0] if len(pieces) == 1 else jnp.concatenate(pieces, axis=0)


if __name__ == "__main__":
    key = jax.random.PRNGKey(0)
    # 300 rows, D=32 -> PACK=32: 288 rows run through the Pallas kernel
    # (2 grid steps, incl. a partial last block), 12-row ragged tail in plain JAX.
    batch, input_dim = 300, 32

    kx, kw, kb = jax.random.split(key, 3)
    x = jax.random.normal(kx, (batch, input_dim), dtype=jnp.float32)

    # nn.Linear-style uniform(-1/sqrt(D), 1/sqrt(D)) init, deterministic
    bound = 1.0 / (input_dim ** 0.5)
    w = jax.random.uniform(kw, (1, input_dim), minval=-bound, maxval=bound,
                           dtype=jnp.float32)
    b = jax.random.uniform(kb, (1,), minval=-bound, maxval=bound,
                           dtype=jnp.float32)

    out = net_forward(x, w, b)
    jax.block_until_ready(out)

    # Exact-f32 reference (explicit mul/sum, no matmul-precision ambiguity).
    ref = 1.0 / (1.0 + jnp.exp(-(jnp.sum(x * w, axis=-1, keepdims=True) + b[0])))
    assert out.shape == (batch, 1)
    err = float(jnp.max(jnp.abs(out - ref)))
    assert jnp.allclose(out, ref, atol=2e-5, rtol=2e-5), f"max abs err {err}"

    print("KERNEL_OK")
</pallas_src>

<mosaic_0001>
module attributes {stable_mosaic.version = 11 : i64} {
  func.func @_linear_sigmoid_kernel(%arg0: i32, %arg1: memref<8x1024xf32, #tpu.memory_space<vmem>>, %arg2: memref<1024x32xf32, #tpu.memory_space<vmem>>, %arg3: memref<1x1xf32, #tpu.memory_space<smem>>, %arg4: memref<8x32xf32, #tpu.memory_space<vmem>>) attributes {dimension_semantics = [#tpu.dimension_semantics<parallel>], iteration_bounds = array<i64: 2>, scalar_prefetch = 0 : i64, scratch_operands = 0 : i64, tpu.core_type = #tpu.core_type<tc>, window_params = [{transform_indices = @transform_0, window_bounds = array<i64: 8, 1024>}, {pipeline_mode = #tpu.pipeline_mode<synchronous>, transform_indices = @transform_1, window_bounds = array<i64: 1024, 32>}, {transform_indices = @transform_2, window_bounds = array<i64: 1, 1>}, {transform_indices = @transform_3, window_bounds = array<i64: 8, 32>}]} {
    %c0 = arith.constant 0 : index
    %c0_0 = arith.constant 0 : index
    %0 = vector.load %arg1[%c0, %c0_0] : memref<8x1024xf32, #tpu.memory_space<vmem>>, vector<8x1024xf32>
    %c0_1 = arith.constant 0 : index
    %c0_2 = arith.constant 0 : index
    %1 = vector.load %arg2[%c0_1, %c0_2] : memref<1024x32xf32, #tpu.memory_space<vmem>>, vector<1024x32xf32>
    %cst = arith.constant dense<0.000000e+00> : vector<8x32xf32>
    %2 = tpu.matmul %0, %1, %cst {dimension_numbers = #tpu.dot_dimension_numbers<[1], [0], [0], [1], [0, 0, 1, 1], [], []>, precision = #tpu.contract_precision<fp32>} : vector<8x1024xf32>, vector<1024x32xf32>, vector<8x32xf32> -> vector<8x32xf32>
    %c0_3 = arith.constant 0 : index
    %c0_4 = arith.constant 0 : index
    %3 = memref.load %arg3[%c0_3, %c0_4] : memref<1x1xf32, #tpu.memory_space<smem>>
    %4 = vector.broadcast %3 : f32 to vector<8x32xf32>
    %5 = arith.addf %2, %4 : vector<8x32xf32>
    %cst_5 = arith.constant 0.000000e+00 : f32
    %6 = vector.broadcast %cst_5 : f32 to vector<8x32xf32>
    %7 = arith.subf %6, %5 : vector<8x32xf32>
    %8 = math.exp %7 : vector<8x32xf32>
    %cst_6 = arith.constant 1.000000e+00 : f32
    %9 = vector.broadcast %cst_6 : f32 to vector<8x32xf32>
    %10 = arith.addf %9, %8 : vector<8x32xf32>
    %cst_7 = arith.constant 1.000000e+00 : f32
    %11 = vector.broadcast %cst_7 : f32 to vector<8x32xf32>
    %12 = arith.divf %11, %10 : vector<8x32xf32>
    %c0_8 = arith.constant 0 : index
    %c0_9 = arith.constant 0 : index
    %13 = vector.load %arg4[%c0_8, %c0_9] : memref<8x32xf32, #tpu.memory_space<vmem>>, vector<8x32xf32>
    tpu.vector_store %arg4[%c0_8, %c0_9], %12 {strides = array<i32>} : memref<8x32xf32, #tpu.memory_space<vmem>>, vector<8x32xf32>,
    return
  }
  func.func @transform_0(%arg0: i32) -> (i32, i32) {
    %c0_i32 = arith.constant 0 : i32
    %c0_i32_0 = arith.constant 0 : i32
    return %arg0, %c0_i32 : i32, i32
  }
  func.func @transform_1(%arg0: i32) -> (i32, i32) {
    %c0_i32 = arith.constant 0 : i32
    %c0_i32_0 = arith.constant 0 : i32
    %c0_i32_1 = arith.constant 0 : i32
    return %c0_i32, %c0_i32_0 : i32, i32
  }
  func.func @transform_2(%arg0: i32) -> (i32, i32) {
    %c0_i32 = arith.constant 0 : i32
    %c0_i32_0 = arith.constant 0 : i32
    %c0_i32_1 = arith.constant 0 : i32
    return %c0_i32, %c0_i32_0 : i32, i32
  }
  func.func @transform_3(%arg0: i32) -> (i32, i32) {
    %c0_i32 = arith.constant 0 : i32
    %c0_i32_0 = arith.constant 0 : i32
    return %arg0, %c0_i32 : i32, i32
  }
}

</mosaic_0001>

<llo_original>
// kernel: tpu_custom_call.1
$region0: #{tpu_custom_call.1}
  #allocation0 [shape = 'u32[]', space=smem, size = 0x4, offset = 0x4, fixed_abs, tag = 'smem constant byte address 0x4 - core index']
  #allocation1 [shape = 'u32[144,128]{1,0:T(1,128)}', space=vmem, size = 0x12000, scoped, tag = 'internal scratch']
  #allocation2 [shape = 'f32[1,1]{1,0:T(1,128)S(6)}', space=smem, size = 0x200, scoped, tag = 'scoped memory for tpu_custom_call.1']
  %s0 = inlined_call_operand.vmem [shape: f32[9,1024], index: 0, kind: input, shape index: {}]
  %s1 = inlined_call_operand.vmem [shape: f32[1024,32], index: 1, kind: input, shape index: {}]
  %s2 = inlined_call_operand.<no memory space> [shape: f32[1,1], index: 2, kind: input, shape index: {}]
  %s3 = inlined_call_operand.hbm [shape: f32[16,32], index: 3, kind: output, shape index: {}]
  %s4 = sld [smem:[#allocation0]]
  $region45: #{tpu_custom_call.1} parent=0
    _
  %s6 = ssub.s32 1, %s4
  %s7 = scalar_select 0, %s6, %s4
  %8 = sst [smem:[#allocation2]] %s2
  $region1: #{tpu_custom_call.1} parent=0
    #allocation3 [shape = 'u8[8192]{0}', space=vmem, size = 0x2000, scoped, tag = 'output window, operand 0']
    #allocation4 [shape = 's32[2]{0}', space=sflag, size = 0x8, scoped, tag = 'scoped memory for tpu_custom_call.1']
    %9 = vsyncpa [#allocation4], 0
    %s10 = scalar_lea.sflag [#allocation4], 1
    %11 = vsyncpa %s10, 0
    loop: start=0, step=1, limit=4
    $region2: #{tpu_custom_call.1} parent=1 // loop_pre_header
      _
    $region3: #{tpu_custom_call.1} parent=1 // loop_header
      %s13 = sphi 0, %s17
      %p14 = scmp.ge.s32.totalorder %s13, 4
      %s23 = sphi 0, %s25
      %s26 = sphi 0, %s23
      %s27 = sphi 0, %s26
      %s43 = sphi 0, %s27
      %s47 = sphi 0, %s47
      %s49 = sphi 0, %s47
      %s50 = sphi 0, %s49
      %s64 = sphi 0, %s50
      %s68 = sphi 0, %s68
      %s70 = sphi 0, %s68
      %s71 = sphi 0, %s70
      %s85 = sphi 0, %s71
      %s91 = sphi 0, %s93
      %s94 = sphi 0, %s91
      %s95 = sphi 0, %s94
      %s111 = sphi 0, %s95
    $region4: #{tpu_custom_call.1} parent=1 // loop_header_branch
      %16 = sbr.rel (%p14) target = $region8
    $region5: #{tpu_custom_call.1} parent=1 // loop_body
      %s18 = ssub.s32 %s13, 1
      %s19 = ssub.s32 %s13, 2
      %s20 = sadd.s32 %s13, 1
      %s21 = ssub.s32 %s13, %s20
      %p22 = scmp.eq.s32.totalorder %s21, 0
      %s24 = sadd.s32 %s23, 1
      %s25 = scalar_select %p22, %s23, %s24
      %p28 = pneg %p22
      %p29 = scmp.eq.s32.totalorder %s13, 1
      %p30 = por %p28, %p29
      %p31 = scmp.ne.s32.totalorder %s23, %s26
      %p32 = scmp.eq.s32.totalorder %s13, 0
      %p33 = por %p31, %p32
      %p34 = scmp.ne.s32.totalorder %s23, %s26
      %p35 = scmp.eq.s32.totalorder %s18, 1
      %p36 = por %p34, %p35
      %p37 = scmp.ne.s32.totalorder %s26, %s27
      %p38 = scmp.eq.s32.totalorder %s18, 0
      %p39 = por %p37, %p38
      %p40 = scmp.ne.s32.totalorder %s26, %s27
      %p41 = scmp.eq.s32.totalorder %s19, 1
      %p42 = por %p40, %p41
      %p44 = scmp.ne.s32.totalorder %s27, %s43
      %p45 = scmp.eq.s32.totalorder %s19, 0
      %p46 = por %p44, %p45
      %s48 = sadd.s32 %s47, 1
      %p51 = scmp.eq.s32.totalorder %s13, 1
      %p52 = scmp.ne.s32.totalorder %s47, %s49
      %p53 = scmp.eq.s32.totalorder %s13, 0
      %p54 = por %p52, %p53
      %p55 = scmp.ne.s32.totalorder %s47, %s49
      %p56 = scmp.eq.s32.totalorder %s18, 1
      %p57 = por %p55, %p56
      %p58 = scmp.ne.s32.totalorder %s49, %s50
      %p59 = scmp.eq.s32.totalorder %s18, 0
      %p60 = por %p58, %p59
      %p61 = scmp.ne.s32.totalorder %s49, %s50
      %p62 = scmp.eq.s32.totalorder %s19, 1
      %p63 = por %p61, %p62
      %p65 = scmp.ne.s32.totalorder %s50, %s64
      %p66 = scmp.eq.s32.totalorder %s19, 0
      %p67 = por %p65, %p66
      %s69 = sadd.s32 %s68, 1
      %p72 = scmp.eq.s32.totalorder %s13, 1
      %p73 = scmp.ne.s32.totalorder %s68, %s70
      %p74 = scmp.eq.s32.totalorder %s13, 0
      %p75 = por %p73, %p74
      %p76 = scmp.ne.s32.totalorder %s68, %s70
      %p77 = scmp.eq.s32.totalorder %s18, 1
      %p78 = por %p76, %p77
      %p79 = scmp.ne.s32.totalorder %s70, %s71
      %p80 = scmp.eq.s32.totalorder %s18, 0
      %p81 = por %p79, %p80
      %p82 = scmp.ne.s32.totalorder %s70, %s71
      %p83 = scmp.eq.s32.totalorder %s19, 1
      %p84 = por %p82, %p83
      %p86 = scmp.ne.s32.totalorder %s71, %s85
      %p87 = scmp.eq.s32.totalorder %s19, 0
      %p88 = por %p86, %p87
      %s89 = ssub.s32 %s13, %s20
      %p90 = scmp.eq.s32.totalorder %s89, 0
      %s92 = sadd.s32 %s91, 1
      %s93 = scalar_select %p90, %s91, %s92
      %p96 = pneg %p90
      %p97 = scmp.eq.s32.totalorder %s13, 1
      %p98 = por %p96, %p97
      %p99 = scmp.ne.s32.totalorder %s91, %s94
      %p100 = scmp.eq.s32.totalorder %s13, 0
      %p101 = por %p99, %p100
      %p102 = scmp.ne.s32.totalorder %s91, %s94
      %p103 = scmp.eq.s32.totalorder %s18, 1
      %p104 = por %p102, %p103
      %p105 = scmp.ne.s32.totalorder %s94, %s95
      %p106 = scmp.eq.s32.totalorder %s18, 0
      %p107 = por %p105, %p106
      %p108 = scmp.ne.s32.totalorder %s94, %s95
      %p109 = scmp.eq.s32.totalorder %s19, 1
      %p110 = por %p108, %p109
      %p112 = scmp.ne.s32.totalorder %s95, %s111
      %p113 = scmp.eq.s32.totalorder %s19, 0
      %p114 = por %p112, %p113
      %p115 = scmp.le.s32.totalorder 1, %s13
      %p116 = scmp.lt.s32.totalorder %s13, 3
      %p117 = pnand %p115, %p116
      %p118 = pneg %p117
      // Predicated region
      $region9: #{tpu_custom_call.1} parent=5 // pred_check
        _
      $region10: #{tpu_custom_call.1} parent=5 // pred_check_branch
        %120 = sbr.rel (%p117) target = $region12
      $region11: #{tpu_custom_call.1} parent=5 // pred_region
        %s121 = ssub.s32 %s13, 1
        // Predicated region
        $region13: #{tpu_custom_call.1} parent=11 // pred_check
          %p122 = pneg %p60
        $region14: #{tpu_custom_call.1} parent=11 // pred_check_branch
          %124 = sbr.rel (%p122) target = $region16
        $region15: #{tpu_custom_call.1} parent=11 // pred_region
          _
        $region16: #{tpu_custom_call.1} parent=11 // pred_fallthru
          _
        // Predicated region
        $region17: #{tpu_custom_call.1} parent=11 // pred_check
          %p125 = pneg %p81
        $region18: #{tpu_custom_call.1} parent=11 // pred_check_branch
          %127 = sbr.rel (%p125) target = $region20
        $region19: #{tpu_custom_call.1} parent=11 // pred_region
          _
        $region20: #{tpu_custom_call.1} parent=11 // pred_fallthru
          _
      $region12: #{tpu_custom_call.1} parent=5 // pred_fallthru
        _
      %p128 = scmp.lt.s32.totalorder %s13, 2
      // Predicated region
      $region21: #{tpu_custom_call.1} parent=5 // pred_check
        %p129 = pneg %p128
      $region22: #{tpu_custom_call.1} parent=5 // pred_check_branch
        %131 = sbr.rel (%p129) target = $region24
      $region23: #{tpu_custom_call.1} parent=5 // pred_region
        // Predicated region
        $region25: #{tpu_custom_call.1} parent=23 // pred_check
          %p132 = pneg %p33
        $region26: #{tpu_custom_call.1} parent=23 // pred_check_branch
          %134 = sbr.rel (%p132) target = $region28
        $region27: #{tpu_custom_call.1} parent=23 // pred_region
          %p135 = scmp.lt.s32.totalorder %s13, 1
          %s136 = scalar_select %p135, %s13, 1
          %s137 = smul.addr %s136, 8
          %s138 = smul.addr %s137, 8
          %s139 = scalar_lea.vmem %s0, %s138
        $region28: #{tpu_custom_call.1} parent=23 // pred_fallthru
          _
      $region24: #{tpu_custom_call.1} parent=5 // pred_fallthru
        _
      %p140 = scmp.le.s32.totalorder 1, %s13
      %p141 = scmp.lt.s32.totalorder %s13, 3
      %p142 = pnand %p140, %p141
      %p143 = pneg %p142
      // Predicated region
      $region29: #{tpu_custom_call.1} parent=5 // pred_check
        _
      $region30: #{tpu_custom_call.1} parent=5 // pred_check_branch
        %145 = sbr.rel (%p142) target = $region32
      $region31: #{tpu_custom_call.1} parent=5 // pred_region
        %s146 = ssub.s32 %s13, 1
        %p147 = scmp.lt.s32.totalorder %s18, 1
        %s148 = scalar_select %p147, %s18, 1
        %s149 = smul.addr %s148, 8
        %s150 = smul.addr %s149, 8
        %s151 = scalar_lea.vmem %s0, %s150
        %p152 = pneg %p39
        %p153 = pneg %p36
        %p154 = pneg %p60
        %p155 = pneg %p57
        %p156 = pneg %p81
        %p157 = pneg %p78
        %p158 = pneg %p107
        %p159 = pneg %p104
        %s160 = sand.u32 %s94, 1
        %s161 = scalar_lea.sflag [#allocation4], %s160
        %s162 = sand.u32 %s94, 1
        %s163 = smul.addr %s162, 8
        %s164 = scalar_lea.vmem [#allocation3], %s163
        %p165 = scmp.lt.s32.totalorder %s18, 1
        %s166 = scalar_select %p165, %s18, 1
        %s167 = smul.addr %s166, 8
        %s168 = smul.addr %s167, 8
        %s169 = scalar_lea.vmem %s0, %s168
        %v170 = vld [vmem:[%s169] sm:$0xff]
        %v171 = vld [vmem:[%s169 + $0x8] sm:$0xff]
        %v172 = vld [vmem:[%s169 + $0x10] sm:$0xff]
        %v173 = vld [vmem:[%s169 + $0x18] sm:$0xff]
        %v174 = vld [vmem:[%s169 + $0x20] sm:$0xff]
        %v175 = vld [vmem:[%s169 + $0x28] sm:$0xff]
        %v176 = vld [vmem:[%s169 + $0x30] sm:$0xff]
        %v177 = vld [vmem:[%s169 + $0x38] sm:$0xff]
        %v178 = vld [vmem:[%s1] sm:$0xff]
        %v179 = vld [vmem:[%s1 + $0x8] sm:$0xff]
        %v180 = vld [vmem:[%s1 + $0x10] sm:$0xff]
        %v181 = vld [vmem:[%s1 + $0x18] sm:$0xff]
        %v182 = vld [vmem:[%s1 + $0x20] sm:$0xff]
        %v183 = vld [vmem:[%s1 + $0x28] sm:$0xff]
        %v184 = vld [vmem:[%s1 + $0x30] sm:$0xff]
        %v185 = vld [vmem:[%s1 + $0x38] sm:$0xff]
        %v186 = vld [vmem:[%s1 + $0x40] sm:$0xff]
        %v187 = vld [vmem:[%s1 + $0x48] sm:$0xff]
        %v188 = vld [vmem:[%s1 + $0x50] sm:$0xff]
        %v189 = vld [vmem:[%s1 + $0x58] sm:$0xff]
        %v190 = vld [vmem:[%s1 + $0x60] sm:$0xff]
        %v191 = vld [vmem:[%s1 + $0x68] sm:$0xff]
        %v192 = vld [vmem:[%s1 + $0x70] sm:$0xff]
        %v193 = vld [vmem:[%s1 + $0x78] sm:$0xff]
        %v194 = vld [vmem:[%s1 + $0x80] sm:$0xff]
        %v195 = vld [vmem:[%s1 + $0x88] sm:$0xff]
        %v196 = vld [vmem:[%s1 + $0x90] sm:$0xff]
        %v197 = vld [vmem:[%s1 + $0x98] sm:$0xff]
        %v198 = vld [vmem:[%s1 + $0xa0] sm:$0xff]
        %v199 = vld [vmem:[%s1 + $0xa8] sm:$0xff]
        %v200 = vld [vmem:[%s1 + $0xb0] sm:$0xff]
        %v201 = vld [vmem:[%s1 + $0xb8] sm:$0xff]
        %v202 = vld [vmem:[%s1 + $0xc0] sm:$0xff]
        %v203 = vld [vmem:[%s1 + $0xc8] sm:$0xff]
        %v204 = vld [vmem:[%s1 + $0xd0] sm:$0xff]
        %v205 = vld [vmem:[%s1 + $0xd8] sm:$0xff]
        %v206 = vld [vmem:[%s1 + $0xe0] sm:$0xff]
        %v207 = vld [vmem:[%s1 + $0xe8] sm:$0xff]
        %v208 = vld [vmem:[%s1 + $0xf0] sm:$0xff]
        %v209 = vld [vmem:[%s1 + $0xf8] sm:$0xff]
        %v210 = vld [vmem:[%s1 + $0x100] sm:$0xff]
        %v211 = vld [vmem:[%s1 + $0x108] sm:$0xff]
        %v212 = vld [vmem:[%s1 + $0x110] sm:$0xff]
        %v213 = vld [vmem:[%s1 + $0x118] sm:$0xff]
        %v214 = vld [vmem:[%s1 + $0x120] sm:$0xff]
        %v215 = vld [vmem:[%s1 + $0x128] sm:$0xff]
        %v216 = vld [vmem:[%s1 + $0x130] sm:$0xff]
        %v217 = vld [vmem:[%s1 + $0x138] sm:$0xff]
        %v218 = vld [vmem:[%s1 + $0x140] sm:$0xff]
        %v219 = vld [vmem:[%s1 + $0x148] sm:$0xff]
        %v220 = vld [vmem:[%s1 + $0x150] sm:$0xff]
        %v221 = vld [vmem:[%s1 + $0x158] sm:$0xff]
        %v222 = vld [vmem:[%s1 + $0x160] sm:$0xff]
        %v223 = vld [vmem:[%s1 + $0x168] sm:$0xff]
        %v224 = vld [vmem:[%s1 + $0x170] sm:$0xff]
        %v225 = vld [vmem:[%s1 + $0x178] sm:$0xff]
        %v226 = vld [vmem:[%s1 + $0x180] sm:$0xff]
        %v227 = vld [vmem:[%s1 + $0x188] sm:$0xff]
        %v228 = vld [vmem:[%s1 + $0x190] sm:$0xff]
        %v229 = vld [vmem:[%s1 + $0x198] sm:$0xff]
        %v230 = vld [vmem:[%s1 + $0x1a0] sm:$0xff]
        %v231 = vld [vmem:[%s1 + $0x1a8] sm:$0xff]
        %v232 = vld [vmem:[%s1 + $0x1b0] sm:$0xff]
        %v233 = vld [vmem:[%s1 + $0x1b8] sm:$0xff]
        %v234 = vld [vmem:[%s1 + $0x1c0] sm:$0xff]
        %v235 = vld [vmem:[%s1 + $0x1c8] sm:$0xff]
        %v236 = vld [vmem:[%s1 + $0x1d0] sm:$0xff]
        %v237 = vld [vmem:[%s1 + $0x1d8] sm:$0xff]
        %v238 = vld [vmem:[%s1 + $0x1e0] sm:$0xff]
        %v239 = vld [vmem:[%s1 + $0x1e8] sm:$0xff]
        %v240 = vld [vmem:[%s1 + $0x1f0] sm:$0xff]
        %v241 = vld [vmem:[%s1 + $0x1f8] sm:$0xff]
        %v242 = vld [vmem:[%s1 + $0x200] sm:$0xff]
        %v243 = vld [vmem:[%s1 + $0x208] sm:$0xff]
        %v244 = vld [vmem:[%s1 + $0x210] sm:$0xff]
        %v245 = vld [vmem:[%s1 + $0x218] sm:$0xff]
        %v246 = vld [vmem:[%s1 + $0x220] sm:$0xff]
        %v247 = vld [vmem:[%s1 + $0x228] sm:$0xff]
        %v248 = vld [vmem:[%s1 + $0x230] sm:$0xff]
        %v249 = vld [vmem:[%s1 + $0x238] sm:$0xff]
        %v250 = vld [vmem:[%s1 + $0x240] sm:$0xff]
        %v251 = vld [vmem:[%s1 + $0x248] sm:$0xff]
        %v252 = vld [vmem:[%s1 + $0x250] sm:$0xff]
        %v253 = vld [vmem:[%s1 + $0x258] sm:$0xff]
        %v254 = vld [vmem:[%s1 + $0x260] sm:$0xff]
        %v255 = vld [vmem:[%s1 + $0x268] sm:$0xff]
        %v256 = vld [vmem:[%s1 + $0x270] sm:$0xff]
        %v257 = vld [vmem:[%s1 + $0x278] sm:$0xff]
        %v258 = vld [vmem:[%s1 + $0x280] sm:$0xff]
        %v259 = vld [vmem:[%s1 + $0x288] sm:$0xff]
        %v260 = vld [vmem:[%s1 + $0x290] sm:$0xff]
        %v261 = vld [vmem:[%s1 + $0x298] sm:$0xff]
        %v262 = vld [vmem:[%s1 + $0x2a0] sm:$0xff]
        %v263 = vld [vmem:[%s1 + $0x2a8] sm:$0xff]
        %v264 = vld [vmem:[%s1 + $0x2b0] sm:$0xff]
        %v265 = vld [vmem:[%s1 + $0x2b8] sm:$0xff]
        %v266 = vld [vmem:[%s1 + $0x2c0] sm:$0xff]
        %v267 = vld [vmem:[%s1 + $0x2c8] sm:$0xff]
        %v268 = vld [vmem:[%s1 + $0x2d0] sm:$0xff]
        %v269 = vld [vmem:[%s1 + $0x2d8] sm:$0xff]
        %v270 = vld [vmem:[%s1 + $0x2e0] sm:$0xff]
        %v271 = vld [vmem:[%s1 + $0x2e8] sm:$0xff]
        %v272 = vld [vmem:[%s1 + $0x2f0] sm:$0xff]
        %v273 = vld [vmem:[%s1 + $0x2f8] sm:$0xff]
        %v274 = vld [vmem:[%s1 + $0x300] sm:$0xff]
        %v275 = vld [vmem:[%s1 + $0x308] sm:$0xff]
        %v276 = vld [vmem:[%s1 + $0x310] sm:$0xff]
        %v277 = vld [vmem:[%s1 + $0x318] sm:$0xff]
        %v278 = vld [vmem:[%s1 + $0x320] sm:$0xff]
        %v279 = vld [vmem:[%s1 + $0x328] sm:$0xff]
        %v280 = vld [vmem:[%s1 + $0x330] sm:$0xff]
        %v281 = vld [vmem:[%s1 + $0x338] sm:$0xff]
        %v282 = vld [vmem:[%s1 + $0x340] sm:$0xff]
        %v283 = vld [vmem:[%s1 + $0x348] sm:$0xff]
        %v284 = vld [vmem:[%s1 + $0x350] sm:$0xff]
        %v285 = vld [vmem:[%s1 + $0x358] sm:$0xff]
        %v286 = vld [vmem:[%s1 + $0x360] sm:$0xff]
        %v287 = vld [vmem:[%s1 + $0x368] sm:$0xff]
        %v288 = vld [vmem:[%s1 + $0x370] sm:$0xff]
        %v289 = vld [vmem:[%s1 + $0x378] sm:$0xff]
        %v290 = vld [vmem:[%s1 + $0x380] sm:$0xff]
        %v291 = vld [vmem:[%s1 + $0x388] sm:$0xff]
        %v292 = vld [vmem:[%s1 + $0x390] sm:$0xff]
        %v293 = vld [vmem:[%s1 + $0x398] sm:$0xff]
        %v294 = vld [vmem:[%s1 + $0x3a0] sm:$0xff]
        %v295 = vld [vmem:[%s1 + $0x3a8] sm:$0xff]
        %v296 = vld [vmem:[%s1 + $0x3b0] sm:$0xff]
        %v297 = vld [vmem:[%s1 + $0x3b8] sm:$0xff]
        %v298 = vld [vmem:[%s1 + $0x3c0] sm:$0xff]
        %v299 = vld [vmem:[%s1 + $0x3c8] sm:$0xff]
        %v300 = vld [vmem:[%s1 + $0x3d0] sm:$0xff]
        %v301 = vld [vmem:[%s1 + $0x3d8] sm:$0xff]
        %v302 = vld [vmem:[%s1 + $0x3e0] sm:$0xff]
        %v303 = vld [vmem:[%s1 + $0x3e8] sm:$0xff]
        %v304 = vld [vmem:[%s1 + $0x3f0] sm:$0xff]
        %v305 = vld [vmem:[%s1 + $0x3f8] sm:$0xff]
        %s306 = sld [smem:[#allocation2]]
        %v307 = vstv %s306
        %308 = vmatprep.subr.mxu0 0.0
        %v309 = vand.u32 %v178, 4294901760
        %310 = vmatpush1.msra.mxu0 %v309
        %311 = vmatprep.subr.mxu0 0.0
        %v312 = vand.u32 %v179, 4294901760
        %313 = vmatpush1.msra.mxu0 %v312
        %314 = vmatprep.subr.mxu0 0.0
        %v315 = vand.u32 %v180, 4294901760
        %316 = vmatpush1.msra.mxu0 %v315
        %317 = vmatprep.subr.mxu0 0.0
        %v318 = vand.u32 %v181, 4294901760
        %319 = vmatpush1.msra.mxu0 %v318
        %320 = vmatprep.subr.mxu0 0.0
        %v321 = vand.u32 %v182, 4294901760
        %322 = vmatpush1.msra.mxu0 %v321
        %323 = vmatprep.subr.mxu0 0.0
        %v324 = vand.u32 %v183, 4294901760
        %325 = vmatpush1.msra.mxu0 %v324
        %326 = vmatprep.subr.mxu0 0.0
        %v327 = vand.u32 %v184, 4294901760
        %328 = vmatpush1.msra.mxu0 %v327
        %329 = vmatprep.subr.mxu0 0.0
        %v330 = vand.u32 %v185, 4294901760
        %331 = vmatpush1.msra.mxu0 %v330
        %332 = vmatprep.subr.mxu0 0.0
        %v333 = vand.u32 %v186, 4294901760
        %334 = vmatpush1.msra.mxu0 %v333
        %335 = vmatprep.subr.mxu0 0.0
        %v336 = vand.u32 %v187, 4294901760
        %337 = vmatpush1.msra.mxu0 %v336
        %338 = vmatprep.subr.mxu0 0.0
        %v339 = vand.u32 %v188, 4294901760
        %340 = vmatpush1.msra.mxu0 %v339
        %341 = vmatprep.subr.mxu0 0.0
        %v342 = vand.u32 %v189, 4294901760
        %343 = vmatpush1.msra.mxu0 %v342
        %344 = vmatprep.subr.mxu0 0.0
        %v345 = vand.u32 %v190, 4294901760
        %346 = vmatpush1.msra.mxu0 %v345
        %347 = vmatprep.subr.mxu0 0.0
        %v348 = vand.u32 %v191, 4294901760
        %349 = vmatpush1.msra.mxu0 %v348
        %350 = vmatprep.subr.mxu0 0.0
        %v351 = vand.u32 %v192, 4294901760
        %352 = vmatpush1.msra.mxu0 %v351
        %353 = vmatprep.subr.mxu0 0.0
        %v354 = vand.u32 %v193, 4294901760
        %355 = vmatpush1.msra.mxu0 %v354
        %356 = vmatprep.subr.mxu0 0.0
        %v357 = vand.u32 %v194, 4294901760
        %358 = vmatpush1.msra.mxu0 %v357
        %359 = vmatprep.subr.mxu0 0.0
        %v360 = vand.u32 %v195, 4294901760
        %361 = vmatpush1.msra.mxu0 %v360
        %362 = vmatprep.subr.mxu0 0.0
        %v363 = vand.u32 %v196, 4294901760
        %364 = vmatpush1.msra.mxu0 %v363
        %365 = vmatprep.subr.mxu0 0.0
        %v366 = vand.u32 %v197, 4294901760
        %367 = vmatpush1.msra.mxu0 %v366
        %368 = vmatprep.subr.mxu0 0.0
        %v369 = vand.u32 %v198, 4294901760
        %370 = vmatpush1.msra.mxu0 %v369
        %371 = vmatprep.subr.mxu0 0.0
        %v372 = vand.u32 %v199, 4294901760
        %373 = vmatpush1.msra.mxu0 %v372
        %374 = vmatprep.subr.mxu0 0.0
        %v375 = vand.u32 %v200, 4294901760
        %376 = vmatpush1.msra.mxu0 %v375
        %377 = vmatprep.subr.mxu0 0.0
        %v378 = vand.u32 %v201, 4294901760
        %379 = vmatpush1.msra.mxu0 %v378
        %380 = vmatprep.subr.mxu0 0.0
        %v381 = vand.u32 %v202, 4294901760
        %382 = vmatpush1.msra.mxu0 %v381
        %383 = vmatprep.subr.mxu0 0.0
        %v384 = vand.u32 %v203, 4294901760
        %385 = vmatpush1.msra.mxu0 %v384
        %386 = vmatprep.subr.mxu0 0.0
        %v387 = vand.u32 %v204, 4294901760
        %388 = vmatpush1.msra.mxu0 %v387
        %389 = vmatprep.subr.mxu0 0.0
        %v390 = vand.u32 %v205, 4294901760
        %391 = vmatpush1.msra.mxu0 %v390
        %392 = vmatprep.subr.mxu0 0.0
        %v393 = vand.u32 %v206, 4294901760
        %394 = vmatpush1.msra.mxu0 %v393
        %395 = vmatprep.subr.mxu0 0.0
        %v396 = vand.u32 %v207, 4294901760
        %397 = vmatpush1.msra.mxu0 %v396
        %398 = vmatprep.subr.mxu0 0.0
        %v399 = vand.u32 %v208, 4294901760
        %400 = vmatpush1.msra.mxu0 %v399
        %401 = vmatprep.subr.mxu0 0.0
        %v402 = vand.u32 %v209, 4294901760
        %403 = vmatpush1.msra.mxu0 %v402
        %v404 = vand.u32 %v171, 4294901760
        %v405 = vsub.f32 %v171, %v404
        %v406 = vand.u32 %v405, 4294901760
        %v407 = vsub.f32 %v405, %v406
        %v408 = vand.u32 %v407, 4294901760
        %409 = vmatprep.mubr.f32.mxu0 %v408
        %v410 = vand.u32 %v170, 4294901760
        %v411 = vsub.f32 %v170, %v410
        %v412 = vand.u32 %v411, 4294901760
        %v413 = vsub.f32 %v411, %v412
        %v414 = vand.u32 %v413, 4294901760
        %415 = vmatmul.mubr.f32.gmra.mrb[0].mxu0 %v414
        %v416 = vpop.f32.mrb[0].mxu0
        %v417 = vadd.f32 %v307, %v416
        %v418 = vpop.f32.mrb[0].mxu0
        %419 = vdwg.mxu0
        %420 = vmatprep.subr.mxu0 0.0
        %v421 = vand.u32 %v178, 4294901760
        %v422 = vsub.f32 %v178, %v421
        %v423 = vand.u32 %v422, 4294901760
        %v424 = vsub.f32 %v422, %v423
        %v425 = vand.u32 %v424, 4294901760
        %426 = vmatpush1.msra.mxu0 %v425
        %427 = vmatprep.subr.mxu0 0.0
        %v428 = vand.u32 %v179, 4294901760
        %v429 = vsub.f32 %v179, %v428
        %v430 = vand.u32 %v429, 4294901760
        %v431 = vsub.f32 %v429, %v430
        %v432 = vand.u32 %v431, 4294901760
        %433 = vmatpush1.msra.mxu0 %v432
        %434 = vmatprep.subr.mxu0 0.0
        %v435 = vand.u32 %v180, 4294901760
        %v436 = vsub.f32 %v180, %v435
        %v437 = vand.u32 %v436, 4294901760
        %v438 = vsub.f32 %v436, %v437
        %v439 = vand.u32 %v438, 4294901760
        %440 = vmatpush1.msra.mxu0 %v439
        %441 = vmatprep.subr.mxu0 0.0
        %v442 = vand.u32 %v181, 4294901760
        %v443 = vsub.f32 %v181, %v442
        %v444 = vand.u32 %v443, 4294901760
        %v445 = vsub.f32 %v443, %v444
        %v446 = vand.u32 %v445, 4294901760
        %447 = vmatpush1.msra.mxu0 %v446
        %448 = vmatprep.subr.mxu0 0.0
        %v449 = vand.u32 %v182, 4294901760
        %v450 = vsub.f32 %v182, %v449
        %v451 = vand.u32 %v450, 4294901760
        %v452 = vsub.f32 %v450, %v451
        %v453 = vand.u32 %v452, 4294901760
        %454 = vmatpush1.msra.mxu0 %v453
        %455 = vmatprep.subr.mxu0 0.0
        %v456 = vand.u32 %v183, 4294901760
        %v457 = vsub.f32 %v183, %v456
        %v458 = vand.u32 %v457, 4294901760
        %v459 = vsub.f32 %v457, %v458
        %v460 = vand.u32 %v459, 4294901760
        %461 = vmatpush1.msra.mxu0 %v460
        %462 = vmatprep.subr.mxu0 0.0
        %v463 = vand.u32 %v184, 4294901760
        %v464 = vsub.f32 %v184, %v463
        %v465 = vand.u32 %v464, 4294901760
        %v466 = vsub.f32 %v464, %v465
        %v467 = vand.u32 %v466, 4294901760
        %468 = vmatpush1.msra.mxu0 %v467
        %469 = vmatprep.subr.mxu0 0.0
        %v470 = vand.u32 %v185, 4294901760
        %v471 = vsub.f32 %v185, %v470
        %v472 = vand.u32 %v471, 4294901760
        %v473 = vsub.f32 %v471, %v472
        %v474 = vand.u32 %v473, 4294901760
        %475 = vmatpush1.msra.mxu0 %v474
        %476 = vmatprep.subr.mxu0 0.0
        %v477 = vand.u32 %v186, 4294901760
        %v478 = vsub.f32 %v186, %v477
        %v479 = vand.u32 %v478, 4294901760
        %v480 = vsub.f32 %v478, %v479
        %v481 = vand.u32 %v480, 4294901760
        %482 = vmatpush1.msra.mxu0 %v481
        %483 = vmatprep.subr.mxu0 0.0
        %v484 = vand.u32 %v187, 4294901760
        %v485 = vsub.f32 %v187, %v484
        %v486 = vand.u32 %v485, 4294901760
        %v487 = vsub.f32 %v485, %v486
        %v488 = vand.u32 %v487, 4294901760
        %489 = vmatpush1.msra.mxu0 %v488
        %490 = vmatprep.subr.mxu0 0.0
        %v491 = vand.u32 %v188, 4294901760
        %v492 = vsub.f32 %v188, %v491
        %v493 = vand.u32 %v492, 4294901760
        %v494 = vsub.f32 %v492, %v493
        %v495 = vand.u32 %v494, 4294901760
        %496 = vmatpush1.msra.mxu0 %v495
        %497 = vmatprep.subr.mxu0 0.0
        %v498 = vand.u32 %v189, 4294901760
        %v499 = vsub.f32 %v189, %v498
        %v500 = vand.u32 %v499, 4294901760
        %v501 = vsub.f32 %v499, %v500
        %v502 = vand.u32 %v501, 4294901760
        %503 = vmatpush1.msra.mxu0 %v502
        %504 = vmatprep.subr.mxu0 0.0
        %v505 = vand.u32 %v190, 4294901760
        %v506 = vsub.f32 %v190, %v505
        %v507 = vand.u32 %v506, 4294901760
        %v508 = vsub.f32 %v506, %v507
        %v509 = vand.u32 %v508, 4294901760
        %510 = vmatpush1.msra.mxu0 %v509
        %511 = vmatprep.subr.mxu0 0.0
        %v512 = vand.u32 %v191, 4294901760
        %v513 = vsub.f32 %v191, %v512
        %v514 = vand.u32 %v513, 4294901760
        %v515 = vsub.f32 %v513, %v514
        %v516 = vand.u32 %v515, 4294901760
        %517 = vmatpush1.msra.mxu0 %v516
        %518 = vmatprep.subr.mxu0 0.0
        %v519 = vand.u32 %v192, 4294901760
        %v520 = vsub.f32 %v192, %v519
        %v521 = vand.u32 %v520, 4294901760
        %v522 = vsub.f32 %v520, %v521
        %v523 = vand.u32 %v522, 4294901760
        %524 = vmatpush1.msra.mxu0 %v523
        %525 = vmatprep.subr.mxu0 0.0
        %v526 = vand.u32 %v193, 4294901760
        %v527 = vsub.f32 %v193, %v526
        %v528 = vand.u32 %v527, 4294901760
        %v529 = vsub.f32 %v527, %v528
        %v530 = vand.u32 %v529, 4294901760
        %531 = vmatpush1.msra.mxu0 %v530
        %532 = vmatprep.subr.mxu0 0.0
        %v533 = vand.u32 %v194, 4294901760
        %v534 = vsub.f32 %v194, %v533
        %v535 = vand.u32 %v534, 4294901760
        %v536 = vsub.f32 %v534, %v535
        %v537 = vand.u32 %v536, 4294901760
        %538 = vmatpush1.msra.mxu0 %v537
        %539 = vmatprep.subr.mxu0 0.0
        %v540 = vand.u32 %v195, 4294901760
        %v541 = vsub.f32 %v195, %v540
        %v542 = vand.u32 %v541, 4294901760
        %v543 = vsub.f32 %v541, %v542
        %v544 = vand.u32 %v543, 4294901760
        %545 = vmatpush1.msra.mxu0 %v544
        %546 = vmatprep.subr.mxu0 0.0
        %v547 = vand.u32 %v196, 4294901760
        %v548 = vsub.f32 %v196, %v547
        %v549 = vand.u32 %v548, 4294901760
        %v550 = vsub.f32 %v548, %v549
        %v551 = vand.u32 %v550, 4294901760
        %552 = vmatpush1.msra.mxu0 %v551
        %553 = vmatprep.subr.mxu0 0.0
        %v554 = vand.u32 %v197, 4294901760
        %v555 = vsub.f32 %v197, %v554
        %v556 = vand.u32 %v555, 4294901760
        %v557 = vsub.f32 %v555, %v556
        %v558 = vand.u32 %v557, 4294901760
        %559 = vmatpush1.msra.mxu0 %v558
        %560 = vmatprep.subr.mxu0 0.0
        %v561 = vand.u32 %v198, 4294901760
        %v562 = vsub.f32 %v198, %v561
        %v563 = vand.u32 %v562, 4294901760
        %v564 = vsub.f32 %v562, %v563
        %v565 = vand.u32 %v564, 4294901760
        %566 = vmatpush1.msra.mxu0 %v565
        %567 = vmatprep.subr.mxu0 0.0
        %v568 = vand.u32 %v199, 4294901760
        %v569 = vsub.f32 %v199, %v568
        %v570 = vand.u32 %v569, 4294901760
        %v571 = vsub.f32 %v569, %v570
        %v572 = vand.u32 %v571, 4294901760
        %573 = vmatpush1.msra.mxu0 %v572
        %574 = vmatprep.subr.mxu0 0.0
        %v575 = vand.u32 %v200, 4294901760
        %v576 = vsub.f32 %v200, %v575
        %v577 = vand.u32 %v576, 4294901760
        %v578 = vsub.f32 %v576, %v577
        %v579 = vand.u32 %v578, 4294901760
        %580 = vmatpush1.msra.mxu0 %v579
        %581 = vmatprep.subr.mxu0 0.0
        %v582 = vand.u32 %v201, 4294901760
        %v583 = vsub.f32 %v201, %v582
        %v584 = vand.u32 %v583, 4294901760
        %v585 = vsub.f32 %v583, %v584
        %v586 = vand.u32 %v585, 4294901760
        %587 = vmatpush1.msra.mxu0 %v586
        %588 = vmatprep.subr.mxu0 0.0
        %v589 = vand.u32 %v202, 4294901760
        %v590 = vsub.f32 %v202, %v589
        %v591 = vand.u32 %v590, 4294901760
        %v592 = vsub.f32 %v590, %v591
        %v593 = vand.u32 %v592, 4294901760
        %594 = vmatpush1.msra.mxu0 %v593
        %595 = vmatprep.subr.mxu0 0.0
        %v596 = vand.u32 %v203, 4294901760
        %v597 = vsub.f32 %v203, %v596
        %v598 = vand.u32 %v597, 4294901760
        %v599 = vsub.f32 %v597, %v598
        %v600 = vand.u32 %v599, 4294901760
        %601 = vmatpush1.msra.mxu0 %v600
        %602 = vmatprep.subr.mxu0 0.0
        %v603 = vand.u32 %v204, 4294901760
        %v604 = vsub.f32 %v204, %v603
        %v605 = vand.u32 %v604, 4294901760
        %v606 = vsub.f32 %v604, %v605
        %v607 = vand.u32 %v606, 4294901760
        %608 = vmatpush1.msra.mxu0 %v607
        %609 = vmatprep.subr.mxu0 0.0
        %v610 = vand.u32 %v205, 4294901760
        %v611 = vsub.f32 %v205, %v610
        %v612 = vand.u32 %v611, 4294901760
        %v613 = vsub.f32 %v611, %v612
        %v614 = vand.u32 %v613, 4294901760
        %615 = vmatpush1.msra.mxu0 %v614
        %616 = vmatprep.subr.mxu0 0.0
        %v617 = vand.u32 %v206, 4294901760
        %v618 = vsub.f32 %v206, %v617
        %v619 = vand.u32 %v618, 4294901760
        %v620 = vsub.f32 %v618, %v619
        %v621 = vand.u32 %v620, 4294901760
        %622 = vmatpush1.msra.mxu0 %v621
        %623 = vmatprep.subr.mxu0 0.0
        %v624 = vand.u32 %v207, 4294901760
        %v625 = vsub.f32 %v207, %v624
        %v626 = vand.u32 %v625, 4294901760
        %v627 = vsub.f32 %v625, %v626
        %v628 = vand.u32 %v627, 4294901760
        %629 = vmatpush1.msra.mxu0 %v628
        %630 = vmatprep.subr.mxu0 0.0
        %v631 = vand.u32 %v208, 4294901760
        %v632 = vsub.f32 %v208, %v631
        %v633 = vand.u32 %v632, 4294901760
        %v634 = vsub.f32 %v632, %v633
        %v635 = vand.u32 %v634, 4294901760
        %636 = vmatpush1.msra.mxu0 %v635
        %637 = vmatprep.subr.mxu0 0.0
        %v638 = vand.u32 %v209, 4294901760
        %v639 = vsub.f32 %v209, %v638
        %v640 = vand.u32 %v639, 4294901760
        %v641 = vsub.f32 %v639, %v640
        %v642 = vand.u32 %v641, 4294901760
        %643 = vmatpush1.msra.mxu0 %v642
        %v644 = vand.u32 %v171, 4294901760
        %645 = vmatprep.mubr.f32.mxu0 %v644
        %v646 = vand.u32 %v170, 4294901760
        %647 = vmatmul.mubr.f32.gmra.mrb[0].mxu0 %v646
        %v648 = vpop.f32.mrb[0].mxu0
        %v649 = vadd.f32 %v417, %v648
        %v650 = vpop.f32.mrb[0].mxu0
        %651 = vdwg.mxu0
        %652 = vmatprep.subr.mxu0 0.0
        %v653 = vand.u32 %v178, 4294901760
        %v654 = vsub.f32 %v178, %v653
        %655 = vmatpush1.msra.mxu0 %v654
        %656 = vmatprep.subr.mxu0 0.0
        %v657 = vand.u32 %v179, 4294901760
        %v658 = vsub.f32 %v179, %v657
        %659 = vmatpush1.msra.mxu0 %v658
        %660 = vmatprep.subr.mxu0 0.0
        %v661 = vand.u32 %v180, 4294901760
        %v662 = vsub.f32 %v180, %v661
        %663 = vmatpush1.msra.mxu0 %v662
        %664 = vmatprep.subr.mxu0 0.0
        %v665 = vand.u32 %v181, 4294901760
        %v666 = vsub.f32 %v181, %v665
        %667 = vmatpush1.msra.mxu0 %v666
        %668 = vmatprep.subr.mxu0 0.0
        %v669 = vand.u32 %v182, 4294901760
        %v670 = vsub.f32 %v182, %v669
        %671 = vmatpush1.msra.mxu0 %v670
        %672 = vmatprep.subr.mxu0 0.0
        %v673 = vand.u32 %v183, 4294901760
        %v674 = vsub.f32 %v183, %v673
        %675 = vmatpush1.msra.mxu0 %v674
        %676 = vmatprep.subr.mxu0 0.0
        %v677 = vand.u32 %v184, 4294901760
        %v678 = vsub.f32 %v184, %v677
        %679 = vmatpush1.msra.mxu0 %v678
        %680 = vmatprep.subr.mxu0 0.0
        %v681 = vand.u32 %v185, 4294901760
        %v682 = vsub.f32 %v185, %v681
        %683 = vmatpush1.msra.mxu0 %v682
        %684 = vmatprep.subr.mxu0 0.0
        %v685 = vand.u32 %v186, 4294901760
        %v686 = vsub.f32 %v186, %v685
        %687 = vmatpush1.msra.mxu0 %v686
        %688 = vmatprep.subr.mxu0 0.0
        %v689 = vand.u32 %v187, 4294901760
        %v690 = vsub.f32 %v187, %v689
        %691 = vmatpush1.msra.mxu0 %v690
        %692 = vmatprep.subr.mxu0 0.0
        %v693 = vand.u32 %v188, 4294901760
        %v694 = vsub.f32 %v188, %v693
        %695 = vmatpush1.msra.mxu0 %v694
        %696 = vmatprep.subr.mxu0 0.0
        %v697 = vand.u32 %v189, 4294901760
        %v698 = vsub.f32 %v189, %v697
        %699 = vmatpush1.msra.mxu0 %v698
        %700 = vmatprep.subr.mxu0 0.0
        %v701 = vand.u32 %v190, 4294901760
        %v702 = vsub.f32 %v190, %v701
        %703 = vmatpush1.msra.mxu0 %v702
        %704 = vmatprep.subr.mxu0 0.0
        %v705 = vand.u32 %v191, 4294901760
        %v706 = vsub.f32 %v191, %v705
        %707 = vmatpush1.msra.mxu0 %v706
        %708 = vmatprep.subr.mxu0 0.0
        %v709 = vand.u32 %v192, 4294901760
        %v710 = vsub.f32 %v192, %v709
        %711 = vmatpush1.msra.mxu0 %v710
        %712 = vmatprep.subr.mxu0 0.0
        %v713 = vand.u32 %v193, 4294901760
        %v714 = vsub.f32 %v193, %v713
        %715 = vmatpush1.msra.mxu0 %v714
        %716 = vmatprep.subr.mxu0 0.0
        %v717 = vand.u32 %v194, 4294901760
        %v718 = vsub.f32 %v194, %v717
        %719 = vmatpush1.msra.mxu0 %v718
        %720 = vmatprep.subr.mxu0 0.0
        %v721 = vand.u32 %v195, 4294901760
        %v722 = vsub.f32 %v195, %v721
        %723 = vmatpush1.msra.mxu0 %v722
        %724 = vmatprep.subr.mxu0 0.0
        %v725 = vand.u32 %v196, 4294901760
        %v726 = vsub.f32 %v196, %v725
        %727 = vmatpush1.msra.mxu0 %v726
        %728 = vmatprep.subr.mxu0 0.0
        %v729 = vand.u32 %v197, 4294901760
        %v730 = vsub.f32 %v197, %v729
        %731 = vmatpush1.msra.mxu0 %v730
        %732 = vmatprep.subr.mxu0 0.0
        %v733 = vand.u32 %v198, 4294901760
        %v734 = vsub.f32 %v198, %v733
        %735 = vmatpush1.msra.mxu0 %v734
        %736 = vmatprep.subr.mxu0 0.0
        %v737 = vand.u32 %v199, 4294901760
        %v738 = vsub.f32 %v199, %v737
        %739 = vmatpush1.msra.mxu0 %v738
        %740 = vmatprep.subr.mxu0 0.0
        %v741 = vand.u32 %v200, 4294901760
        %v742 = vsub.f32 %v200, %v741
        %743 = vmatpush1.msra.mxu0 %v742
        %744 = vmatprep.subr.mxu0 0.0
        %v745 = vand.u32 %v201, 4294901760
        %v746 = vsub.f32 %v201, %v745
        %747 = vmatpush1.msra.mxu0 %v746
        %748 = vmatprep.subr.mxu0 0.0
        %v749 = vand.u32 %v202, 4294901760
        %v750 = vsub.f32 %v202, %v749
        %751 = vmatpush1.msra.mxu0 %v750
        %752 = vmatprep.subr.mxu0 0.0
        %v753 = vand.u32 %v203, 4294901760
        %v754 = vsub.f32 %v203, %v753
        %755 = vmatpush1.msra.mxu0 %v754
        %756 = vmatprep.subr.mxu0 0.0
        %v757 = vand.u32 %v204, 4294901760
        %v758 = vsub.f32 %v204, %v757
        %759 = vmatpush1.msra.mxu0 %v758
        %760 = vmatprep.subr.mxu0 0.0
        %v761 = vand.u32 %v205, 4294901760
        %v762 = vsub.f32 %v205, %v761
        %763 = vmatpush1.msra.mxu0 %v762
        %764 = vmatprep.subr.mxu0 0.0
        %v765 = vand.u32 %v206, 4294901760
        %v766 = vsub.f32 %v206, %v765
        %767 = vmatpush1.msra.mxu0 %v766
        %768 = vmatprep.subr.mxu0 0.0
        %v769 = vand.u32 %v207, 4294901760
        %v770 = vsub.f32 %v207, %v769
        %771 = vmatpush1.msra.mxu0 %v770
        %772 = vmatprep.subr.mxu0 0.0
        %v773 = vand.u32 %v208, 4294901760
        %v774 = vsub.f32 %v208, %v773
        %775 = vmatpush1.msra.mxu0 %v774
        %776 = vmatprep.subr.mxu0 0.0
        %v777 = vand.u32 %v209, 4294901760
        %v778 = vsub.f32 %v209, %v777
        %779 = vmatpush1.msra.mxu0 %v778
        %v780 = vand.u32 %v171, 4294901760
        %v781 = vsub.f32 %v171, %v780
        %782 = vmatprep.mubr.f32.mxu0 %v781
        %v783 = vand.u32 %v170, 4294901760
        %v784 = vsub.f32 %v170, %v783
        %785 = vmatmul.mubr.f32.gmra.mrb[0].mxu0 %v784
        %v786 = vpop.f32.mrb[0].mxu0
        %v787 = vadd.f32 %v649, %v786
        %v788 = vpop.f32.mrb[0].mxu0
        %789 = vdwg.mxu0
        %790 = vmatprep.subr.mxu0 0.0
        %v791 = vand.u32 %v178, 4294901760
        %792 = vmatpush1.msra.mxu0 %v791
        %793 = vmatprep.subr.mxu0 0.0
        %v794 = vand.u32 %v179, 4294901760
        %795 = vmatpush1.msra.mxu0 %v794
        %796 = vmatprep.subr.mxu0 0.0
        %v797 = vand.u32 %v180, 4294901760
        %798 = vmatpush1.msra.mxu0 %v797
        %799 = vmatprep.subr.mxu0 0.0
        %v800 = vand.u32 %v181, 4294901760
        %801 = vmatpush1.msra.mxu0 %v800
        %802 = vmatprep.subr.mxu0 0.0
        %v803 = vand.u32 %v182, 4294901760
        %804 = vmatpush1.msra.mxu0 %v803
        %805 = vmatprep.subr.mxu0 0.0
        %v806 = vand.u32 %v183, 4294901760
        %807 = vmatpush1.msra.mxu0 %v806
        %808 = vmatprep.subr.mxu0 0.0
        %v809 = vand.u32 %v184, 4294901760
        %810 = vmatpush1.msra.mxu0 %v809
        %811 = vmatprep.subr.mxu0 0.0
        %v812 = vand.u32 %v185, 4294901760
        %813 = vmatpush1.msra.mxu0 %v812
        %814 = vmatprep.subr.mxu0 0.0
        %v815 = vand.u32 %v186, 4294901760
        %816 = vmatpush1.msra.mxu0 %v815
        %817 = vmatprep.subr.mxu0 0.0
        %v818 = vand.u32 %v187, 4294901760
        %819 = vmatpush1.msra.mxu0 %v818
        %820 = vmatprep.subr.mxu0 0.0
        %v821 = vand.u32 %v188, 4294901760
        %822 = vmatpush1.msra.mxu0 %v821
        %823 = vmatprep.subr.mxu0 0.0
        %v824 = vand.u32 %v189, 4294901760
        %825 = vmatpush1.msra.mxu0 %v824
        %826 = vmatprep.subr.mxu0 0.0
        %v827 = vand.u32 %v190, 4294901760
        %828 = vmatpush1.msra.mxu0 %v827
        %829 = vmatprep.subr.mxu0 0.0
        %v830 = vand.u32 %v191, 4294901760
        %831 = vmatpush1.msra.mxu0 %v830
        %832 = vmatprep.subr.mxu0 0.0
        %v833 = vand.u32 %v192, 4294901760
        %834 = vmatpush1.msra.mxu0 %v833
        %835 = vmatprep.subr.mxu0 0.0
        %v836 = vand.u32 %v193, 4294901760
        %837 = vmatpush1.msra.mxu0 %v836
        %838 = vmatprep.subr.mxu0 0.0
        %v839 = vand.u32 %v194, 4294901760
        %840 = vmatpush1.msra.mxu0 %v839
        %841 = vmatprep.subr.mxu0 0.0
        %v842 = vand.u32 %v195, 4294901760
        %843 = vmatpush1.msra.mxu0 %v842
        %844 = vmatprep.subr.mxu0 0.0
        %v845 = vand.u32 %v196, 4294901760
        %846 = vmatpush1.msra.mxu0 %v845
        %847 = vmatprep.subr.mxu0 0.0
        %v848 = vand.u32 %v197, 4294901760
        %849 = vmatpush1.msra.mxu0 %v848
        %850 = vmatprep.subr.mxu0 0.0
        %v851 = vand.u32 %v198, 4294901760
        %852 = vmatpush1.msra.mxu0 %v851
        %853 = vmatprep.subr.mxu0 0.0
        %v854 = vand.u32 %v199, 4294901760
        %855 = vmatpush1.msra.mxu0 %v854
        %856 = vmatprep.subr.mxu0 0.0
        %v857 = vand.u32 %v200, 4294901760
        %858 = vmatpush1.msra.mxu0 %v857
        %859 = vmatprep.subr.mxu0 0.0
        %v860 = vand.u32 %v201, 4294901760
        %861 = vmatpush1.msra.mxu0 %v860
        %862 = vmatprep.subr.mxu0 0.0
        %v863 = vand.u32 %v202, 4294901760
        %864 = vmatpush1.msra.mxu0 %v863
        %865 = vmatprep.subr.mxu0 0.0
        %v866 = vand.u32 %v203, 4294901760
        %867 = vmatpush1.msra.mxu0 %v866
        %868 = vmatprep.subr.mxu0 0.0
        %v869 = vand.u32 %v204, 4294901760
        %870 = vmatpush1.msra.mxu0 %v869
        %871 = vmatprep.subr.mxu0 0.0
        %v872 = vand.u32 %v205, 4294901760
        %873 = vmatpush1.msra.mxu0 %v872
        %874 = vmatprep.subr.mxu0 0.0
        %v875 = vand.u32 %v206, 4294901760
        %876 = vmatpush1.msra.mxu0 %v875
        %877 = vmatprep.subr.mxu0 0.0
        %v878 = vand.u32 %v207, 4294901760
        %879 = vmatpush1.msra.mxu0 %v878
        %880 = vmatprep.subr.mxu0 0.0
        %v881 = vand.u32 %v208, 4294901760
        %882 = vmatpush1.msra.mxu0 %v881
        %883 = vmatprep.subr.mxu0 0.0
        %v884 = vand.u32 %v209, 4294901760
        %885 = vmatpush1.msra.mxu0 %v884
        %v886 = vand.u32 %v171, 4294901760
        %v887 = vsub.f32 %v171, %v886
        %v888 = vand.u32 %v887, 4294901760
        %889 = vmatprep.mubr.f32.mxu0 %v888
        %v890 = vand.u32 %v170, 4294901760
        %v891 = vsub.f32 %v170, %v890
        %v892 = vand.u32 %v891, 4294901760
        %893 = vmatmul.mubr.f32.gmra.mrb[0].mxu0 %v892
        %v894 = vpop.f32.mrb[0].mxu0
        %v895 = vadd.f32 %v787, %v894
        %v896 = vpop.f32.mrb[0].mxu0
        %897 = vdwg.mxu0
        %898 = vmatprep.subr.mxu0 0.0
        %v899 = vand.u32 %v178, 4294901760
        %v900 = vsub.f32 %v178, %v899
        %v901 = vand.u32 %v900, 4294901760
        %902 = vmatpush1.msra.mxu0 %v901
        %903 = vmatprep.subr.mxu0 0.0
        %v904 = vand.u32 %v179, 4294901760
        %v905 = vsub.f32 %v179, %v904
        %v906 = vand.u32 %v905, 4294901760
        %907 = vmatpush1.msra.mxu0 %v906
        %908 = vmatprep.subr.mxu0 0.0
        %v909 = vand.u32 %v180, 4294901760
        %v910 = vsub.f32 %v180, %v909
        %v911 = vand.u32 %v910, 4294901760
        %912 = vmatpush1.msra.mxu0 %v911
        %913 = vmatprep.subr.mxu0 0.0
        %v914 = vand.u32 %v181, 4294901760
        %v915 = vsub.f32 %v181, %v914
        %v916 = vand.u32 %v915, 4294901760
        %917 = vmatpush1.msra.mxu0 %v916
        %918 = vmatprep.subr.mxu0 0.0
        %v919 = vand.u32 %v182, 4294901760
        %v920 = vsub.f32 %v182, %v919
        %v921 = vand.u32 %v920, 4294901760
        %922 = vmatpush1.msra.mxu0 %v921
        %923 = vmatprep.subr.mxu0 0.0
        %v924 = vand.u32 %v183, 4294901760
        %v925 = vsub.f32 %v183, %v924
        %v926 = vand.u32 %v925, 4294901760
        %927 = vmatpush1.msra.mxu0 %v926
        %928 = vmatprep.subr.mxu0 0.0
        %v929 = vand.u32 %v184, 4294901760
        %v930 = vsub.f32 %v184, %v929
        %v931 = vand.u32 %v930, 4294901760
        %932 = vmatpush1.msra.mxu0 %v931
        %933 = vmatprep.subr.mxu0 0.0
        %v934 = vand.u32 %v185, 4294901760
        %v935 = vsub.f32 %v185, %v934
        %v936 = vand.u32 %v935, 4294901760
        %937 = vmatpush1.msra.mxu0 %v936
        %938 = vmatprep.subr.mxu0 0.0
        %v939 = vand.u32 %v186, 4294901760
        %v940 = vsub.f32 %v186, %v939
        %v941 = vand.u32 %v940, 4294901760
        %942 = vmatpush1.msra.mxu0 %v941
        %943 = vmatprep.subr.mxu0 0.0
        %v944 = vand.u32 %v187, 4294901760
        %v945 = vsub.f32 %v187, %v944
        %v946 = vand.u32 %v945, 4294901760
        %947 = vmatpush1.msra.mxu0 %v946
        %948 = vmatprep.subr.mxu0 0.0
        %v949 = vand.u32 %v188, 4294901760
        %v950 = vsub.f32 %v188, %v949
        %v951 = vand.u32 %v950, 4294901760
        %952 = vmatpush1.msra.mxu0 %v951
        %953 = vmatprep.subr.mxu0 0.0
        %v954 = vand.u32 %v189, 4294901760
        %v955 = vsub.f32 %v189, %v954
        %v956 = vand.u32 %v955, 4294901760
        %957 = vmatpush1.msra.mxu0 %v956
        %958 = vmatprep.subr.mxu0 0.0
        %v959 = vand.u32 %v190, 4294901760
        %v960 = vsub.f32 %v190, %v959
        %v961 = vand.u32 %v960, 4294901760
        %962 = vmatpush1.msra.mxu0 %v961
        %963 = vmatprep.subr.mxu0 0.0
        %v964 = vand.u32 %v191, 4294901760
        %v965 = vsub.f32 %v191, %v964
        %v966 = vand.u32 %v965, 4294901760
        %967 = vmatpush1.msra.mxu0 %v966
        %968 = vmatprep.subr.mxu0 0.0
        %v969 = vand.u32 %v192, 4294901760
        %v970 = vsub.f32 %v192, %v969
        %v971 = vand.u32 %v970, 4294901760
        %972 = vmatpush1.msra.mxu0 %v971
        %973 = vmatprep.subr.mxu0 0.0
        %v974 = vand.u32 %v193, 4294901760
        %v975 = vsub.f32 %v193, %v974
        %v976 = vand.u32 %v975, 4294901760
        %977 = vmatpush1.msra.mxu0 %v976
        %978 = vmatprep.subr.mxu0 0.0
        %v979 = vand.u32 %v194, 4294901760
        %v980 = vsub.f32 %v194, %v979
        %v981 = vand.u32 %v980, 4294901760
        %982 = vmatpush1.msra.mxu0 %v981
        %983 = vmatprep.subr.mxu0 0.0
        %v984 = vand.u32 %v195, 4294901760
        %v985 = vsub.f32 %v195, %v984
        %v986 = vand.u32 %v985, 4294901760
        %987 = vmatpush1.msra.mxu0 %v986
        %988 = vmatprep.subr.mxu0 0.0
        %v989 = vand.u32 %v196, 4294901760
        %v990 = vsub.f32 %v196, %v989
        %v991 = vand.u32 %v990, 4294901760
        %992 = vmatpush1.msra.mxu0 %v991
        %993 = vmatprep.subr.mxu0 0.0
        %v994 = vand.u32 %v197, 4294901760
        %v995 = vsub.f32 %v197, %v994
        %v996 = vand.u32 %v995, 4294901760
        %997 = vmatpush1.msra.mxu0 %v996
        %998 = vmatprep.subr.mxu0 0.0
        %v999 = vand.u32 %v198, 4294901760
        %v1000 = vsub.f32 %v198, %v999
        %v1001 = vand.u32 %v1000, 4294901760
        %1002 = vmatpush1.msra.mxu0 %v1001
        %1003 = vmatprep.subr.mxu0 0.0
        %v1004 = vand.u32 %v199, 4294901760
        %v1005 = vsub.f32 %v199, %v1004
        %v1006 = vand.u32 %v1005, 4294901760
        %1007 = vmatpush1.msra.mxu0 %v1006
        %1008 = vmatprep.subr.mxu0 0.0
        %v1009 = vand.u32 %v200, 4294901760
        %v1010 = vsub.f32 %v200, %v1009
        %v1011 = vand.u32 %v1010, 4294901760
        %1012 = vmatpush1.msra.mxu0 %v1011
        %1013 = vmatprep.subr.mxu0 0.0
        %v1014 = vand.u32 %v201, 4294901760
        %v1015 = vsub.f32 %v201, %v1014
        %v1016 = vand.u32 %v1015, 4294901760
        %1017 = vmatpush1.msra.mxu0 %v1016
        %1018 = vmatprep.subr.mxu0 0.0
        %v1019 = vand.u32 %v202, 4294901760
        %v1020 = vsub.f32 %v202, %v1019
        %v1021 = vand.u32 %v1020, 4294901760
        %1022 = vmatpush1.msra.mxu0 %v1021
        %1023 = vmatprep.subr.mxu0 0.0
        %v1024 = vand.u32 %v203, 4294901760
        %v1025 = vsub.f32 %v203, %v1024
        %v1026 = vand.u32 %v1025, 4294901760
        %1027 = vmatpush1.msra.mxu0 %v1026
        %1028 = vmatprep.subr.mxu0 0.0
        %v1029 = vand.u32 %v204, 4294901760
        %v1030 = vsub.f32 %v204, %v1029
        %v1031 = vand.u32 %v1030, 4294901760
        %1032 = vmatpush1.msra.mxu0 %v1031
        %1033 = vmatprep.subr.mxu0 0.0
        %v1034 = vand.u32 %v205, 4294901760
        %v1035 = vsub.f32 %v205, %v1034
        %v1036 = vand.u32 %v1035, 4294901760
        %1037 = vmatpush1.msra.mxu0 %v1036
        %1038 = vmatprep.subr.mxu0 0.0
        %v1039 = vand.u32 %v206, 4294901760
        %v1040 = vsub.f32 %v206, %v1039
        %v1041 = vand.u32 %v1040, 4294901760
        %1042 = vmatpush1.msra.mxu0 %v1041
        %1043 = vmatprep.subr.mxu0 0.0
        %v1044 = vand.u32 %v207, 4294901760
        %v1045 = vsub.f32 %v207, %v1044
        %v1046 = vand.u32 %v1045, 4294901760
        %1047 = vmatpush1.msra.mxu0 %v1046
        %1048 = vmatprep.subr.mxu0 0.0
        %v1049 = vand.u32 %v208, 4294901760
        %v1050 = vsub.f32 %v208, %v1049
        %v1051 = vand.u32 %v1050, 4294901760
        %1052 = vmatpush1.msra.mxu0 %v1051
        %1053 = vmatprep.subr.mxu0 0.0
        %v1054 = vand.u32 %v209, 4294901760
        %v1055 = vsub.f32 %v209, %v1054
        %v1056 = vand.u32 %v1055, 4294901760
        %1057 = vmatpush1.msra.mxu0 %v1056
        %v1058 = vand.u32 %v171, 4294901760
        %1059 = vmatprep.mubr.f32.mxu0 %v1058
        %v1060 = vand.u32 %v170, 4294901760
        %1061 = vmatmul.mubr.f32.gmra.mrb[0].mxu0 %v1060
        %v1062 = vpop.f32.mrb[0].mxu0
        %v1063 = vadd.f32 %v895, %v1062
        %v1064 = vpop.f32.mrb[0].mxu0
        %1065 = vdwg.mxu0
        %1066 = vmatprep.subr.mxu0 0.0
        %v1067 = vand.u32 %v178, 4294901760
        %1068 = vmatpush1.msra.mxu0 %v1067
        %1069 = vmatprep.subr.mxu0 0.0
        %v1070 = vand.u32 %v179, 4294901760
        %1071 = vmatpush1.msra.mxu0 %v1070
        %1072 = vmatprep.subr.mxu0 0.0
        %v1073 = vand.u32 %v180, 4294901760
        %1074 = vmatpush1.msra.mxu0 %v1073
        %1075 = vmatprep.subr.mxu0 0.0
        %v1076 = vand.u32 %v181, 4294901760
        %1077 = vmatpush1.msra.mxu0 %v1076
        %1078 = vmatprep.subr.mxu0 0.0
        %v1079 = vand.u32 %v182, 4294901760
        %1080 = vmatpush1.msra.mxu0 %v1079
        %1081 = vmatprep.subr.mxu0 0.0
        %v1082 = vand.u32 %v183, 4294901760
        %1083 = vmatpush1.msra.mxu0 %v1082
        %1084 = vmatprep.subr.mxu0 0.0
        %v1085 = vand.u32 %v184, 4294901760
        %1086 = vmatpush1.msra.mxu0 %v1085
        %1087 = vmatprep.subr.mxu0 0.0
        %v1088 = vand.u32 %v185, 4294901760
        %1089 = vmatpush1.msra.mxu0 %v1088
        %1090 = vmatprep.subr.mxu0 0.0
        %v1091 = vand.u32 %v186, 4294901760
        %1092 = vmatpush1.msra.mxu0 %v1091
        %1093 = vmatprep.subr.mxu0 0.0
        %v1094 = vand.u32 %v187, 4294901760
        %1095 = vmatpush1.msra.mxu0 %v1094
        %1096 = vmatprep.subr.mxu0 0.0
        %v1097 = vand.u32 %v188, 4294901760
        %1098 = vmatpush1.msra.mxu0 %v1097
        %1099 = vmatprep.subr.mxu0 0.0
        %v1100 = vand.u32 %v189, 4294901760
        %1101 = vmatpush1.msra.mxu0 %v1100
        %1102 = vmatprep.subr.mxu0 0.0
        %v1103 = vand.u32 %v190, 4294901760
        %1104 = vmatpush1.msra.mxu0 %v1103
        %1105 = vmatprep.subr.mxu0 0.0
        %v1106 = vand.u32 %v191, 4294901760
        %1107 = vmatpush1.msra.mxu0 %v1106
        %1108 = vmatprep.subr.mxu0 0.0
        %v1109 = vand.u32 %v192, 4294901760
        %1110 = vmatpush1.msra.mxu0 %v1109
        %1111 = vmatprep.subr.mxu0 0.0
        %v1112 = vand.u32 %v193, 4294901760
        %1113 = vmatpush1.msra.mxu0 %v1112
        %1114 = vmatprep.subr.mxu0 0.0
        %v1115 = vand.u32 %v194, 4294901760
        %1116 = vmatpush1.msra.mxu0 %v1115
        %1117 = vmatprep.subr.mxu0 0.0
        %v1118 = vand.u32 %v195, 4294901760
        %1119 = vmatpush1.msra.mxu0 %v1118
        %1120 = vmatprep.subr.mxu0 0.0
        %v1121 = vand.u32 %v196, 4294901760
        %1122 = vmatpush1.msra.mxu0 %v1121
        %1123 = vmatprep.subr.mxu0 0.0
        %v1124 = vand.u32 %v197, 4294901760
        %1125 = vmatpush1.msra.mxu0 %v1124
        %1126 = vmatprep.subr.mxu0 0.0
        %v1127 = vand.u32 %v198, 4294901760
        %1128 = vmatpush1.msra.mxu0 %v1127
        %1129 = vmatprep.subr.mxu0 0.0
        %v1130 = vand.u32 %v199, 4294901760
        %1131 = vmatpush1.msra.mxu0 %v1130
        %1132 = vmatprep.subr.mxu0 0.0
        %v1133 = vand.u32 %v200, 4294901760
        %1134 = vmatpush1.msra.mxu0 %v1133
        %1135 = vmatprep.subr.mxu0 0.0
        %v1136 = vand.u32 %v201, 4294901760
        %1137 = vmatpush1.msra.mxu0 %v1136
        %1138 = vmatprep.subr.mxu0 0.0
        %v1139 = vand.u32 %v202, 4294901760
        %1140 = vmatpush1.msra.mxu0 %v1139
        %1141 = vmatprep.subr.mxu0 0.0
        %v1142 = vand.u32 %v203, 4294901760
        %1143 = vmatpush1.msra.mxu0 %v1142
        %1144 = vmatprep.subr.mxu0 0.0
        %v1145 = vand.u32 %v204, 4294901760
        %1146 = vmatpush1.msra.mxu0 %v1145
        %1147 = vmatprep.subr.mxu0 0.0
        %v1148 = vand.u32 %v205, 4294901760
        %1149 = vmatpush1.msra.mxu0 %v1148
        %1150 = vmatprep.subr.mxu0 0.0
        %v1151 = vand.u32 %v206, 4294901760
        %1152 = vmatpush1.msra.mxu0 %v1151
        %1153 = vmatprep.subr.mxu0 0.0
        %v1154 = vand.u32 %v207, 4294901760
        %1155 = vmatpush1.msra.mxu0 %v1154
        %1156 = vmatprep.subr.mxu0 0.0
        %v1157 = vand.u32 %v208, 4294901760
        %1158 = vmatpush1.msra.mxu0 %v1157
        %1159 = vmatprep.subr.mxu0 0.0
        %v1160 = vand.u32 %v209, 4294901760
        %1161 = vmatpush1.msra.mxu0 %v1160
        %v1162 = vand.u32 %v171, 4294901760
        %1163 = vmatprep.mubr.f32.mxu0 %v1162
        %v1164 = vand.u32 %v170, 4294901760
        %1165 = vmatmul.mubr.f32.gmra.mrb[0].mxu0 %v1164
        %v1166 = vpop.f32.mrb[0].mxu0
        %v1167 = vadd.f32 %v1063, %v1166
        %v1168 = vpop.f32.mrb[0].mxu0
        %1169 = vdwg.mxu0
        %1170 = vmatprep.subr.mxu0 0.0
        %v1171 = vand.u32 %v210, 4294901760
        %1172 = vmatpush1.msra.mxu0 %v1171
        %1173 = vmatprep.subr.mxu0 0.0
        %v1174 = vand.u32 %v211, 4294901760
        %1175 = vmatpush1.msra.mxu0 %v1174
        %1176 = vmatprep.subr.mxu0 0.0
        %v1177 = vand.u32 %v212, 4294901760
        %1178 = vmatpush1.msra.mxu0 %v1177
        %1179 = vmatprep.subr.mxu0 0.0
        %v1180 = vand.u32 %v213, 4294901760
        %1181 = vmatpush1.msra.mxu0 %v1180
        %1182 = vmatprep.subr.mxu0 0.0
        %v1183 = vand.u32 %v214, 4294901760
        %1184 = vmatpush1.msra.mxu0 %v1183
        %1185 = vmatprep.subr.mxu0 0.0
        %v1186 = vand.u32 %v215, 4294901760
        %1187 = vmatpush1.msra.mxu0 %v1186
        %1188 = vmatprep.subr.mxu0 0.0
        %v1189 = vand.u32 %v216, 4294901760
        %1190 = vmatpush1.msra.mxu0 %v1189
        %1191 = vmatprep.subr.mxu0 0.0
        %v1192 = vand.u32 %v217, 4294901760
        %1193 = vmatpush1.msra.mxu0 %v1192
        %1194 = vmatprep.subr.mxu0 0.0
        %v1195 = vand.u32 %v218, 4294901760
        %1196 = vmatpush1.msra.mxu0 %v1195
        %1197 = vmatprep.subr.mxu0 0.0
        %v1198 = vand.u32 %v219, 4294901760
        %1199 = vmatpush1.msra.mxu0 %v1198
        %1200 = vmatprep.subr.mxu0 0.0
        %v1201 = vand.u32 %v220, 4294901760
        %1202 = vmatpush1.msra.mxu0 %v1201
        %1203 = vmatprep.subr.mxu0 0.0
        %v1204 = vand.u32 %v221, 4294901760
        %1205 = vmatpush1.msra.mxu0 %v1204
        %1206 = vmatprep.subr.mxu0 0.0
        %v1207 = vand.u32 %v222, 4294901760
        %1208 = vmatpush1.msra.mxu0 %v1207
        %1209 = vmatprep.subr.mxu0 0.0
        %v1210 = vand.u32 %v223, 4294901760
        %1211 = vmatpush1.msra.mxu0 %v1210
        %1212 = vmatprep.subr.mxu0 0.0
        %v1213 = vand.u32 %v224, 4294901760
        %1214 = vmatpush1.msra.mxu0 %v1213
        %1215 = vmatprep.subr.mxu0 0.0
        %v1216 = vand.u32 %v225, 4294901760
        %1217 = vmatpush1.msra.mxu0 %v1216
        %1218 = vmatprep.subr.mxu0 0.0
        %v1219 = vand.u32 %v226, 4294901760
        %1220 = vmatpush1.msra.mxu0 %v1219
        %1221 = vmatprep.subr.mxu0 0.0
        %v1222 = vand.u32 %v227, 4294901760
        %1223 = vmatpush1.msra.mxu0 %v1222
        %1224 = vmatprep.subr.mxu0 0.0
        %v1225 = vand.u32 %v228, 4294901760
        %1226 = vmatpush1.msra.mxu0 %v1225
        %1227 = vmatprep.subr.mxu0 0.0
        %v1228 = vand.u32 %v229, 4294901760
        %1229 = vmatpush1.msra.mxu0 %v1228
        %1230 = vmatprep.subr.mxu0 0.0
        %v1231 = vand.u32 %v230, 4294901760
        %1232 = vmatpush1.msra.mxu0 %v1231
        %1233 = vmatprep.subr.mxu0 0.0
        %v1234 = vand.u32 %v231, 4294901760
        %1235 = vmatpush1.msra.mxu0 %v1234
        %1236 = vmatprep.subr.mxu0 0.0
        %v1237 = vand.u32 %v232, 4294901760
        %1238 = vmatpush1.msra.mxu0 %v1237
        %1239 = vmatprep.subr.mxu0 0.0
        %v1240 = vand.u32 %v233, 4294901760
        %1241 = vmatpush1.msra.mxu0 %v1240
        %1242 = vmatprep.subr.mxu0 0.0
        %v1243 = vand.u32 %v234, 4294901760
        %1244 = vmatpush1.msra.mxu0 %v1243
        %1245 = vmatprep.subr.mxu0 0.0
        %v1246 = vand.u32 %v235, 4294901760
        %1247 = vmatpush1.msra.mxu0 %v1246
        %1248 = vmatprep.subr.mxu0 0.0
        %v1249 = vand.u32 %v236, 4294901760
        %1250 = vmatpush1.msra.mxu0 %v1249
        %1251 = vmatprep.subr.mxu0 0.0
        %v1252 = vand.u32 %v237, 4294901760
        %1253 = vmatpush1.msra.mxu0 %v1252
        %1254 = vmatprep.subr.mxu0 0.0
        %v1255 = vand.u32 %v238, 4294901760
        %1256 = vmatpush1.msra.mxu0 %v1255
        %1257 = vmatprep.subr.mxu0 0.0
        %v1258 = vand.u32 %v239, 4294901760
        %1259 = vmatpush1.msra.mxu0 %v1258
        %1260 = vmatprep.subr.mxu0 0.0
        %v1261 = vand.u32 %v240, 4294901760
        %1262 = vmatpush1.msra.mxu0 %v1261
        %1263 = vmatprep.subr.mxu0 0.0
        %v1264 = vand.u32 %v241, 4294901760
        %1265 = vmatpush1.msra.mxu0 %v1264
        %v1266 = vand.u32 %v173, 4294901760
        %v1267 = vsub.f32 %v173, %v1266
        %v1268 = vand.u32 %v1267, 4294901760
        %v1269 = vsub.f32 %v1267, %v1268
        %v1270 = vand.u32 %v1269, 4294901760
        %1271 = vmatprep.mubr.f32.mxu0 %v1270
        %v1272 = vand.u32 %v172, 4294901760
        %v1273 = vsub.f32 %v172, %v1272
        %v1274 = vand.u32 %v1273, 4294901760
        %v1275 = vsub.f32 %v1273, %v1274
        %v1276 = vand.u32 %v1275, 4294901760
        %1277 = vmatmul.mubr.f32.gmra.mrb[0].mxu0 %v1276
        %v1278 = vpop.f32.mrb[0].mxu0
        %v1279 = vadd.f32 %v1167, %v1278
        %v1280 = vpop.f32.mrb[0].mxu0
        %1281 = vdwg.mxu0
        %1282 = vmatprep.subr.mxu0 0.0
        %v1283 = vand.u32 %v210, 4294901760
        %v1284 = vsub.f32 %v210, %v1283
        %v1285 = vand.u32 %v1284, 4294901760
        %v1286 = vsub.f32 %v1284, %v1285
        %v1287 = vand.u32 %v1286, 4294901760
        %1288 = vmatpush1.msra.mxu0 %v1287
        %1289 = vmatprep.subr.mxu0 0.0
        %v1290 = vand.u32 %v211, 4294901760
        %v1291 = vsub.f32 %v211, %v1290
        %v1292 = vand.u32 %v1291, 4294901760
        %v1293 = vsub.f32 %v1291, %v1292
        %v1294 = vand.u32 %v1293, 4294901760
        %1295 = vmatpush1.msra.mxu0 %v1294
        %1296 = vmatprep.subr.mxu0 0.0
        %v1297 = vand.u32 %v212, 4294901760
        %v1298 = vsub.f32 %v212, %v1297
        %v1299 = vand.u32 %v1298, 4294901760
        %v1300 = vsub.f32 %v1298, %v1299
        %v1301 = vand.u32 %v1300, 4294901760
        %1302 = vmatpush1.msra.mxu0 %v1301
        %1303 = vmatprep.subr.mxu0 0.0
        %v1304 = vand.u32 %v213, 4294901760
        %v1305 = vsub.f32 %v213, %v1304
        %v1306 = vand.u32 %v1305, 4294901760
        %v1307 = vsub.f32 %v1305, %v1306
        %v1308 = vand.u32 %v1307, 4294901760
        %1309 = vmatpush1.msra.mxu0 %v1308
        %1310 = vmatprep.subr.mxu0 0.0
        %v1311 = vand.u32 %v214, 4294901760
        %v1312 = vsub.f32 %v214, %v1311
        %v1313 = vand.u32 %v1312, 4294901760
        %v1314 = vsub.f32 %v1312, %v1313
        %v1315 = vand.u32 %v1314, 4294901760
        %1316 = vmatpush1.msra.mxu0 %v1315
        %1317 = vmatprep.subr.mxu0 0.0
        %v1318 = vand.u32 %v215, 4294901760
        %v1319 = vsub.f32 %v215, %v1318
        %v1320 = vand.u32 %v1319, 4294901760
        %v1321 = vsub.f32 %v1319, %v1320
        %v1322 = vand.u32 %v1321, 4294901760
        %1323 = vmatpush1.msra.mxu0 %v1322
        %1324 = vmatprep.subr.mxu0 0.0
        %v1325 = vand.u32 %v216, 4294901760
        %v1326 = vsub.f32 %v216, %v1325
        %v1327 = vand.u32 %v1326, 4294901760
        %v1328 = vsub.f32 %v1326, %v1327
        %v1329 = vand.u32 %v1328, 4294901760
        %1330 = vmatpush1.msra.mxu0 %v1329
        %1331 = vmatprep.subr.mxu0 0.0
        %v1332 = vand.u32 %v217, 4294901760
        %v1333 = vsub.f32 %v217, %v1332
        %v1334 = vand.u32 %v1333, 4294901760
        %v1335 = vsub.f32 %v1333, %v1334
        %v1336 = vand.u32 %v1335, 4294901760
        %1337 = vmatpush1.msra.mxu0 %v1336
        %1338 = vmatprep.subr.mxu0 0.0
        %v1339 = vand.u32 %v218, 4294901760
        %v1340 = vsub.f32 %v218, %v1339
        %v1341 = vand.u32 %v1340, 4294901760
        %v1342 = vsub.f32 %v1340, %v1341
        %v1343 = vand.u32 %v1342, 4294901760
        %1344 = vmatpush1.msra.mxu0 %v1343
        %1345 = vmatprep.subr.mxu0 0.0
        %v1346 = vand.u32 %v219, 4294901760
        %v1347 = vsub.f32 %v219, %v1346
        %v1348 = vand.u32 %v1347, 4294901760
        %v1349 = vsub.f32 %v1347, %v1348
        %v1350 = vand.u32 %v1349, 4294901760
        %1351 = vmatpush1.msra.mxu0 %v1350
        %1352 = vmatprep.subr.mxu0 0.0
        %v1353 = vand.u32 %v220, 4294901760
        %v1354 = vsub.f32 %v220, %v1353
        %v1355 = vand.u32 %v1354, 4294901760
        %v1356 = vsub.f32 %v1354, %v1355
        %v1357 = vand.u32 %v1356, 4294901760
        %1358 = vmatpush1.msra.mxu0 %v1357
        %1359 = vmatprep.subr.mxu0 0.0
        %v1360 = vand.u32 %v221, 4294901760
        %v1361 = vsub.f32 %v221, %v1360
        %v1362 = vand.u32 %v1361, 4294901760
        %v1363 = vsub.f32 %v1361, %v1362
        %v1364 = vand.u32 %v1363, 4294901760
        %1365 = vmatpush1.msra.mxu0 %v1364
        %1366 = vmatprep.subr.mxu0 0.0
        %v1367 = vand.u32 %v222, 4294901760
        %v1368 = vsub.f32 %v222, %v1367
        %v1369 = vand.u32 %v1368, 4294901760
        %v1370 = vsub.f32 %v1368, %v1369
        %v1371 = vand.u32 %v1370, 4294901760
        %1372 = vmatpush1.msra.mxu0 %v1371
        %1373 = vmatprep.subr.mxu0 0.0
        %v1374 = vand.u32 %v223, 4294901760
        %v1375 = vsub.f32 %v223, %v1374
        %v1376 = vand.u32 %v1375, 4294901760
        %v1377 = vsub.f32 %v1375, %v1376
        %v1378 = vand.u32 %v1377, 4294901760
        %1379 = vmatpush1.msra.mxu0 %v1378
        %1380 = vmatprep.subr.mxu0 0.0
        %v1381 = vand.u32 %v224, 4294901760
        %v1382 = vsub.f32 %v224, %v1381
        %v1383 = vand.u32 %v1382, 4294901760
        %v1384 = vsub.f32 %v1382, %v1383
        %v1385 = vand.u32 %v1384, 4294901760
        %1386 = vmatpush1.msra.mxu0 %v1385
        %1387 = vmatprep.subr.mxu0 0.0
        %v1388 = vand.u32 %v225, 4294901760
        %v1389 = vsub.f32 %v225, %v1388
        %v1390 = vand.u32 %v1389, 4294901760
        %v1391 = vsub.f32 %v1389, %v1390
        %v1392 = vand.u32 %v1391, 4294901760
        %1393 = vmatpush1.msra.mxu0 %v1392
        %1394 = vmatprep.subr.mxu0 0.0
        %v1395 = vand.u32 %v226, 4294901760
        %v1396 = vsub.f32 %v226, %v1395
        %v1397 = vand.u32 %v1396, 4294901760
        %v1398 = vsub.f32 %v1396, %v1397
        %v1399 = vand.u32 %v1398, 4294901760
        %1400 = vmatpush1.msra.mxu0 %v1399
        %1401 = vmatprep.subr.mxu0 0.0
        %v1402 = vand.u32 %v227, 4294901760
        %v1403 = vsub.f32 %v227, %v1402
        %v1404 = vand.u32 %v1403, 4294901760
        %v1405 = vsub.f32 %v1403, %v1404
        %v1406 = vand.u32 %v1405, 4294901760
        %1407 = vmatpush1.msra.mxu0 %v1406
        %1408 = vmatprep.subr.mxu0 0.0
        %v1409 = vand.u32 %v228, 4294901760
        %v1410 = vsub.f32 %v228, %v1409
        %v1411 = vand.u32 %v1410, 4294901760
        %v1412 = vsub.f32 %v1410, %v1411
        %v1413 = vand.u32 %v1412, 4294901760
        %1414 = vmatpush1.msra.mxu0 %v1413
        %1415 = vmatprep.subr.mxu0 0.0
        %v1416 = vand.u32 %v229, 4294901760
        %v1417 = vsub.f32 %v229, %v1416
        %v1418 = vand.u32 %v1417, 4294901760
        %v1419 = vsub.f32 %v1417, %v1418
        %v1420 = vand.u32 %v1419, 4294901760
        %1421 = vmatpush1.msra.mxu0 %v1420
        %1422 = vmatprep.subr.mxu0 0.0
        %v1423 = vand.u32 %v230, 4294901760
        %v1424 = vsub.f32 %v230, %v1423
        %v1425 = vand.u32 %v1424, 4294901760
        %v1426 = vsub.f32 %v1424, %v1425
        %v1427 = vand.u32 %v1426, 4294901760
        %1428 = vmatpush1.msra.mxu0 %v1427
        %1429 = vmatprep.subr.mxu0 0.0
        %v1430 = vand.u32 %v231, 4294901760
        %v1431 = vsub.f32 %v231, %v1430
        %v1432 = vand.u32 %v1431, 4294901760
        %v1433 = vsub.f32 %v1431, %v1432
        %v1434 = vand.u32 %v1433, 4294901760
        %1435 = vmatpush1.msra.mxu0 %v1434
        %1436 = vmatprep.subr.mxu0 0.0
        %v1437 = vand.u32 %v232, 4294901760
        %v1438 = vsub.f32 %v232, %v1437
        %v1439 = vand.u32 %v1438, 4294901760
        %v1440 = vsub.f32 %v1438, %v1439
        %v1441 = vand.u32 %v1440, 4294901760
        %1442 = vmatpush1.msra.mxu0 %v1441
        %1443 = vmatprep.subr.mxu0 0.0
        %v1444 = vand.u32 %v233, 4294901760
        %v1445 = vsub.f32 %v233, %v1444
        %v1446 = vand.u32 %v1445, 4294901760
        %v1447 = vsub.f32 %v1445, %v1446
        %v1448 = vand.u32 %v1447, 4294901760
        %1449 = vmatpush1.msra.mxu0 %v1448
        %1450 = vmatprep.subr.mxu0 0.0
        %v1451 = vand.u32 %v234, 4294901760
        %v1452 = vsub.f32 %v234, %v1451
        %v1453 = vand.u32 %v1452, 4294901760
        %v1454 = vsub.f32 %v1452, %v1453
        %v1455 = vand.u32 %v1454, 4294901760
        %1456 = vmatpush1.msra.mxu0 %v1455
        %1457 = vmatprep.subr.mxu0 0.0
        %v1458 = vand.u32 %v235, 4294901760
        %v1459 = vsub.f32 %v235, %v1458
        %v1460 = vand.u32 %v1459, 4294901760
        %v1461 = vsub.f32 %v1459, %v1460
        %v1462 = vand.u32 %v1461, 4294901760
        %1463 = vmatpush1.msra.mxu0 %v1462
        %1464 = vmatprep.subr.mxu0 0.0
        %v1465 = vand.u32 %v236, 4294901760
        %v1466 = vsub.f32 %v236, %v1465
        %v1467 = vand.u32 %v1466, 4294901760
        %v1468 = vsub.f32 %v1466, %v1467
        %v1469 = vand.u32 %v1468, 4294901760
        %1470 = vmatpush1.msra.mxu0 %v1469
        %1471 = vmatprep.subr.mxu0 0.0
        %v1472 = vand.u32 %v237, 4294901760
        %v1473 = vsub.f32 %v237, %v1472
        %v1474 = vand.u32 %v1473, 4294901760
        %v1475 = vsub.f32 %v1473, %v1474
        %v1476 = vand.u32 %v1475, 4294901760
        %1477 = vmatpush1.msra.mxu0 %v1476
        %1478 = vmatprep.subr.mxu0 0.0
        %v1479 = vand.u32 %v238, 4294901760
        %v1480 = vsub.f32 %v238, %v1479
        %v1481 = vand.u32 %v1480, 4294901760
        %v1482 = vsub.f32 %v1480, %v1481
        %v1483 = vand.u32 %v1482, 4294901760
        %1484 = vmatpush1.msra.mxu0 %v1483
        %1485 = vmatprep.subr.mxu0 0.0
        %v1486 = vand.u32 %v239, 4294901760
        %v1487 = vsub.f32 %v239, %v1486
        %v1488 = vand.u32 %v1487, 4294901760
        %v1489 = vsub.f32 %v1487, %v1488
        %v1490 = vand.u32 %v1489, 4294901760
        %1491 = vmatpush1.msra.mxu0 %v1490
        %1492 = vmatprep.subr.mxu0 0.0
        %v1493 = vand.u32 %v240, 4294901760
        %v1494 = vsub.f32 %v240, %v1493
        %v1495 = vand.u32 %v1494, 4294901760
        %v1496 = vsub.f32 %v1494, %v1495
        %v1497 = vand.u32 %v1496, 4294901760
        %1498 = vmatpush1.msra.mxu0 %v1497
        %1499 = vmatprep.subr.mxu0 0.0
        %v1500 = vand.u32 %v241, 4294901760
        %v1501 = vsub.f32 %v241, %v1500
        %v1502 = vand.u32 %v1501, 4294901760
        %v1503 = vsub.f32 %v1501, %v1502
        %v1504 = vand.u32 %v1503, 4294901760
        %1505 = vmatpush1.msra.mxu0 %v1504
        %v1506 = vand.u32 %v173, 4294901760
        %1507 = vmatprep.mubr.f32.mxu0 %v1506
        %v1508 = vand.u32 %v172, 4294901760
        %1509 = vmatmul.mubr.f32.gmra.mrb[0].mxu0 %v1508
        %v1510 = vpop.f32.mrb[0].mxu0
        %v1511 = vadd.f32 %v1279, %v1510
        %v1512 = vpop.f32.mrb[0].mxu0
        %1513 = vdwg.mxu0
        %1514 = vmatprep.subr.mxu0 0.0
        %v1515 = vand.u32 %v210, 4294901760
        %v1516 = vsub.f32 %v210, %v1515
        %1517 = vmatpush1.msra.mxu0 %v1516
        %1518 = vmatprep.subr.mxu0 0.0
        %v1519 = vand.u32 %v211, 4294901760
        %v1520 = vsub.f32 %v211, %v1519
        %1521 = vmatpush1.msra.mxu0 %v1520
        %1522 = vmatprep.subr.mxu0 0.0
        %v1523 = vand.u32 %v212, 4294901760
        %v1524 = vsub.f32 %v212, %v1523
        %1525 = vmatpush1.msra.mxu0 %v1524
        %1526 = vmatprep.subr.mxu0 0.0
        %v1527 = vand.u32 %v213, 4294901760
        %v1528 = vsub.f32 %v213, %v1527
        %1529 = vmatpush1.msra.mxu0 %v1528
        %1530 = vmatprep.subr.mxu0 0.0
        %v1531 = vand.u32 %v214, 4294901760
        %v1532 = vsub.f32 %v214, %v1531
        %1533 = vmatpush1.msra.mxu0 %v1532
        %1534 = vmatprep.subr.mxu0 0.0
        %v1535 = vand.u32 %v215, 4294901760
        %v1536 = vsub.f32 %v215, %v1535
        %1537 = vmatpush1.msra.mxu0 %v1536
        %1538 = vmatprep.subr.mxu0 0.0
        %v1539 = vand.u32 %v216, 4294901760
        %v1540 = vsub.f32 %v216, %v1539
        %1541 = vmatpush1.msra.mxu0 %v1540
        %1542 = vmatprep.subr.mxu0 0.0
        %v1543 = vand.u32 %v217, 4294901760
        %v1544 = vsub.f32 %v217, %v1543
        %1545 = vmatpush1.msra.mxu0 %v1544
        %1546 = vmatprep.subr.mxu0 0.0
        %v1547 = vand.u32 %v218, 4294901760
        %v1548 = vsub.f32 %v218, %v1547
        %1549 = vmatpush1.msra.mxu0 %v1548
        %1550 = vmatprep.subr.mxu0 0.0
        %v1551 = vand.u32 %v219, 4294901760
        %v1552 = vsub.f32 %v219, %v1551
        %1553 = vmatpush1.msra.mxu0 %v1552
        %1554 = vmatprep.subr.mxu0 0.0
        %v1555 = vand.u32 %v220, 4294901760
        %v1556 = vsub.f32 %v220, %v1555
        %1557 = vmatpush1.msra.mxu0 %v1556
        %1558 = vmatprep.subr.mxu0 0.0
        %v1559 = vand.u32 %v221, 4294901760
        %v1560 = vsub.f32 %v221, %v1559
        %1561 = vmatpush1.msra.mxu0 %v1560
        %1562 = vmatprep.subr.mxu0 0.0
        %v1563 = vand.u32 %v222, 4294901760
        %v1564 = vsub.f32 %v222, %v1563
        %1565 = vmatpush1.msra.mxu0 %v1564
        %1566 = vmatprep.subr.mxu0 0.0
        %v1567 = vand.u32 %v223, 4294901760
        %v1568 = vsub.f32 %v223, %v1567
        %1569 = vmatpush1.msra.mxu0 %v1568
        %1570 = vmatprep.subr.mxu0 0.0
        %v1571 = vand.u32 %v224, 4294901760
        %v1572 = vsub.f32 %v224, %v1571
        %1573 = vmatpush1.msra.mxu0 %v1572
        %1574 = vmatprep.subr.mxu0 0.0
        %v1575 = vand.u32 %v225, 4294901760
        %v1576 = vsub.f32 %v225, %v1575
        %1577 = vmatpush1.msra.mxu0 %v1576
        %1578 = vmatprep.subr.mxu0 0.0
        %v1579 = vand.u32 %v226, 4294901760
        %v1580 = vsub.f32 %v226, %v1579
        %1581 = vmatpush1.msra.mxu0 %v1580
        %1582 = vmatprep.subr.mxu0 0.0
        %v1583 = vand.u32 %v227, 4294901760
        %v1584 = vsub.f32 %v227, %v1583
        %1585 = vmatpush1.msra.mxu0 %v1584
        %1586 = vmatprep.subr.mxu0 0.0
        %v1587 = vand.u32 %v228, 4294901760
        %v1588 = vsub.f32 %v228, %v1587
        %1589 = vmatpush1.msra.mxu0 %v1588
        %1590 = vmatprep.subr.mxu0 0.0
        %v1591 = vand.u32 %v229, 4294901760
        %v1592 = vsub.f32 %v229, %v1591
        %1593 = vmatpush1.msra.mxu0 %v1592
        %1594 = vmatprep.subr.mxu0 0.0
        %v1595 = vand.u32 %v230, 4294901760
        %v1596 = vsub.f32 %v230, %v1595
        %1597 = vmatpush1.msra.mxu0 %v1596
        %1598 = vmatprep.subr.mxu0 0.0
        %v1599 = vand.u32 %v231, 4294901760
        %v1600 = vsub.f32 %v231, %v1599
        %1601 = vmatpush1.msra.mxu0 %v1600
        %1602 = vmatprep.subr.mxu0 0.0
        %v1603 = vand.u32 %v232, 4294901760
        %v1604 = vsub.f32 %v232, %v1603
        %1605 = vmatpush1.msra.mxu0 %v1604
        %1606 = vmatprep.subr.mxu0 0.0
        %v1607 = vand.u32 %v233, 4294901760
        %v1608 = vsub.f32 %v233, %v1607
        %1609 = vmatpush1.msra.mxu0 %v1608
        %1610 = vmatprep.subr.mxu0 0.0
        %v1611 = vand.u32 %v234, 4294901760
        %v1612 = vsub.f32 %v234, %v1611
        %1613 = vmatpush1.msra.mxu0 %v1612
        %1614 = vmatprep.subr.mxu0 0.0
        %v1615 = vand.u32 %v235, 4294901760
        %v1616 = vsub.f32 %v235, %v1615
        %1617 = vmatpush1.msra.mxu0 %v1616
        %1618 = vmatprep.subr.mxu0 0.0
        %v1619 = vand.u32 %v236, 4294901760
        %v1620 = vsub.f32 %v236, %v1619
        %1621 = vmatpush1.msra.mxu0 %v1620
        %1622 = vmatprep.subr.mxu0 0.0
        %v1623 = vand.u32 %v237, 4294901760
        %v1624 = vsub.f32 %v237, %v1623
        %1625 = vmatpush1.msra.mxu0 %v1624
        %1626 = vmatprep.subr.mxu0 0.0
        %v1627 = vand.u32 %v238, 4294901760
        %v1628 = vsub.f32 %v238, %v1627
        %1629 = vmatpush1.msra.mxu0 %v1628
        %1630 = vmatprep.subr.mxu0 0.0
        %v1631 = vand.u32 %v239, 4294901760
        %v1632 = vsub.f32 %v239, %v1631
        %1633 = vmatpush1.msra.mxu0 %v1632
        %1634 = vmatprep.subr.mxu0 0.0
        %v1635 = vand.u32 %v240, 4294901760
        %v1636 = vsub.f32 %v240, %v1635
        %1637 = vmatpush1.msra.mxu0 %v1636
        %1638 = vmatprep.subr.mxu0 0.0
        %v1639 = vand.u32 %v241, 4294901760
        %v1640 = vsub.f32 %v241, %v1639
        %1641 = vmatpush1.msra.mxu0 %v1640
        %v1642 = vand.u32 %v173, 4294901760
        %v1643 = vsub.f32 %v173, %v1642
        %1644 = vmatprep.mubr.f32.mxu0 %v1643
        %v1645 = vand.u32 %v172, 4294901760
        %v1646 = vsub.f32 %v172, %v1645
        %1647 = vmatmul.mubr.f32.gmra.mrb[0].mxu0 %v1646
        %v1648 = vpop.f32.mrb[0].mxu0
        %v1649 = vadd.f32 %v1511, %v1648
        %v1650 = vpop.f32.mrb[0].mxu0
        %1651 = vdwg.mxu0
        %1652 = vmatprep.subr.mxu0 0.0
        %v1653 = vand.u32 %v210, 4294901760
        %1654 = vmatpush1.msra.mxu0 %v1653
        %1655 = vmatprep.subr.mxu0 0.0
        %v1656 = vand.u32 %v211, 4294901760
        %1657 = vmatpush1.msra.mxu0 %v1656
        %1658 = vmatprep.subr.mxu0 0.0
        %v1659 = vand.u32 %v212, 4294901760
        %1660 = vmatpush1.msra.mxu0 %v1659
        %1661 = vmatprep.subr.mxu0 0.0
        %v1662 = vand.u32 %v213, 4294901760
        %1663 = vmatpush1.msra.mxu0 %v1662
        %1664 = vmatprep.subr.mxu0 0.0
        %v1665 = vand.u32 %v214, 4294901760
        %1666 = vmatpush1.msra.mxu0 %v1665
        %1667 = vmatprep.subr.mxu0 0.0
        %v1668 = vand.u32 %v215, 4294901760
        %1669 = vmatpush1.msra.mxu0 %v1668
        %1670 = vmatprep.subr.mxu0 0.0
        %v1671 = vand.u32 %v216, 4294901760
        %1672 = vmatpush1.msra.mxu0 %v1671
        %1673 = vmatprep.subr.mxu0 0.0
        %v1674 = vand.u32 %v217, 4294901760
        %1675 = vmatpush1.msra.mxu0 %v1674
        %1676 = vmatprep.subr.mxu0 0.0
        %v1677 = vand.u32 %v218, 4294901760
        %1678 = vmatpush1.msra.mxu0 %v1677
        %1679 = vmatprep.subr.mxu0 0.0
        %v1680 = vand.u32 %v219, 4294901760
        %1681 = vmatpush1.msra.mxu0 %v1680
        %1682 = vmatprep.subr.mxu0 0.0
        %v1683 = vand.u32 %v220, 4294901760
        %1684 = vmatpush1.msra.mxu0 %v1683
        %1685 = vmatprep.subr.mxu0 0.0
        %v1686 = vand.u32 %v221, 4294901760
        %1687 = vmatpush1.msra.mxu0 %v1686
        %1688 = vmatprep.subr.mxu0 0.0
        %v1689 = vand.u32 %v222, 4294901760
        %1690 = vmatpush1.msra.mxu0 %v1689
        %1691 = vmatprep.subr.mxu0 0.0
        %v1692 = vand.u32 %v223, 4294901760
        %1693 = vmatpush1.msra.mxu0 %v1692
        %1694 = vmatprep.subr.mxu0 0.0
        %v1695 = vand.u32 %v224, 4294901760
        %1696 = vmatpush1.msra.mxu0 %v1695
        %1697 = vmatprep.subr.mxu0 0.0
        %v1698 = vand.u32 %v225, 4294901760
        %1699 = vmatpush1.msra.mxu0 %v1698
        %1700 = vmatprep.subr.mxu0 0.0
        %v1701 = vand.u32 %v226, 4294901760
        %1702 = vmatpush1.msra.mxu0 %v1701
        %1703 = vmatprep.subr.mxu0 0.0
        %v1704 = vand.u32 %v227, 4294901760
        %1705 = vmatpush1.msra.mxu0 %v1704
        %1706 = vmatprep.subr.mxu0 0.0
        %v1707 = vand.u32 %v228, 4294901760
        %1708 = vmatpush1.msra.mxu0 %v1707
        %1709 = vmatprep.subr.mxu0 0.0
        %v1710 = vand.u32 %v229, 4294901760
        %1711 = vmatpush1.msra.mxu0 %v1710
        %1712 = vmatprep.subr.mxu0 0.0
        %v1713 = vand.u32 %v230, 4294901760
        %1714 = vmatpush1.msra.mxu0 %v1713
        %1715 = vmatprep.subr.mxu0 0.0
        %v1716 = vand.u32 %v231, 4294901760
        %1717 = vmatpush1.msra.mxu0 %v1716
        %1718 = vmatprep.subr.mxu0 0.0
        %v1719 = vand.u32 %v232, 4294901760
        %1720 = vmatpush1.msra.mxu0 %v1719
        %1721 = vmatprep.subr.mxu0 0.0
        %v1722 = vand.u32 %v233, 4294901760
        %1723 = vmatpush1.msra.mxu0 %v1722
        %1724 = vmatprep.subr.mxu0 0.0
        %v1725 = vand.u32 %v234, 4294901760
        %1726 = vmatpush1.msra.mxu0 %v1725
        %1727 = vmatprep.subr.mxu0 0.0
        %v1728 = vand.u32 %v235, 4294901760
        %1729 = vmatpush1.msra.mxu0 %v1728
        %1730 = vmatprep.subr.mxu0 0.0
        %v1731 = vand.u32 %v236, 4294901760
        %1732 = vmatpush1.msra.mxu0 %v1731
        %1733 = vmatprep.subr.mxu0 0.0
        %v1734 = vand.u32 %v237, 4294901760
        %1735 = vmatpush1.msra.mxu0 %v1734
        %1736 = vmatprep.subr.mxu0 0.0
        %v1737 = vand.u32 %v238, 4294901760
        %1738 = vmatpush1.msra.mxu0 %v1737
        %1739 = vmatprep.subr.mxu0 0.0
        %v1740 = vand.u32 %v239, 4294901760
        %1741 = vmatpush1.msra.mxu0 %v1740
        %1742 = vmatprep.subr.mxu0 0.0
        %v1743 = vand.u32 %v240, 4294901760
        %1744 = vmatpush1.msra.mxu0 %v1743
        %1745 = vmatprep.subr.mxu0 0.0
        %v1746 = vand.u32 %v241, 4294901760
        %1747 = vmatpush1.msra.mxu0 %v1746
        %v1748 = vand.u32 %v173, 4294901760
        %v1749 = vsub.f32 %v173, %v1748
        %v1750 = vand.u32 %v1749, 4294901760
        %1751 = vmatprep.mubr.f32.mxu0 %v1750
        %v1752 = vand.u32 %v172, 4294901760
        %v1753 = vsub.f32 %v172, %v1752
        %v1754 = vand.u32 %v1753, 4294901760
        %1755 = vmatmul.mubr.f32.gmra.mrb[0].mxu0 %v1754
        %v1756 = vpop.f32.mrb[0].mxu0
        %v1757 = vadd.f32 %v1649, %v1756
        %v1758 = vpop.f32.mrb[0].mxu0
        %1759 = vdwg.mxu0
        %1760 = vmatprep.subr.mxu0 0.0
        %v1761 = vand.u32 %v210, 4294901760
        %v1762 = vsub.f32 %v210, %v1761
        %v1763 = vand.u32 %v1762, 4294901760
        %1764 = vmatpush1.msra.mxu0 %v1763
        %1765 = vmatprep.subr.mxu0 0.0
        %v1766 = vand.u32 %v211, 4294901760
        %v1767 = vsub.f32 %v211, %v1766
        %v1768 = vand.u32 %v1767, 4294901760
        %1769 = vmatpush1.msra.mxu0 %v1768
        %1770 = vmatprep.subr.mxu0 0.0
        %v1771 = vand.u32 %v212, 4294901760
        %v1772 = vsub.f32 %v212, %v1771
        %v1773 = vand.u32 %v1772, 4294901760
        %1774 = vmatpush1.msra.mxu0 %v1773
        %1775 = vmatprep.subr.mxu0 0.0
        %v1776 = vand.u32 %v213, 4294901760
        %v1777 = vsub.f32 %v213, %v1776
        %v1778 = vand.u32 %v1777, 4294901760
        %1779 = vmatpush1.msra.mxu0 %v1778
        %1780 = vmatprep.subr.mxu0 0.0
        %v1781 = vand.u32 %v214, 4294901760
        %v1782 = vsub.f32 %v214, %v1781
        %v1783 = vand.u32 %v1782, 4294901760
        %1784 = vmatpush1.msra.mxu0 %v1783
        %1785 = vmatprep.subr.mxu0 0.0
        %v1786 = vand.u32 %v215, 4294901760
        %v1787 = vsub.f32 %v215, %v1786
        %v1788 = vand.u32 %v1787, 4294901760
        %1789 = vmatpush1.msra.mxu0 %v1788
        %1790 = vmatprep.subr.mxu0 0.0
        %v1791 = vand.u32 %v216, 4294901760
        %v1792 = vsub.f32 %v216, %v1791
        %v1793 = vand.u32 %v1792, 4294901760
        %1794 = vmatpush1.msra.mxu0 %v1793
        %1795 = vmatprep.subr.mxu0 0.0
        %v1796 = vand.u32 %v217, 4294901760
        %v1797 = vsub.f32 %v217, %v1796
        %v1798 = vand.u32 %v1797, 4294901760
        %1799 = vmatpush1.msra.mxu0 %v1798
        %1800 = vmatprep.subr.mxu0 0.0
        %v1801 = vand.u32 %v218, 4294901760
        %v1802 = vsub.f32 %v218, %v1801
        %v1803 = vand.u32 %v1802, 4294901760
        %1804 = vmatpush1.msra.mxu0 %v1803
        %1805 = vmatprep.subr.mxu0 0.0
        %v1806 = vand.u32 %v219, 4294901760
        %v1807 = vsub.f32 %v219, %v1806
        %v1808 = vand.u32 %v1807, 4294901760
        %1809 = vmatpush1.msra.mxu0 %v1808
        %1810 = vmatprep.subr.mxu0 0.0
        %v1811 = vand.u32 %v220, 4294901760
        %v1812 = vsub.f32 %v220, %v1811
        %v1813 = vand.u32 %v1812, 4294901760
        %1814 = vmatpush1.msra.mxu0 %v1813
        %1815 = vmatprep.subr.mxu0 0.0
        %v1816 = vand.u32 %v221, 4294901760
        %v1817 = vsub.f32 %v221, %v1816
        %v1818 = vand.u32 %v1817, 4294901760
        %1819 = vmatpush1.msra.mxu0 %v1818
        %1820 = vmatprep.subr.mxu0 0.0
        %v1821 = vand.u32 %v222, 4294901760
        %v1822 = vsub.f32 %v222, %v1821
        %v1823 = vand.u32 %v1822, 4294901760
        %1824 = vmatpush1.msra.mxu0 %v1823
        %1825 = vmatprep.subr.mxu0 0.0
        %v1826 = vand.u32 %v223, 4294901760
        %v1827 = vsub.f32 %v223, %v1826
        %v1828 = vand.u32 %v1827, 4294901760
        %1829 = vmatpush1.msra.mxu0 %v1828
        %1830 = vmatprep.subr.mxu0 0.0
        %v1831 = vand.u32 %v224, 4294901760
        %v1832 = vsub.f32 %v224, %v1831
        %v1833 = vand.u32 %v1832, 4294901760
        %1834 = vmatpush1.msra.mxu0 %v1833
        %1835 = vmatprep.subr.mxu0 0.0
        %v1836 = vand.u32 %v225, 4294901760
        %v1837 = vsub.f32 %v225, %v1836
        %v1838 = vand.u32 %v1837, 4294901760
        %1839 = vmatpush1.msra.mxu0 %v1838
        %1840 = vmatprep.subr.mxu0 0.0
        %v1841 = vand.u32 %v226, 4294901760
        %v1842 = vsub.f32 %v226, %v1841
        %v1843 = vand.u32 %v1842, 4294901760
        %1844 = vmatpush1.msra.mxu0 %v1843
        %1845 = vmatprep.subr.mxu0 0.0
        %v1846 = vand.u32 %v227, 4294901760
        %v1847 = vsub.f32 %v227, %v1846
        %v1848 = vand.u32 %v1847, 4294901760
        %1849 = vmatpush1.msra.mxu0 %v1848
        %1850 = vmatprep.subr.mxu0 0.0
        %v1851 = vand.u32 %v228, 4294901760
        %v1852 = vsub.f32 %v228, %v1851
        %v1853 = vand.u32 %v1852, 4294901760
        %1854 = vmatpush1.msra.mxu0 %v1853
        %1855 = vmatprep.subr.mxu0 0.0
        %v1856 = vand.u32 %v229, 4294901760
        %v1857 = vsub.f32 %v229, %v1856
        %v1858 = vand.u32 %v1857, 4294901760
        %1859 = vmatpush1.msra.mxu0 %v1858
        %1860 = vmatprep.subr.mxu0 0.0
        %v1861 = vand.u32 %v230, 4294901760
        %v1862 = vsub.f32 %v230, %v1861
        %v1863 = vand.u32 %v1862, 4294901760
        %1864 = vmatpush1.msra.mxu0 %v1863
        %1865 = vmatprep.subr.mxu0 0.0
        %v1866 = vand.u32 %v231, 4294901760
        %v1867 = vsub.f32 %v231, %v1866
        %v1868 = vand.u32 %v1867, 4294901760
        %1869 = vmatpush1.msra.mxu0 %v1868
        %1870 = vmatprep.subr.mxu0 0.0
        %v1871 = vand.u32 %v232, 4294901760
        %v1872 = vsub.f32 %v232, %v1871
        %v1873 = vand.u32 %v1872, 4294901760
        %1874 = vmatpush1.msra.mxu0 %v1873
        %1875 = vmatprep.subr.mxu0 0.0
        %v1876 = vand.u32 %v233, 4294901760
        %v1877 = vsub.f32 %v233, %v1876
        %v1878 = vand.u32 %v1877, 4294901760
        %1879 = vmatpush1.msra.mxu0 %v1878
        %1880 = vmatprep.subr.mxu0 0.0
        %v1881 = vand.u32 %v234, 4294901760
        %v1882 = vsub.f32 %v234, %v1881
        %v1883 = vand.u32 %v1882, 4294901760
        %1884 = vmatpush1.msra.mxu0 %v1883
        %1885 = vmatprep.subr.mxu0 0.0
        %v1886 = vand.u32 %v235, 4294901760
        %v1887 = vsub.f32 %v235, %v1886
        %v1888 = vand.u32 %v1887, 4294901760
        %1889 = vmatpush1.msra.mxu0 %v1888
        %1890 = vmatprep.subr.mxu0 0.0
        %v1891 = vand.u32 %v236, 4294901760
        %v1892 = vsub.f32 %v236, %v1891
        %v1893 = vand.u32 %v1892, 4294901760
        %1894 = vmatpush1.msra.mxu0 %v1893
        %1895 = vmatprep.subr.mxu0 0.0
        %v1896 = vand.u32 %v237, 4294901760
        %v1897 = vsub.f32 %v237, %v1896
        %v1898 = vand.u32 %v1897, 4294901760
        %1899 = vmatpush1.msra.mxu0 %v1898
        %1900 = vmatprep.subr.mxu0 0.0
        %v1901 = vand.u32 %v238, 4294901760
        %v1902 = vsub.f32 %v238, %v1901
        %v1903 = vand.u32 %v1902, 4294901760
        %1904 = vmatpush1.msra.mxu0 %v1903
        %1905 = vmatprep.subr.mxu0 0.0
        %v1906 = vand.u32 %v239, 4294901760
        %v1907 = vsub.f32 %v239, %v1906
        %v1908 = vand.u32 %v1907, 4294901760
        %1909 = vmatpush1.msra.mxu0 %v1908
        %1910 = vmatprep.subr.mxu0 0.0
        %v1911 = vand.u32 %v240, 4294901760
        %v1912 = vsub.f32 %v240, %v1911
        %v1913 = vand.u32 %v1912, 4294901760
        %1914 = vmatpush1.msra.mxu0 %v1913
        %1915 = vmatprep.subr.mxu0 0.0
        %v1916 = vand.u32 %v241, 4294901760
        %v1917 = vsub.f32 %v241, %v1916
        %v1918 = vand.u32 %v1917, 4294901760
        %1919 = vmatpush1.msra.mxu0 %v1918
        %v1920 = vand.u32 %v173, 4294901760
        %1921 = vmatprep.mubr.f32.mxu0 %v1920
        %v1922 = vand.u32 %v172, 4294901760
        %1923 = vmatmul.mubr.f32.gmra.mrb[0].mxu0 %v1922
        %v1924 = vpop.f32.mrb[0].mxu0
        %v1925 = vadd.f32 %v1757, %v1924
        %v1926 = vpop.f32.mrb[0].mxu0
        %1927 = vdwg.mxu0
        %1928 = vmatprep.subr.mxu0 0.0
        %v1929 = vand.u32 %v210, 4294901760
        %1930 = vmatpush1.msra.mxu0 %v1929
        %1931 = vmatprep.subr.mxu0 0.0
        %v1932 = vand.u32 %v211, 4294901760
        %1933 = vmatpush1.msra.mxu0 %v1932
        %1934 = vmatprep.subr.mxu0 0.0
        %v1935 = vand.u32 %v212, 4294901760
        %1936 = vmatpush1.msra.mxu0 %v1935
        %1937 = vmatprep.subr.mxu0 0.0
        %v1938 = vand.u32 %v213, 4294901760
        %1939 = vmatpush1.msra.mxu0 %v1938
        %1940 = vmatprep.subr.mxu0 0.0
        %v1941 = vand.u32 %v214, 4294901760
        %1942 = vmatpush1.msra.mxu0 %v1941
        %1943 = vmatprep.subr.mxu0 0.0
        %v1944 = vand.u32 %v215, 4294901760
        %1945 = vmatpush1.msra.mxu0 %v1944
        %1946 = vmatprep.subr.mxu0 0.0
        %v1947 = vand.u32 %v216, 4294901760
        %1948 = vmatpush1.msra.mxu0 %v1947
        %1949 = vmatprep.subr.mxu0 0.0
        %v1950 = vand.u32 %v217, 4294901760
        %1951 = vmatpush1.msra.mxu0 %v1950
        %1952 = vmatprep.subr.mxu0 0.0
        %v1953 = vand.u32 %v218, 4294901760
        %1954 = vmatpush1.msra.mxu0 %v1953
        %1955 = vmatprep.subr.mxu0 0.0
        %v1956 = vand.u32 %v219, 4294901760
        %1957 = vmatpush1.msra.mxu0 %v1956
        %1958 = vmatprep.subr.mxu0 0.0
        %v1959 = vand.u32 %v220, 4294901760
        %1960 = vmatpush1.msra.mxu0 %v1959
        %1961 = vmatprep.subr.mxu0 0.0
        %v1962 = vand.u32 %v221, 4294901760
        %1963 = vmatpush1.msra.mxu0 %v1962
        %1964 = vmatprep.subr.mxu0 0.0
        %v1965 = vand.u32 %v222, 4294901760
        %1966 = vmatpush1.msra.mxu0 %v1965
        %1967 = vmatprep.subr.mxu0 0.0
        %v1968 = vand.u32 %v223, 4294901760
        %1969 = vmatpush1.msra.mxu0 %v1968
        %1970 = vmatprep.subr.mxu0 0.0
        %v1971 = vand.u32 %v224, 4294901760
        %1972 = vmatpush1.msra.mxu0 %v1971
        %1973 = vmatprep.subr.mxu0 0.0
        %v1974 = vand.u32 %v225, 4294901760
        %1975 = vmatpush1.msra.mxu0 %v1974
        %1976 = vmatprep.subr.mxu0 0.0
        %v1977 = vand.u32 %v226, 4294901760
        %1978 = vmatpush1.msra.mxu0 %v1977
        %1979 = vmatprep.subr.mxu0 0.0
        %v1980 = vand.u32 %v227, 4294901760
        %1981 = vmatpush1.msra.mxu0 %v1980
        %1982 = vmatprep.subr.mxu0 0.0
        %v1983 = vand.u32 %v228, 4294901760
        %1984 = vmatpush1.msra.mxu0 %v1983
        %1985 = vmatprep.subr.mxu0 0.0
        %v1986 = vand.u32 %v229, 4294901760
        %1987 = vmatpush1.msra.mxu0 %v1986
        %1988 = vmatprep.subr.mxu0 0.0
        %v1989 = vand.u32 %v230, 4294901760
        %1990 = vmatpush1.msra.mxu0 %v1989
        %1991 = vmatprep.subr.mxu0 0.0
        %v1992 = vand.u32 %v231, 4294901760
        %1993 = vmatpush1.msra.mxu0 %v1992
        %1994 = vmatprep.subr.mxu0 0.0
        %v1995 = vand.u32 %v232, 4294901760
        %1996 = vmatpush1.msra.mxu0 %v1995
        %1997 = vmatprep.subr.mxu0 0.0
        %v1998 = vand.u32 %v233, 4294901760
        %1999 = vmatpush1.msra.mxu0 %v1998
        %2000 = vmatprep.subr.mxu0 0.0
        %v2001 = vand.u32 %v234, 4294901760
        %2002 = vmatpush1.msra.mxu0 %v2001
        %2003 = vmatprep.subr.mxu0 0.0
        %v2004 = vand.u32 %v235, 4294901760
        %2005 = vmatpush1.msra.mxu0 %v2004
        %2006 = vmatprep.subr.mxu0 0.0
        %v2007 = vand.u32 %v236, 4294901760
        %2008 = vmatpush1.msra.mxu0 %v2007
        %2009 = vmatprep.subr.mxu0 0.0
        %v2010 = vand.u32 %v237, 4294901760
        %2011 = vmatpush1.msra.mxu0 %v2010
        %2012 = vmatprep.subr.mxu0 0.0
        %v2013 = vand.u32 %v238, 4294901760
        %2014 = vmatpush1.msra.mxu0 %v2013
        %2015 = vmatprep.subr.mxu0 0.0
        %v2016 = vand.u32 %v239, 4294901760
        %2017 = vmatpush1.msra.mxu0 %v2016
        %2018 = vmatprep.subr.mxu0 0.0
        %v2019 = vand.u32 %v240, 4294901760
        %2020 = vmatpush1.msra.mxu0 %v2019
        %2021 = vmatprep.subr.mxu0 0.0
        %v2022 = vand.u32 %v241, 4294901760
        %2023 = vmatpush1.msra.mxu0 %v2022
        %v2024 = vand.u32 %v173, 4294901760
        %2025 = vmatprep.mubr.f32.mxu0 %v2024
        %v2026 = vand.u32 %v172, 4294901760
        %2027 = vmatmul.mubr.f32.gmra.mrb[0].mxu0 %v2026
        %v2028 = vpop.f32.mrb[0].mxu0
        %v2029 = vadd.f32 %v1925, %v2028
        %v2030 = vpop.f32.mrb[0].mxu0
        %2031 = vdwg.mxu0
        %2032 = vmatprep.subr.mxu0 0.0
        %v2033 = vand.u32 %v242, 4294901760
        %2034 = vmatpush1.msra.mxu0 %v2033
        %2035 = vmatprep.subr.mxu0 0.0
        %v2036 = vand.u32 %v243, 4294901760
        %2037 = vmatpush1.msra.mxu0 %v2036
        %2038 = vmatprep.subr.mxu0 0.0
        %v2039 = vand.u32 %v244, 4294901760
        %2040 = vmatpush1.msra.mxu0 %v2039
        %2041 = vmatprep.subr.mxu0 0.0
        %v2042 = vand.u32 %v245, 4294901760
        %2043 = vmatpush1.msra.mxu0 %v2042
        %2044 = vmatprep.subr.mxu0 0.0
        %v2045 = vand.u32 %v246, 4294901760
        %2046 = vmatpush1.msra.mxu0 %v2045
        %2047 = vmatprep.subr.mxu0 0.0
        %v2048 = vand.u32 %v247, 4294901760
        %2049 = vmatpush1.msra.mxu0 %v2048
        %2050 = vmatprep.subr.mxu0 0.0
        %v2051 = vand.u32 %v248, 4294901760
        %2052 = vmatpush1.msra.mxu0 %v2051
        %2053 = vmatprep.subr.mxu0 0.0
        %v2054 = vand.u32 %v249, 4294901760
        %2055 = vmatpush1.msra.mxu0 %v2054
        %2056 = vmatprep.subr.mxu0 0.0
        %v2057 = vand.u32 %v250, 4294901760
        %2058 = vmatpush1.msra.mxu0 %v2057
        %2059 = vmatprep.subr.mxu0 0.0
        %v2060 = vand.u32 %v251, 4294901760
        %2061 = vmatpush1.msra.mxu0 %v2060
        %2062 = vmatprep.subr.mxu0 0.0
        %v2063 = vand.u32 %v252, 4294901760
        %2064 = vmatpush1.msra.mxu0 %v2063
        %2065 = vmatprep.subr.mxu0 0.0
        %v2066 = vand.u32 %v253, 4294901760
        %2067 = vmatpush1.msra.mxu0 %v2066
        %2068 = vmatprep.subr.mxu0 0.0
        %v2069 = vand.u32 %v254, 4294901760
        %2070 = vmatpush1.msra.mxu0 %v2069
        %2071 = vmatprep.subr.mxu0 0.0
        %v2072 = vand.u32 %v255, 4294901760
        %2073 = vmatpush1.msra.mxu0 %v2072
        %2074 = vmatprep.subr.mxu0 0.0
        %v2075 = vand.u32 %v256, 4294901760
        %2076 = vmatpush1.msra.mxu0 %v2075
        %2077 = vmatprep.subr.mxu0 0.0
        %v2078 = vand.u32 %v257, 4294901760
        %2079 = vmatpush1.msra.mxu0 %v2078
        %2080 = vmatprep.subr.mxu0 0.0
        %v2081 = vand.u32 %v258, 4294901760
        %2082 = vmatpush1.msra.mxu0 %v2081
        %2083 = vmatprep.subr.mxu0 0.0
        %v2084 = vand.u32 %v259, 4294901760
        %2085 = vmatpush1.msra.mxu0 %v2084
        %2086 = vmatprep.subr.mxu0 0.0
        %v2087 = vand.u32 %v260, 4294901760
        %2088 = vmatpush1.msra.mxu0 %v2087
        %2089 = vmatprep.subr.mxu0 0.0
        %v2090 = vand.u32 %v261, 4294901760
        %2091 = vmatpush1.msra.mxu0 %v2090
        %2092 = vmatprep.subr.mxu0 0.0
        %v2093 = vand.u32 %v262, 4294901760
        %2094 = vmatpush1.msra.mxu0 %v2093
        %2095 = vmatprep.subr.mxu0 0.0
        %v2096 = vand.u32 %v263, 4294901760
        %2097 = vmatpush1.msra.mxu0 %v2096
        %2098 = vmatprep.subr.mxu0 0.0
        %v2099 = vand.u32 %v264, 4294901760
        %2100 = vmatpush1.msra.mxu0 %v2099
        %2101 = vmatprep.subr.mxu0 0.0
        %v2102 = vand.u32 %v265, 4294901760
        %2103 = vmatpush1.msra.mxu0 %v2102
        %2104 = vmatprep.subr.mxu0 0.0
        %v2105 = vand.u32 %v266, 4294901760
        %2106 = vmatpush1.msra.mxu0 %v2105
        %2107 = vmatprep.subr.mxu0 0.0
        %v2108 = vand.u32 %v267, 4294901760
        %2109 = vmatpush1.msra.mxu0 %v2108
        %2110 = vmatprep.subr.mxu0 0.0
        %v2111 = vand.u32 %v268, 4294901760
        %2112 = vmatpush1.msra.mxu0 %v2111
        %2113 = vmatprep.subr.mxu0 0.0
        %v2114 = vand.u32 %v269, 4294901760
        %2115 = vmatpush1.msra.mxu0 %v2114
        %2116 = vmatprep.subr.mxu0 0.0
        %v2117 = vand.u32 %v270, 4294901760
        %2118 = vmatpush1.msra.mxu0 %v2117
        %2119 = vmatprep.subr.mxu0 0.0
        %v2120 = vand.u32 %v271, 4294901760
        %2121 = vmatpush1.msra.mxu0 %v2120
        %2122 = vmatprep.subr.mxu0 0.0
        %v2123 = vand.u32 %v272, 4294901760
        %2124 = vmatpush1.msra.mxu0 %v2123
        %2125 = vmatprep.subr.mxu0 0.0
        %v2126 = vand.u32 %v273, 4294901760
        %2127 = vmatpush1.msra.mxu0 %v2126
        %v2128 = vand.u32 %v175, 4294901760
        %v2129 = vsub.f32 %v175, %v2128
        %v2130 = vand.u32 %v2129, 4294901760
        %v2131 = vsub.f32 %v2129, %v2130
        %v2132 = vand.u32 %v2131, 4294901760
        %2133 = vmatprep.mubr.f32.mxu0 %v2132
        %v2134 = vand.u32 %v174, 4294901760
        %v2135 = vsub.f32 %v174, %v2134
        %v2136 = vand.u32 %v2135, 4294901760
        %v2137 = vsub.f32 %v2135, %v2136
        %v2138 = vand.u32 %v2137, 4294901760
        %2139 = vmatmul.mubr.f32.gmra.mrb[0].mxu0 %v2138
        %v2140 = vpop.f32.mrb[0].mxu0
        %v2141 = vadd.f32 %v2029, %v2140
        %v2142 = vpop.f32.mrb[0].mxu0
        %2143 = vdwg.mxu0
        %2144 = vmatprep.subr.mxu0 0.0
        %v2145 = vand.u32 %v242, 4294901760
        %v2146 = vsub.f32 %v242, %v2145
        %v2147 = vand.u32 %v2146, 4294901760
        %v2148 = vsub.f32 %v2146, %v2147
        %v2149 = vand.u32 %v2148, 4294901760
        %2150 = vmatpush1.msra.mxu0 %v2149
        %2151 = vmatprep.subr.mxu0 0.0
        %v2152 = vand.u32 %v243, 4294901760
        %v2153 = vsub.f32 %v243, %v2152
        %v2154 = vand.u32 %v2153, 4294901760
        %v2155 = vsub.f32 %v2153, %v2154
        %v2156 = vand.u32 %v2155, 4294901760
        %2157 = vmatpush1.msra.mxu0 %v2156
        %2158 = vmatprep.subr.mxu0 0.0
        %v2159 = vand.u32 %v244, 4294901760
        %v2160 = vsub.f32 %v244, %v2159
        %v2161 = vand.u32 %v2160, 4294901760
        %v2162 = vsub.f32 %v2160, %v2161
        %v2163 = vand.u32 %v2162, 4294901760
        %2164 = vmatpush1.msra.mxu0 %v2163
        %2165 = vmatprep.subr.mxu0 0.0
        %v2166 = vand.u32 %v245, 4294901760
        %v2167 = vsub.f32 %v245, %v2166
        %v2168 = vand.u32 %v2167, 4294901760
        %v2169 = vsub.f32 %v2167, %v2168
        %v2170 = vand.u32 %v2169, 4294901760
        %2171 = vmatpush1.msra.mxu0 %v2170
        %2172 = vmatprep.subr.mxu0 0.0
        %v2173 = vand.u32 %v246, 4294901760
        %v2174 = vsub.f32 %v246, %v2173
        %v2175 = vand.u32 %v2174, 4294901760
        %v2176 = vsub.f32 %v2174, %v2175
        %v2177 = vand.u32 %v2176, 4294901760
        %2178 = vmatpush1.msra.mxu0 %v2177
        %2179 = vmatprep.subr.mxu0 0.0
        %v2180 = vand.u32 %v247, 4294901760
        %v2181 = vsub.f32 %v247, %v2180
        %v2182 = vand.u32 %v2181, 4294901760
        %v2183 = vsub.f32 %v2181, %v2182
        %v2184 = vand.u32 %v2183, 4294901760
        %2185 = vmatpush1.msra.mxu0 %v2184
        %2186 = vmatprep.subr.mxu0 0.0
        %v2187 = vand.u32 %v248, 4294901760
        %v2188 = vsub.f32 %v248, %v2187
        %v2189 = vand.u32 %v2188, 4294901760
        %v2190 = vsub.f32 %v2188, %v2189
        %v2191 = vand.u32 %v2190, 4294901760
        %2192 = vmatpush1.msra.mxu0 %v2191
        %2193 = vmatprep.subr.mxu0 0.0
        %v2194 = vand.u32 %v249, 4294901760
        %v2195 = vsub.f32 %v249, %v2194
        %v2196 = vand.u32 %v2195, 4294901760
        %v2197 = vsub.f32 %v2195, %v2196
        %v2198 = vand.u32 %v2197, 4294901760
        %2199 = vmatpush1.msra.mxu0 %v2198
        %2200 = vmatprep.subr.mxu0 0.0
        %v2201 = vand.u32 %v250, 4294901760
        %v2202 = vsub.f32 %v250, %v2201
        %v2203 = vand.u32 %v2202, 4294901760
        %v2204 = vsub.f32 %v2202, %v2203
        %v2205 = vand.u32 %v2204, 4294901760
        %2206 = vmatpush1.msra.mxu0 %v2205
        %2207 = vmatprep.subr.mxu0 0.0
        %v2208 = vand.u32 %v251, 4294901760
        %v2209 = vsub.f32 %v251, %v2208
        %v2210 = vand.u32 %v2209, 4294901760
        %v2211 = vsub.f32 %v2209, %v2210
        %v2212 = vand.u32 %v2211, 4294901760
        %2213 = vmatpush1.msra.mxu0 %v2212
        %2214 = vmatprep.subr.mxu0 0.0
        %v2215 = vand.u32 %v252, 4294901760
        %v2216 = vsub.f32 %v252, %v2215
        %v2217 = vand.u32 %v2216, 4294901760
        %v2218 = vsub.f32 %v2216, %v2217
        %v2219 = vand.u32 %v2218, 4294901760
        %2220 = vmatpush1.msra.mxu0 %v2219
        %2221 = vmatprep.subr.mxu0 0.0
        %v2222 = vand.u32 %v253, 4294901760
        %v2223 = vsub.f32 %v253, %v2222
        %v2224 = vand.u32 %v2223, 4294901760
        %v2225 = vsub.f32 %v2223, %v2224
        %v2226 = vand.u32 %v2225, 4294901760
        %2227 = vmatpush1.msra.mxu0 %v2226
        %2228 = vmatprep.subr.mxu0 0.0
        %v2229 = vand.u32 %v254, 4294901760
        %v2230 = vsub.f32 %v254, %v2229
        %v2231 = vand.u32 %v2230, 4294901760
        %v2232 = vsub.f32 %v2230, %v2231
        %v2233 = vand.u32 %v2232, 4294901760
        %2234 = vmatpush1.msra.mxu0 %v2233
        %2235 = vmatprep.subr.mxu0 0.0
        %v2236 = vand.u32 %v255, 4294901760
        %v2237 = vsub.f32 %v255, %v2236
        %v2238 = vand.u32 %v2237, 4294901760
        %v2239 = vsub.f32 %v2237, %v2238
        %v2240 = vand.u32 %v2239, 4294901760
        %2241 = vmatpush1.msra.mxu0 %v2240
        %2242 = vmatprep.subr.mxu0 0.0
        %v2243 = vand.u32 %v256, 4294901760
        %v2244 = vsub.f32 %v256, %v2243
        %v2245 = vand.u32 %v2244, 4294901760
        %v2246 = vsub.f32 %v2244, %v2245
        %v2247 = vand.u32 %v2246, 4294901760
        %2248 = vmatpush1.msra.mxu0 %v2247
        %2249 = vmatprep.subr.mxu0 0.0
        %v2250 = vand.u32 %v257, 4294901760
        %v2251 = vsub.f32 %v257, %v2250
        %v2252 = vand.u32 %v2251, 4294901760
        %v2253 = vsub.f32 %v2251, %v2252
        %v2254 = vand.u32 %v2253, 4294901760
        %2255 = vmatpush1.msra.mxu0 %v2254
        %2256 = vmatprep.subr.mxu0 0.0
        %v2257 = vand.u32 %v258, 4294901760
        %v2258 = vsub.f32 %v258, %v2257
        %v2259 = vand.u32 %v2258, 4294901760
        %v2260 = vsub.f32 %v2258, %v2259
        %v2261 = vand.u32 %v2260, 4294901760
        %2262 = vmatpush1.msra.mxu0 %v2261
        %2263 = vmatprep.subr.mxu0 0.0
        %v2264 = vand.u32 %v259, 4294901760
        %v2265 = vsub.f32 %v259, %v2264
        %v2266 = vand.u32 %v2265, 4294901760
        %v2267 = vsub.f32 %v2265, %v2266
        %v2268 = vand.u32 %v2267, 4294901760
        %2269 = vmatpush1.msra.mxu0 %v2268
        %2270 = vmatprep.subr.mxu0 0.0
        %v2271 = vand.u32 %v260, 4294901760
        %v2272 = vsub.f32 %v260, %v2271
        %v2273 = vand.u32 %v2272, 4294901760
        %v2274 = vsub.f32 %v2272, %v2273
        %v2275 = vand.u32 %v2274, 4294901760
        %2276 = vmatpush1.msra.mxu0 %v2275
        %2277 = vmatprep.subr.mxu0 0.0
        %v2278 = vand.u32 %v261, 4294901760
        %v2279 = vsub.f32 %v261, %v2278
        %v2280 = vand.u32 %v2279, 4294901760
        %v2281 = vsub.f32 %v2279, %v2280
        %v2282 = vand.u32 %v2281, 4294901760
        %2283 = vmatpush1.msra.mxu0 %v2282
        %2284 = vmatprep.subr.mxu0 0.0
        %v2285 = vand.u32 %v262, 4294901760
        %v2286 = vsub.f32 %v262, %v2285
        %v2287 = vand.u32 %v2286, 4294901760
        %v2288 = vsub.f32 %v2286, %v2287
        %v2289 = vand.u32 %v2288, 4294901760
        %2290 = vmatpush1.msra.mxu0 %v2289
        %2291 = vmatprep.subr.mxu0 0.0
        %v2292 = vand.u32 %v263, 4294901760
        %v2293 = vsub.f32 %v263, %v2292
        %v2294 = vand.u32 %v2293, 4294901760
        %v2295 = vsub.f32 %v2293, %v2294
        %v2296 = vand.u32 %v2295, 4294901760
        %2297 = vmatpush1.msra.mxu0 %v2296
        %2298 = vmatprep.subr.mxu0 0.0
        %v2299 = vand.u32 %v264, 4294901760
        %v2300 = vsub.f32 %v264, %v2299
        %v2301 = vand.u32 %v2300, 4294901760
        %v2302 = vsub.f32 %v2300, %v2301
        %v2303 = vand.u32 %v2302, 4294901760
        %2304 = vmatpush1.msra.mxu0 %v2303
        %2305 = vmatprep.subr.mxu0 0.0
        %v2306 = vand.u32 %v265, 4294901760
        %v2307 = vsub.f32 %v265, %v2306
        %v2308 = vand.u32 %v2307, 4294901760
        %v2309 = vsub.f32 %v2307, %v2308
        %v2310 = vand.u32 %v2309, 4294901760
        %2311 = vmatpush1.msra.mxu0 %v2310
        %2312 = vmatprep.subr.mxu0 0.0
        %v2313 = vand.u32 %v266, 4294901760
        %v2314 = vsub.f32 %v266, %v2313
        %v2315 = vand.u32 %v2314, 4294901760
        %v2316 = vsub.f32 %v2314, %v2315
        %v2317 = vand.u32 %v2316, 4294901760
        %2318 = vmatpush1.msra.mxu0 %v2317
        %2319 = vmatprep.subr.mxu0 0.0
        %v2320 = vand.u32 %v267, 4294901760
        %v2321 = vsub.f32 %v267, %v2320
        %v2322 = vand.u32 %v2321, 4294901760
        %v2323 = vsub.f32 %v2321, %v2322
        %v2324 = vand.u32 %v2323, 4294901760
        %2325 = vmatpush1.msra.mxu0 %v2324
        %2326 = vmatprep.subr.mxu0 0.0
        %v2327 = vand.u32 %v268, 4294901760
        %v2328 = vsub.f32 %v268, %v2327
        %v2329 = vand.u32 %v2328, 4294901760
        %v2330 = vsub.f32 %v2328, %v2329
        %v2331 = vand.u32 %v2330, 4294901760
        %2332 = vmatpush1.msra.mxu0 %v2331
        %2333 = vmatprep.subr.mxu0 0.0
        %v2334 = vand.u32 %v269, 4294901760
        %v2335 = vsub.f32 %v269, %v2334
        %v2336 = vand.u32 %v2335, 4294901760
        %v2337 = vsub.f32 %v2335, %v2336
        %v2338 = vand.u32 %v2337, 4294901760
        %2339 = vmatpush1.msra.mxu0 %v2338
        %2340 = vmatprep.subr.mxu0 0.0
        %v2341 = vand.u32 %v270, 4294901760
        %v2342 = vsub.f32 %v270, %v2341
        %v2343 = vand.u32 %v2342, 4294901760
        %v2344 = vsub.f32 %v2342, %v2343
        %v2345 = vand.u32 %v2344, 4294901760
        %2346 = vmatpush1.msra.mxu0 %v2345
        %2347 = vmatprep.subr.mxu0 0.0
        %v2348 = vand.u32 %v271, 4294901760
        %v2349 = vsub.f32 %v271, %v2348
        %v2350 = vand.u32 %v2349, 4294901760
        %v2351 = vsub.f32 %v2349, %v2350
        %v2352 = vand.u32 %v2351, 4294901760
        %2353 = vmatpush1.msra.mxu0 %v2352
        %2354 = vmatprep.subr.mxu0 0.0
        %v2355 = vand.u32 %v272, 4294901760
        %v2356 = vsub.f32 %v272, %v2355
        %v2357 = vand.u32 %v2356, 4294901760
        %v2358 = vsub.f32 %v2356, %v2357
        %v2359 = vand.u32 %v2358, 4294901760
        %2360 = vmatpush1.msra.mxu0 %v2359
        %2361 = vmatprep.subr.mxu0 0.0
        %v2362 = vand.u32 %v273, 4294901760
        %v2363 = vsub.f32 %v273, %v2362
        %v2364 = vand.u32 %v2363, 4294901760
        %v2365 = vsub.f32 %v2363, %v2364
        %v2366 = vand.u32 %v2365, 4294901760
        %2367 = vmatpush1.msra.mxu0 %v2366
        %v2368 = vand.u32 %v175, 4294901760
        %2369 = vmatprep.mubr.f32.mxu0 %v2368
        %v2370 = vand.u32 %v174, 4294901760
        %2371 = vmatmul.mubr.f32.gmra.mrb[0].mxu0 %v2370
        %v2372 = vpop.f32.mrb[0].mxu0
        %v2373 = vadd.f32 %v2141, %v2372
        %v2374 = vpop.f32.mrb[0].mxu0
        %2375 = vdwg.mxu0
        %2376 = vmatprep.subr.mxu0 0.0
        %v2377 = vand.u32 %v242, 4294901760
        %v2378 = vsub.f32 %v242, %v2377
        %2379 = vmatpush1.msra.mxu0 %v2378
        %2380 = vmatprep.subr.mxu0 0.0
        %v2381 = vand.u32 %v243, 4294901760
        %v2382 = vsub.f32 %v243, %v2381
        %2383 = vmatpush1.msra.mxu0 %v2382
        %2384 = vmatprep.subr.mxu0 0.0
        %v2385 = vand.u32 %v244, 4294901760
        %v2386 = vsub.f32 %v244, %v2385
        %2387 = vmatpush1.msra.mxu0 %v2386
        %2388 = vmatprep.subr.mxu0 0.0
        %v2389 = vand.u32 %v245, 4294901760
        %v2390 = vsub.f32 %v245, %v2389
        %2391 = vmatpush1.msra.mxu0 %v2390
        %2392 = vmatprep.subr.mxu0 0.0
        %v2393 = vand.u32 %v246, 4294901760
        %v2394 = vsub.f32 %v246, %v2393
        %2395 = vmatpush1.msra.mxu0 %v2394
        %2396 = vmatprep.subr.mxu0 0.0
        %v2397 = vand.u32 %v247, 4294901760
        %v2398 = vsub.f32 %v247, %v2397
        %2399 = vmatpush1.msra.mxu0 %v2398
        %2400 = vmatprep.subr.mxu0 0.0
        %v2401 = vand.u32 %v248, 4294901760
        %v2402 = vsub.f32 %v248, %v2401
        %2403 = vmatpush1.msra.mxu0 %v2402
        %2404 = vmatprep.subr.mxu0 0.0
        %v2405 = vand.u32 %v249, 4294901760
        %v2406 = vsub.f32 %v249, %v2405
        %2407 = vmatpush1.msra.mxu0 %v2406
        %2408 = vmatprep.subr.mxu0 0.0
        %v2409 = vand.u32 %v250, 4294901760
        %v2410 = vsub.f32 %v250, %v2409
        %2411 = vmatpush1.msra.mxu0 %v2410
        %2412 = vmatprep.subr.mxu0 0.0
        %v2413 = vand.u32 %v251, 4294901760
        %v2414 = vsub.f32 %v251, %v2413
        %2415 = vmatpush1.msra.mxu0 %v2414
        %2416 = vmatprep.subr.mxu0 0.0
        %v2417 = vand.u32 %v252, 4294901760
        %v2418 = vsub.f32 %v252, %v2417
        %2419 = vmatpush1.msra.mxu0 %v2418
        %2420 = vmatprep.subr.mxu0 0.0
        %v2421 = vand.u32 %v253, 4294901760
        %v2422 = vsub.f32 %v253, %v2421
        %2423 = vmatpush1.msra.mxu0 %v2422
        %2424 = vmatprep.subr.mxu0 0.0
        %v2425 = vand.u32 %v254, 4294901760
        %v2426 = vsub.f32 %v254, %v2425
        %2427 = vmatpush1.msra.mxu0 %v2426
        %2428 = vmatprep.subr.mxu0 0.0
        %v2429 = vand.u32 %v255, 4294901760
        %v2430 = vsub.f32 %v255, %v2429
        %2431 = vmatpush1.msra.mxu0 %v2430
        %2432 = vmatprep.subr.mxu0 0.0
        %v2433 = vand.u32 %v256, 4294901760
        %v2434 = vsub.f32 %v256, %v2433
        %2435 = vmatpush1.msra.mxu0 %v2434
        %2436 = vmatprep.subr.mxu0 0.0
        %v2437 = vand.u32 %v257, 4294901760
        %v2438 = vsub.f32 %v257, %v2437
        %2439 = vmatpush1.msra.mxu0 %v2438
        %2440 = vmatprep.subr.mxu0 0.0
        %v2441 = vand.u32 %v258, 4294901760
        %v2442 = vsub.f32 %v258, %v2441
        %2443 = vmatpush1.msra.mxu0 %v2442
        %2444 = vmatprep.subr.mxu0 0.0
        %v2445 = vand.u32 %v259, 4294901760
        %v2446 = vsub.f32 %v259, %v2445
        %2447 = vmatpush1.msra.mxu0 %v2446
        %2448 = vmatprep.subr.mxu0 0.0
        %v2449 = vand.u32 %v260, 4294901760
        %v2450 = vsub.f32 %v260, %v2449
        %2451 = vmatpush1.msra.mxu0 %v2450
        %2452 = vmatprep.subr.mxu0 0.0
        %v2453 = vand.u32 %v261, 4294901760
        %v2454 = vsub.f32 %v261, %v2453
        %2455 = vmatpush1.msra.mxu0 %v2454
        %2456 = vmatprep.subr.mxu0 0.0
        %v2457 = vand.u32 %v262, 4294901760
        %v2458 = vsub.f32 %v262, %v2457
        %2459 = vmatpush1.msra.mxu0 %v2458
        %2460 = vmatprep.subr.mxu0 0.0
        %v2461 = vand.u32 %v263, 4294901760
        %v2462 = vsub.f32 %v263, %v2461
        %2463 = vmatpush1.msra.mxu0 %v2462
        %2464 = vmatprep.subr.mxu0 0.0
        %v2465 = vand.u32 %v264, 4294901760
        %v2466 = vsub.f32 %v264, %v2465
        %2467 = vmatpush1.msra.mxu0 %v2466
        %2468 = vmatprep.subr.mxu0 0.0
        %v2469 = vand.u32 %v265, 4294901760
        %v2470 = vsub.f32 %v265, %v2469
        %2471 = vmatpush1.msra.mxu0 %v2470
        %2472 = vmatprep.subr.mxu0 0.0
        %v2473 = vand.u32 %v266, 4294901760
        %v2474 = vsub.f32 %v266, %v2473
        %2475 = vmatpush1.msra.mxu0 %v2474
        %2476 = vmatprep.subr.mxu0 0.0
        %v2477 = vand.u32 %v267, 4294901760
        %v2478 = vsub.f32 %v267, %v2477
        %2479 = vmatpush1.msra.mxu0 %v2478
        %2480 = vmatprep.subr.mxu0 0.0
        %v2481 = vand.u32 %v268, 4294901760
        %v2482 = vsub.f32 %v268, %v2481
        %2483 = vmatpush1.msra.mxu0 %v2482
        %2484 = vmatprep.subr.mxu0 0.0
        %v2485 = vand.u32 %v269, 4294901760
        %v2486 = vsub.f32 %v269, %v2485
        %2487 = vmatpush1.msra.mxu0 %v2486
        %2488 = vmatprep.subr.mxu0 0.0
        %v2489 = vand.u32 %v270, 4294901760
        %v2490 = vsub.f32 %v270, %v2489
        %2491 = vmatpush1.msra.mxu0 %v2490
        %2492 = vmatprep.subr.mxu0 0.0
        %v2493 = vand.u32 %v271, 4294901760
        %v2494 = vsub.f32 %v271, %v2493
        %2495 = vmatpush1.msra.mxu0 %v2494
        %2496 = vmatprep.subr.mxu0 0.0
        %v2497 = vand.u32 %v272, 4294901760
        %v2498 = vsub.f32 %v272, %v2497
        %2499 = vmatpush1.msra.mxu0 %v2498
        %2500 = vmatprep.subr.mxu0 0.0
        %v2501 = vand.u32 %v273, 4294901760
        %v2502 = vsub.f32 %v273, %v2501
        %2503 = vmatpush1.msra.mxu0 %v2502
        %v2504 = vand.u32 %v175, 4294901760
        %v2505 = vsub.f32 %v175, %v2504
        %2506 = vmatprep.mubr.f32.mxu0 %v2505
        %v2507 = vand.u32 %v174, 4294901760
        %v2508 = vsub.f32 %v174, %v2507
        %2509 = vmatmul.mubr.f32.gmra.mrb[0].mxu0 %v2508
        %v2510 = vpop.f32.mrb[0].mxu0
        %v2511 = vadd.f32 %v2373, %v2510
        %v2512 = vpop.f32.mrb[0].mxu0
        %2513 = vdwg.mxu0
        %2514 = vmatprep.subr.mxu0 0.0
        %v2515 = vand.u32 %v242, 4294901760
        %2516 = vmatpush1.msra.mxu0 %v2515
        %2517 = vmatprep.subr.mxu0 0.0
        %v2518 = vand.u32 %v243, 4294901760
        %2519 = vmatpush1.msra.mxu0 %v2518
        %2520 = vmatprep.subr.mxu0 0.0
        %v2521 = vand.u32 %v244, 4294901760
        %2522 = vmatpush1.msra.mxu0 %v2521
        %2523 = vmatprep.subr.mxu0 0.0
        %v2524 = vand.u32 %v245, 4294901760
        %2525 = vmatpush1.msra.mxu0 %v2524
        %2526 = vmatprep.subr.mxu0 0.0
        %v2527 = vand.u32 %v246, 4294901760
        %2528 = vmatpush1.msra.mxu0 %v2527
        %2529 = vmatprep.subr.mxu0 0.0
        %v2530 = vand.u32 %v247, 4294901760
        %2531 = vmatpush1.msra.mxu0 %v2530
        %2532 = vmatprep.subr.mxu0 0.0
        %v2533 = vand.u32 %v248, 4294901760
        %2534 = vmatpush1.msra.mxu0 %v2533
        %2535 = vmatprep.subr.mxu0 0.0
        %v2536 = vand.u32 %v249, 4294901760
        %2537 = vmatpush1.msra.mxu0 %v2536
        %2538 = vmatprep.subr.mxu0 0.0
        %v2539 = vand.u32 %v250, 4294901760
        %2540 = vmatpush1.msra.mxu0 %v2539
        %2541 = vmatprep.subr.mxu0 0.0
        %v2542 = vand.u32 %v251, 4294901760
        %2543 = vmatpush1.msra.mxu0 %v2542
        %2544 = vmatprep.subr.mxu0 0.0
        %v2545 = vand.u32 %v252, 4294901760
        %2546 = vmatpush1.msra.mxu0 %v2545
        %2547 = vmatprep.subr.mxu0 0.0
        %v2548 = vand.u32 %v253, 4294901760
        %2549 = vmatpush1.msra.mxu0 %v2548
        %2550 = vmatprep.subr.mxu0 0.0
        %v2551 = vand.u32 %v254, 4294901760
        %2552 = vmatpush1.msra.mxu0 %v2551
        %2553 = vmatprep.subr.mxu0 0.0
        %v2554 = vand.u32 %v255, 4294901760
        %2555 = vmatpush1.msra.mxu0 %v2554
        %2556 = vmatprep.subr.mxu0 0.0
        %v2557 = vand.u32 %v256, 4294901760
        %2558 = vmatpush1.msra.mxu0 %v2557
        %2559 = vmatprep.subr.mxu0 0.0
        %v2560 = vand.u32 %v257, 4294901760
        %2561 = vmatpush1.msra.mxu0 %v2560
        %2562 = vmatprep.subr.mxu0 0.0
        %v2563 = vand.u32 %v258, 4294901760
        %2564 = vmatpush1.msra.mxu0 %v2563
        %2565 = vmatprep.subr.mxu0 0.0
        %v2566 = vand.u32 %v259, 4294901760
        %2567 = vmatpush1.msra.mxu0 %v2566
        %2568 = vmatprep.subr.mxu0 0.0
        %v2569 = vand.u32 %v260, 4294901760
        %2570 = vmatpush1.msra.mxu0 %v2569
        %2571 = vmatprep.subr.mxu0 0.0
        %v2572 = vand.u32 %v261, 4294901760
        %2573 = vmatpush1.msra.mxu0 %v2572
        %2574 = vmatprep.subr.mxu0 0.0
        %v2575 = vand.u32 %v262, 4294901760
        %2576 = vmatpush1.msra.mxu0 %v2575
        %2577 = vmatprep.subr.mxu0 0.0
        %v2578 = vand.u32 %v263, 4294901760
        %2579 = vmatpush1.msra.mxu0 %v2578
        %2580 = vmatprep.subr.mxu0 0.0
        %v2581 = vand.u32 %v264, 4294901760
        %2582 = vmatpush1.msra.mxu0 %v2581
        %2583 = vmatprep.subr.mxu0 0.0
        %v2584 = vand.u32 %v265, 4294901760
        %2585 = vmatpush1.msra.mxu0 %v2584
        %2586 = vmatprep.subr.mxu0 0.0
        %v2587 = vand.u32 %v266, 4294901760
        %2588 = vmatpush1.msra.mxu0 %v2587
        %2589 = vmatprep.subr.mxu0 0.0
        %v2590 = vand.u32 %v267, 4294901760
        %2591 = vmatpush1.msra.mxu0 %v2590
        %2592 = vmatprep.subr.mxu0 0.0
        %v2593 = vand.u32 %v268, 4294901760
        %2594 = vmatpush1.msra.mxu0 %v2593
        %2595 = vmatprep.subr.mxu0 0.0
        %v2596 = vand.u32 %v269, 4294901760
        %2597 = vmatpush1.msra.mxu0 %v2596
        %2598 = vmatprep.subr.mxu0 0.0
        %v2599 = vand.u32 %v270, 4294901760
        %2600 = vmatpush1.msra.mxu0 %v2599
        %2601 = vmatprep.subr.mxu0 0.0
        %v2602 = vand.u32 %v271, 4294901760
        %2603 = vmatpush1.msra.mxu0 %v2602
        %2604 = vmatprep.subr.mxu0 0.0
        %v2605 = vand.u32 %v272, 4294901760
        %2606 = vmatpush1.msra.mxu0 %v2605
        %2607 = vmatprep.subr.mxu0 0.0
        %v2608 = vand.u32 %v273, 4294901760
        %2609 = vmatpush1.msra.mxu0 %v2608
        %v2610 = vand.u32 %v175, 4294901760
        %v2611 = vsub.f32 %v175, %v2610
        %v2612 = vand.u32 %v2611, 4294901760
        %2613 = vmatprep.mubr.f32.mxu0 %v2612
        %v2614 = vand.u32 %v174, 4294901760
        %v2615 = vsub.f32 %v174, %v2614
        %v2616 = vand.u32 %v2615, 4294901760
        %2617 = vmatmul.mubr.f32.gmra.mrb[0].mxu0 %v2616
        %v2618 = vpop.f32.mrb[0].mxu0
        %v2619 = vadd.f32 %v2511, %v2618
        %v2620 = vpop.f32.mrb[0].mxu0
        %2621 = vdwg.mxu0
        %2622 = vmatprep.subr.mxu0 0.0
        %v2623 = vand.u32 %v242, 4294901760
        %v2624 = vsub.f32 %v242, %v2623
        %v2625 = vand.u32 %v2624, 4294901760
        %2626 = vmatpush1.msra.mxu0 %v2625
        %2627 = vmatprep.subr.mxu0 0.0
        %v2628 = vand.u32 %v243, 4294901760
        %v2629 = vsub.f32 %v243, %v2628
        %v2630 = vand.u32 %v2629, 4294901760
        %2631 = vmatpush1.msra.mxu0 %v2630
        %2632 = vmatprep.subr.mxu0 0.0
        %v2633 = vand.u32 %v244, 4294901760
        %v2634 = vsub.f32 %v244, %v2633
        %v2635 = vand.u32 %v2634, 4294901760
        %2636 = vmatpush1.msra.mxu0 %v2635
        %2637 = vmatprep.subr.mxu0 0.0
        %v2638 = vand.u32 %v245, 4294901760
        %v2639 = vsub.f32 %v245, %v2638
        %v2640 = vand.u32 %v2639, 4294901760
        %2641 = vmatpush1.msra.mxu0 %v2640
        %2642 = vmatprep.subr.mxu0 0.0
        %v2643 = vand.u32 %v246, 4294901760
        %v2644 = vsub.f32 %v246, %v2643
        %v2645 = vand.u32 %v2644, 4294901760
        %2646 = vmatpush1.msra.mxu0 %v2645
        %2647 = vmatprep.subr.mxu0 0.0
        %v2648 = vand.u32 %v247, 4294901760
        %v2649 = vsub.f32 %v247, %v2648
        %v2650 = vand.u32 %v2649, 4294901760
        %2651 = vmatpush1.msra.mxu0 %v2650
        %2652 = vmatprep.subr.mxu0 0.0
        %v2653 = vand.u32 %v248, 4294901760
        %v2654 = vsub.f32 %v248, %v2653
        %v2655 = vand.u32 %v2654, 4294901760
        %2656 = vmatpush1.msra.mxu0 %v2655
        %2657 = vmatprep.subr.mxu0 0.0
        %v2658 = vand.u32 %v249, 4294901760
        %v2659 = vsub.f32 %v249, %v2658
        %v2660 = vand.u32 %v2659, 4294901760
        %2661 = vmatpush1.msra.mxu0 %v2660
        %2662 = vmatprep.subr.mxu0 0.0
        %v2663 = vand.u32 %v250, 4294901760
        %v2664 = vsub.f32 %v250, %v2663
        %v2665 = vand.u32 %v2664, 4294901760
        %2666 = vmatpush1.msra.mxu0 %v2665
        %2667 = vmatprep.subr.mxu0 0.0
        %v2668 = vand.u32 %v251, 4294901760
        %v2669 = vsub.f32 %v251, %v2668
        %v2670 = vand.u32 %v2669, 4294901760
        %2671 = vmatpush1.msra.mxu0 %v2670
        %2672 = vmatprep.subr.mxu0 0.0
        %v2673 = vand.u32 %v252, 4294901760
        %v2674 = vsub.f32 %v252, %v2673
        %v2675 = vand.u32 %v2674, 4294901760
        %2676 = vmatpush1.msra.mxu0 %v2675
        %2677 = vmatprep.subr.mxu0 0.0
        %v2678 = vand.u32 %v253, 4294901760
        %v2679 = vsub.f32 %v253, %v2678
        %v2680 = vand.u32 %v2679, 4294901760
        %2681 = vmatpush1.msra.mxu0 %v2680
        %2682 = vmatprep.subr.mxu0 0.0
        %v2683 = vand.u32 %v254, 4294901760
        %v2684 = vsub.f32 %v254, %v2683
        %v2685 = vand.u32 %v2684, 4294901760
        %2686 = vmatpush1.msra.mxu0 %v2685
        %2687 = vmatprep.subr.mxu0 0.0
        %v2688 = vand.u32 %v255, 4294901760
        %v2689 = vsub.f32 %v255, %v2688
        %v2690 = vand.u32 %v2689, 4294901760
        %2691 = vmatpush1.msra.mxu0 %v2690
        %2692 = vmatprep.subr.mxu0 0.0
        %v2693 = vand.u32 %v256, 4294901760
        %v2694 = vsub.f32 %v256, %v2693
        %v2695 = vand.u32 %v2694, 4294901760
        %2696 = vmatpush1.msra.mxu0 %v2695
        %2697 = vmatprep.subr.mxu0 0.0
        %v2698 = vand.u32 %v257, 4294901760
        %v2699 = vsub.f32 %v257, %v2698
        %v2700 = vand.u32 %v2699, 4294901760
        %2701 = vmatpush1.msra.mxu0 %v2700
        %2702 = vmatprep.subr.mxu0 0.0
        %v2703 = vand.u32 %v258, 4294901760
        %v2704 = vsub.f32 %v258, %v2703
        %v2705 = vand.u32 %v2704, 4294901760
        %2706 = vmatpush1.msra.mxu0 %v2705
        %2707 = vmatprep.subr.mxu0 0.0
        %v2708 = vand.u32 %v259, 4294901760
        %v2709 = vsub.f32 %v259, %v2708
        %v2710 = vand.u32 %v2709, 4294901760
        %2711 = vmatpush1.msra.mxu0 %v2710
        %2712 = vmatprep.subr.mxu0 0.0
        %v2713 = vand.u32 %v260, 4294901760
        %v2714 = vsub.f32 %v260, %v2713
        %v2715 = vand.u32 %v2714, 4294901760
        %2716 = vmatpush1.msra.mxu0 %v2715
        %2717 = vmatprep.subr.mxu0 0.0
        %v2718 = vand.u32 %v261, 4294901760
        %v2719 = vsub.f32 %v261, %v2718
        %v2720 = vand.u32 %v2719, 4294901760
        %2721 = vmatpush1.msra.mxu0 %v2720
        %2722 = vmatprep.subr.mxu0 0.0
        %v2723 = vand.u32 %v262, 4294901760
        %v2724 = vsub.f32 %v262, %v2723
        %v2725 = vand.u32 %v2724, 4294901760
        %2726 = vmatpush1.msra.mxu0 %v2725
        %2727 = vmatprep.subr.mxu0 0.0
        %v2728 = vand.u32 %v263, 4294901760
        %v2729 = vsub.f32 %v263, %v2728
        %v2730 = vand.u32 %v2729, 4294901760
        %2731 = vmatpush1.msra.mxu0 %v2730
        %2732 = vmatprep.subr.mxu0 0.0
        %v2733 = vand.u32 %v264, 4294901760
        %v2734 = vsub.f32 %v264, %v2733
        %v2735 = vand.u32 %v2734, 4294901760
        %2736 = vmatpush1.msra.mxu0 %v2735
        %2737 = vmatprep.subr.mxu0 0.0
        %v2738 = vand.u32 %v265, 4294901760
        %v2739 = vsub.f32 %v265, %v2738
        %v2740 = vand.u32 %v2739, 4294901760
        %2741 = vmatpush1.msra.mxu0 %v2740
        %2742 = vmatprep.subr.mxu0 0.0
        %v2743 = vand.u32 %v266, 4294901760
        %v2744 = vsub.f32 %v266, %v2743
        %v2745 = vand.u32 %v2744, 4294901760
        %2746 = vmatpush1.msra.mxu0 %v2745
        %2747 = vmatprep.subr.mxu0 0.0
        %v2748 = vand.u32 %v267, 4294901760
        %v2749 = vsub.f32 %v267, %v2748
        %v2750 = vand.u32 %v2749, 4294901760
        %2751 = vmatpush1.msra.mxu0 %v2750
        %2752 = vmatprep.subr.mxu0 0.0
        %v2753 = vand.u32 %v268, 4294901760
        %v2754 = vsub.f32 %v268, %v2753
        %v2755 = vand.u32 %v2754, 4294901760
        %2756 = vmatpush1.msra.mxu0 %v2755
        %2757 = vmatprep.subr.mxu0 0.0
        %v2758 = vand.u32 %v269, 4294901760
        %v2759 = vsub.f32 %v269, %v2758
        %v2760 = vand.u32 %v2759, 4294901760
        %2761 = vmatpush1.msra.mxu0 %v2760
        %2762 = vmatprep.subr.mxu0 0.0
        %v2763 = vand.u32 %v270, 4294901760
        %v2764 = vsub.f32 %v270, %v2763
        %v2765 = vand.u32 %v2764, 4294901760
        %2766 = vmatpush1.msra.mxu0 %v2765
        %2767 = vmatprep.subr.mxu0 0.0
        %v2768 = vand.u32 %v271, 4294901760
        %v2769 = vsub.f32 %v271, %v2768
        %v2770 = vand.u32 %v2769, 4294901760
        %2771 = vmatpush1.msra.mxu0 %v2770
        %2772 = vmatprep.subr.mxu0 0.0
        %v2773 = vand.u32 %v272, 4294901760
        %v2774 = vsub.f32 %v272, %v2773
        %v2775 = vand.u32 %v2774, 4294901760
        %2776 = vmatpush1.msra.mxu0 %v2775
        %2777 = vmatprep.subr.mxu0 0.0
        %v2778 = vand.u32 %v273, 4294901760
        %v2779 = vsub.f32 %v273, %v2778
        %v2780 = vand.u32 %v2779, 4294901760
        %2781 = vmatpush1.msra.mxu0 %v2780
        %v2782 = vand.u32 %v175, 4294901760
        %2783 = vmatprep.mubr.f32.mxu0 %v2782
        %v2784 = vand.u32 %v174, 4294901760
        %2785 = vmatmul.mubr.f32.gmra.mrb[0].mxu0 %v2784
        %v2786 = vpop.f32.mrb[0].mxu0
        %v2787 = vadd.f32 %v2619, %v2786
        %v2788 = vpop.f32.mrb[0].mxu0
        %2789 = vdwg.mxu0
        %2790 = vmatprep.subr.mxu0 0.0
        %v2791 = vand.u32 %v242, 4294901760
        %2792 = vmatpush1.msra.mxu0 %v2791
        %2793 = vmatprep.subr.mxu0 0.0
        %v2794 = vand.u32 %v243, 4294901760
        %2795 = vmatpush1.msra.mxu0 %v2794
        %2796 = vmatprep.subr.mxu0 0.0
        %v2797 = vand.u32 %v244, 4294901760
        %2798 = vmatpush1.msra.mxu0 %v2797
        %2799 = vmatprep.subr.mxu0 0.0
        %v2800 = vand.u32 %v245, 4294901760
        %2801 = vmatpush1.msra.mxu0 %v2800
        %2802 = vmatprep.subr.mxu0 0.0
        %v2803 = vand.u32 %v246, 4294901760
        %2804 = vmatpush1.msra.mxu0 %v2803
        %2805 = vmatprep.subr.mxu0 0.0
        %v2806 = vand.u32 %v247, 4294901760
        %2807 = vmatpush1.msra.mxu0 %v2806
        %2808 = vmatprep.subr.mxu0 0.0
        %v2809 = vand.u32 %v248, 4294901760
        %2810 = vmatpush1.msra.mxu0 %v2809
        %2811 = vmatprep.subr.mxu0 0.0
        %v2812 = vand.u32 %v249, 4294901760
        %2813 = vmatpush1.msra.mxu0 %v2812
        %2814 = vmatprep.subr.mxu0 0.0
        %v2815 = vand.u32 %v250, 4294901760
        %2816 = vmatpush1.msra.mxu0 %v2815
        %2817 = vmatprep.subr.mxu0 0.0
        %v2818 = vand.u32 %v251, 4294901760
        %2819 = vmatpush1.msra.mxu0 %v2818
        %2820 = vmatprep.subr.mxu0 0.0
        %v2821 = vand.u32 %v252, 4294901760
        %2822 = vmatpush1.msra.mxu0 %v2821
        %2823 = vmatprep.subr.mxu0 0.0
        %v2824 = vand.u32 %v253, 4294901760
        %2825 = vmatpush1.msra.mxu0 %v2824
        %2826 = vmatprep.subr.mxu0 0.0
        %v2827 = vand.u32 %v254, 4294901760
        %2828 = vmatpush1.msra.mxu0 %v2827
        %2829 = vmatprep.subr.mxu0 0.0
        %v2830 = vand.u32 %v255, 4294901760
        %2831 = vmatpush1.msra.mxu0 %v2830
        %2832 = vmatprep.subr.mxu0 0.0
        %v2833 = vand.u32 %v256, 4294901760
        %2834 = vmatpush1.msra.mxu0 %v2833
        %2835 = vmatprep.subr.mxu0 0.0
        %v2836 = vand.u32 %v257, 4294901760
        %2837 = vmatpush1.msra.mxu0 %v2836
        %2838 = vmatprep.subr.mxu0 0.0
        %v2839 = vand.u32 %v258, 4294901760
        %2840 = vmatpush1.msra.mxu0 %v2839
        %2841 = vmatprep.subr.mxu0 0.0
        %v2842 = vand.u32 %v259, 4294901760
        %2843 = vmatpush1.msra.mxu0 %v2842
        %2844 = vmatprep.subr.mxu0 0.0
        %v2845 = vand.u32 %v260, 4294901760
        %2846 = vmatpush1.msra.mxu0 %v2845
        %2847 = vmatprep.subr.mxu0 0.0
        %v2848 = vand.u32 %v261, 4294901760
        %2849 = vmatpush1.msra.mxu0 %v2848
        %2850 = vmatprep.subr.mxu0 0.0
        %v2851 = vand.u32 %v262, 4294901760
        %2852 = vmatpush1.msra.mxu0 %v2851
        %2853 = vmatprep.subr.mxu0 0.0
        %v2854 = vand.u32 %v263, 4294901760
        %2855 = vmatpush1.msra.mxu0 %v2854
        %2856 = vmatprep.subr.mxu0 0.0
        %v2857 = vand.u32 %v264, 4294901760
        %2858 = vmatpush1.msra.mxu0 %v2857
        %2859 = vmatprep.subr.mxu0 0.0
        %v2860 = vand.u32 %v265, 4294901760
        %2861 = vmatpush1.msra.mxu0 %v2860
        %2862 = vmatprep.subr.mxu0 0.0
        %v2863 = vand.u32 %v266, 4294901760
        %2864 = vmatpush1.msra.mxu0 %v2863
        %2865 = vmatprep.subr.mxu0 0.0
        %v2866 = vand.u32 %v267, 4294901760
        %2867 = vmatpush1.msra.mxu0 %v2866
        %2868 = vmatprep.subr.mxu0 0.0
        %v2869 = vand.u32 %v268, 4294901760
        %2870 = vmatpush1.msra.mxu0 %v2869
        %2871 = vmatprep.subr.mxu0 0.0
        %v2872 = vand.u32 %v269, 4294901760
        %2873 = vmatpush1.msra.mxu0 %v2872
        %2874 = vmatprep.subr.mxu0 0.0
        %v2875 = vand.u32 %v270, 4294901760
        %2876 = vmatpush1.msra.mxu0 %v2875
        %2877 = vmatprep.subr.mxu0 0.0
        %v2878 = vand.u32 %v271, 4294901760
        %2879 = vmatpush1.msra.mxu0 %v2878
        %2880 = vmatprep.subr.mxu0 0.0
        %v2881 = vand.u32 %v272, 4294901760
        %2882 = vmatpush1.msra.mxu0 %v2881
        %2883 = vmatprep.subr.mxu0 0.0
        %v2884 = vand.u32 %v273, 4294901760
        %2885 = vmatpush1.msra.mxu0 %v2884
        %v2886 = vand.u32 %v175, 4294901760
        %2887 = vmatprep.mubr.f32.mxu0 %v2886
        %v2888 = vand.u32 %v174, 4294901760
        %2889 = vmatmul.mubr.f32.gmra.mrb[0].mxu0 %v2888
        %v2890 = vpop.f32.mrb[0].mxu0
        %v2891 = vadd.f32 %v2787, %v2890
        %v2892 = vpop.f32.mrb[0].mxu0
        %2893 = vdwg.mxu0
        %2894 = vmatprep.subr.mxu0 0.0
        %v2895 = vand.u32 %v274, 4294901760
        %2896 = vmatpush1.msra.mxu0 %v2895
        %2897 = vmatprep.subr.mxu0 0.0
        %v2898 = vand.u32 %v275, 4294901760
        %2899 = vmatpush1.msra.mxu0 %v2898
        %2900 = vmatprep.subr.mxu0 0.0
        %v2901 = vand.u32 %v276, 4294901760
        %2902 = vmatpush1.msra.mxu0 %v2901
        %2903 = vmatprep.subr.mxu0 0.0
        %v2904 = vand.u32 %v277, 4294901760
        %2905 = vmatpush1.msra.mxu0 %v2904
        %2906 = vmatprep.subr.mxu0 0.0
        %v2907 = vand.u32 %v278, 4294901760
        %2908 = vmatpush1.msra.mxu0 %v2907
        %2909 = vmatprep.subr.mxu0 0.0
        %v2910 = vand.u32 %v279, 4294901760
        %2911 = vmatpush1.msra.mxu0 %v2910
        %2912 = vmatprep.subr.mxu0 0.0
        %v2913 = vand.u32 %v280, 4294901760
        %2914 = vmatpush1.msra.mxu0 %v2913
        %2915 = vmatprep.subr.mxu0 0.0
        %v2916 = vand.u32 %v281, 4294901760
        %2917 = vmatpush1.msra.mxu0 %v2916
        %2918 = vmatprep.subr.mxu0 0.0
        %v2919 = vand.u32 %v282, 4294901760
        %2920 = vmatpush1.msra.mxu0 %v2919
        %2921 = vmatprep.subr.mxu0 0.0
        %v2922 = vand.u32 %v283, 4294901760
        %2923 = vmatpush1.msra.mxu0 %v2922
        %2924 = vmatprep.subr.mxu0 0.0
        %v2925 = vand.u32 %v284, 4294901760
        %2926 = vmatpush1.msra.mxu0 %v2925
        %2927 = vmatprep.subr.mxu0 0.0
        %v2928 = vand.u32 %v285, 4294901760
        %2929 = vmatpush1.msra.mxu0 %v2928
        %2930 = vmatprep.subr.mxu0 0.0
        %v2931 = vand.u32 %v286, 4294901760
        %2932 = vmatpush1.msra.mxu0 %v2931
        %2933 = vmatprep.subr.mxu0 0.0
        %v2934 = vand.u32 %v287, 4294901760
        %2935 = vmatpush1.msra.mxu0 %v2934
        %2936 = vmatprep.subr.mxu0 0.0
        %v2937 = vand.u32 %v288, 4294901760
        %2938 = vmatpush1.msra.mxu0 %v2937
        %2939 = vmatprep.subr.mxu0 0.0
        %v2940 = vand.u32 %v289, 4294901760
        %2941 = vmatpush1.msra.mxu0 %v2940
        %2942 = vmatprep.subr.mxu0 0.0
        %v2943 = vand.u32 %v290, 4294901760
        %2944 = vmatpush1.msra.mxu0 %v2943
        %2945 = vmatprep.subr.mxu0 0.0
        %v2946 = vand.u32 %v291, 4294901760
        %2947 = vmatpush1.msra.mxu0 %v2946
        %2948 = vmatprep.subr.mxu0 0.0
        %v2949 = vand.u32 %v292, 4294901760
        %2950 = vmatpush1.msra.mxu0 %v2949
        %2951 = vmatprep.subr.mxu0 0.0
        %v2952 = vand.u32 %v293, 4294901760
        %2953 = vmatpush1.msra.mxu0 %v2952
        %2954 = vmatprep.subr.mxu0 0.0
        %v2955 = vand.u32 %v294, 4294901760
        %2956 = vmatpush1.msra.mxu0 %v2955
        %2957 = vmatprep.subr.mxu0 0.0
        %v2958 = vand.u32 %v295, 4294901760
        %2959 = vmatpush1.msra.mxu0 %v2958
        %2960 = vmatprep.subr.mxu0 0.0
        %v2961 = vand.u32 %v296, 4294901760
        %2962 = vmatpush1.msra.mxu0 %v2961
        %2963 = vmatprep.subr.mxu0 0.0
        %v2964 = vand.u32 %v297, 4294901760
        %2965 = vmatpush1.msra.mxu0 %v2964
        %2966 = vmatprep.subr.mxu0 0.0
        %v2967 = vand.u32 %v298, 4294901760
        %2968 = vmatpush1.msra.mxu0 %v2967
        %2969 = vmatprep.subr.mxu0 0.0
        %v2970 = vand.u32 %v299, 4294901760
        %2971 = vmatpush1.msra.mxu0 %v2970
        %2972 = vmatprep.subr.mxu0 0.0
        %v2973 = vand.u32 %v300, 4294901760
        %2974 = vmatpush1.msra.mxu0 %v2973
        %2975 = vmatprep.subr.mxu0 0.0
        %v2976 = vand.u32 %v301, 4294901760
        %2977 = vmatpush1.msra.mxu0 %v2976
        %2978 = vmatprep.subr.mxu0 0.0
        %v2979 = vand.u32 %v302, 4294901760
        %2980 = vmatpush1.msra.mxu0 %v2979
        %2981 = vmatprep.subr.mxu0 0.0
        %v2982 = vand.u32 %v303, 4294901760
        %2983 = vmatpush1.msra.mxu0 %v2982
        %2984 = vmatprep.subr.mxu0 0.0
        %v2985 = vand.u32 %v304, 4294901760
        %2986 = vmatpush1.msra.mxu0 %v2985
        %2987 = vmatprep.subr.mxu0 0.0
        %v2988 = vand.u32 %v305, 4294901760
        %2989 = vmatpush1.msra.mxu0 %v2988
        %v2990 = vand.u32 %v177, 4294901760
        %v2991 = vsub.f32 %v177, %v2990
        %v2992 = vand.u32 %v2991, 4294901760
        %v2993 = vsub.f32 %v2991, %v2992
        %v2994 = vand.u32 %v2993, 4294901760
        %2995 = vmatprep.mubr.f32.mxu0 %v2994
        %v2996 = vand.u32 %v176, 4294901760
        %v2997 = vsub.f32 %v176, %v2996
        %v2998 = vand.u32 %v2997, 4294901760
        %v2999 = vsub.f32 %v2997, %v2998
        %v3000 = vand.u32 %v2999, 4294901760
        %3001 = vmatmul.mubr.f32.gmra.mrb[0].mxu0 %v3000
        %v3002 = vpop.f32.mrb[0].mxu0
        %v3003 = vadd.f32 %v2891, %v3002
        %v3004 = vpop.f32.mrb[0].mxu0
        %3005 = vdwg.mxu0
        %3006 = vmatprep.subr.mxu0 0.0
        %v3007 = vand.u32 %v274, 4294901760
        %v3008 = vsub.f32 %v274, %v3007
        %v3009 = vand.u32 %v3008, 4294901760
        %v3010 = vsub.f32 %v3008, %v3009
        %v3011 = vand.u32 %v3010, 4294901760
        %3012 = vmatpush1.msra.mxu0 %v3011
        %3013 = vmatprep.subr.mxu0 0.0
        %v3014 = vand.u32 %v275, 4294901760
        %v3015 = vsub.f32 %v275, %v3014
        %v3016 = vand.u32 %v3015, 4294901760
        %v3017 = vsub.f32 %v3015, %v3016
        %v3018 = vand.u32 %v3017, 4294901760
        %3019 = vmatpush1.msra.mxu0 %v3018
        %3020 = vmatprep.subr.mxu0 0.0
        %v3021 = vand.u32 %v276, 4294901760
        %v3022 = vsub.f32 %v276, %v3021
        %v3023 = vand.u32 %v3022, 4294901760
        %v3024 = vsub.f32 %v3022, %v3023
        %v3025 = vand.u32 %v3024, 4294901760
        %3026 = vmatpush1.msra.mxu0 %v3025
        %3027 = vmatprep.subr.mxu0 0.0
        %v3028 = vand.u32 %v277, 4294901760
        %v3029 = vsub.f32 %v277, %v3028
        %v3030 = vand.u32 %v3029, 4294901760
        %v3031 = vsub.f32 %v3029, %v3030
        %v3032 = vand.u32 %v3031, 4294901760
        %3033 = vmatpush1.msra.mxu0 %v3032
        %3034 = vmatprep.subr.mxu0 0.0
        %v3035 = vand.u32 %v278, 4294901760
        %v3036 = vsub.f32 %v278, %v3035
        %v3037 = vand.u32 %v3036, 4294901760
        %v3038 = vsub.f32 %v3036, %v3037
        %v3039 = vand.u32 %v3038, 4294901760
        %3040 = vmatpush1.msra.mxu0 %v3039
        %3041 = vmatprep.subr.mxu0 0.0
        %v3042 = vand.u32 %v279, 4294901760
        %v3043 = vsub.f32 %v279, %v3042
        %v3044 = vand.u32 %v3043, 4294901760
        %v3045 = vsub.f32 %v3043, %v3044
        %v3046 = vand.u32 %v3045, 4294901760
        %3047 = vmatpush1.msra.mxu0 %v3046
        %3048 = vmatprep.subr.mxu0 0.0
        %v3049 = vand.u32 %v280, 4294901760
        %v3050 = vsub.f32 %v280, %v3049
        %v3051 = vand.u32 %v3050, 4294901760
        %v3052 = vsub.f32 %v3050, %v3051
        %v3053 = vand.u32 %v3052, 4294901760
        %3054 = vmatpush1.msra.mxu0 %v3053
        %3055 = vmatprep.subr.mxu0 0.0
        %v3056 = vand.u32 %v281, 4294901760
        %v3057 = vsub.f32 %v281, %v3056
        %v3058 = vand.u32 %v3057, 4294901760
        %v3059 = vsub.f32 %v3057, %v3058
        %v3060 = vand.u32 %v3059, 4294901760
        %3061 = vmatpush1.msra.mxu0 %v3060
        %3062 = vmatprep.subr.mxu0 0.0
        %v3063 = vand.u32 %v282, 4294901760
        %v3064 = vsub.f32 %v282, %v3063
        %v3065 = vand.u32 %v3064, 4294901760
        %v3066 = vsub.f32 %v3064, %v3065
        %v3067 = vand.u32 %v3066, 4294901760
        %3068 = vmatpush1.msra.mxu0 %v3067
        %3069 = vmatprep.subr.mxu0 0.0
        %v3070 = vand.u32 %v283, 4294901760
        %v3071 = vsub.f32 %v283, %v3070
        %v3072 = vand.u32 %v3071, 4294901760
        %v3073 = vsub.f32 %v3071, %v3072
        %v3074 = vand.u32 %v3073, 4294901760
        %3075 = vmatpush1.msra.mxu0 %v3074
        %3076 = vmatprep.subr.mxu0 0.0
        %v3077 = vand.u32 %v284, 4294901760
        %v3078 = vsub.f32 %v284, %v3077
        %v3079 = vand.u32 %v3078, 4294901760
        %v3080 = vsub.f32 %v3078, %v3079
        %v3081 = vand.u32 %v3080, 4294901760
        %3082 = vmatpush1.msra.mxu0 %v3081
        %3083 = vmatprep.subr.mxu0 0.0
        %v3084 = vand.u32 %v285, 4294901760
        %v3085 = vsub.f32 %v285, %v3084
        %v3086 = vand.u32 %v3085, 4294901760
        %v3087 = vsub.f32 %v3085, %v3086
        %v3088 = vand.u32 %v3087, 4294901760
        %3089 = vmatpush1.msra.mxu0 %v3088
        %3090 = vmatprep.subr.mxu0 0.0
        %v3091 = vand.u32 %v286, 4294901760
        %v3092 = vsub.f32 %v286, %v3091
        %v3093 = vand.u32 %v3092, 4294901760
        %v3094 = vsub.f32 %v3092, %v3093
        %v3095 = vand.u32 %v3094, 4294901760
        %3096 = vmatpush1.msra.mxu0 %v3095
        %3097 = vmatprep.subr.mxu0 0.0
        %v3098 = vand.u32 %v287, 4294901760
        %v3099 = vsub.f32 %v287, %v3098
        %v3100 = vand.u32 %v3099, 4294901760
        %v3101 = vsub.f32 %v3099, %v3100
        %v3102 = vand.u32 %v3101, 4294901760
        %3103 = vmatpush1.msra.mxu0 %v3102
        %3104 = vmatprep.subr.mxu0 0.0
        %v3105 = vand.u32 %v288, 4294901760
        %v3106 = vsub.f32 %v288, %v3105
        %v3107 = vand.u32 %v3106, 4294901760
        %v3108 = vsub.f32 %v3106, %v3107
        %v3109 = vand.u32 %v3108, 4294901760
        %3110 = vmatpush1.msra.mxu0 %v3109
        %3111 = vmatprep.subr.mxu0 0.0
        %v3112 = vand.u32 %v289, 4294901760
        %v3113 = vsub.f32 %v289, %v3112
        %v3114 = vand.u32 %v3113, 4294901760
        %v3115 = vsub.f32 %v3113, %v3114
        %v3116 = vand.u32 %v3115, 4294901760
        %3117 = vmatpush1.msra.mxu0 %v3116
        %3118 = vmatprep.subr.mxu0 0.0
        %v3119 = vand.u32 %v290, 4294901760
        %v3120 = vsub.f32 %v290, %v3119
        %v3121 = vand.u32 %v3120, 4294901760
        %v3122 = vsub.f32 %v3120, %v3121
        %v3123 = vand.u32 %v3122, 4294901760
        %3124 = vmatpush1.msra.mxu0 %v3123
        %3125 = vmatprep.subr.mxu0 0.0
        %v3126 = vand.u32 %v291, 4294901760
        %v3127 = vsub.f32 %v291, %v3126
        %v3128 = vand.u32 %v3127, 4294901760
        %v3129 = vsub.f32 %v3127, %v3128
        %v3130 = vand.u32 %v3129, 4294901760
        %3131 = vmatpush1.msra.mxu0 %v3130
        %3132 = vmatprep.subr.mxu0 0.0
        %v3133 = vand.u32 %v292, 4294901760
        %v3134 = vsub.f32 %v292, %v3133
        %v3135 = vand.u32 %v3134, 4294901760
        %v3136 = vsub.f32 %v3134, %v3135
        %v3137 = vand.u32 %v3136, 4294901760
        %3138 = vmatpush1.msra.mxu0 %v3137
        %3139 = vmatprep.subr.mxu0 0.0
        %v3140 = vand.u32 %v293, 4294901760
        %v3141 = vsub.f32 %v293, %v3140
        %v3142 = vand.u32 %v3141, 4294901760
        %v3143 = vsub.f32 %v3141, %v3142
        %v3144 = vand.u32 %v3143, 4294901760
        %3145 = vmatpush1.msra.mxu0 %v3144
        %3146 = vmatprep.subr.mxu0 0.0
        %v3147 = vand.u32 %v294, 4294901760
        %v3148 = vsub.f32 %v294, %v3147
        %v3149 = vand.u32 %v3148, 4294901760
        %v3150 = vsub.f32 %v3148, %v3149
        %v3151 = vand.u32 %v3150, 4294901760
        %3152 = vmatpush1.msra.mxu0 %v3151
        %3153 = vmatprep.subr.mxu0 0.0
        %v3154 = vand.u32 %v295, 4294901760
        %v3155 = vsub.f32 %v295, %v3154
        %v3156 = vand.u32 %v3155, 4294901760
        %v3157 = vsub.f32 %v3155, %v3156
        %v3158 = vand.u32 %v3157, 4294901760
        %3159 = vmatpush1.msra.mxu0 %v3158
        %3160 = vmatprep.subr.mxu0 0.0
        %v3161 = vand.u32 %v296, 4294901760
        %v3162 = vsub.f32 %v296, %v3161
        %v3163 = vand.u32 %v3162, 4294901760
        %v3164 = vsub.f32 %v3162, %v3163
        %v3165 = vand.u32 %v3164, 4294901760
        %3166 = vmatpush1.msra.mxu0 %v3165
        %3167 = vmatprep.subr.mxu0 0.0
        %v3168 = vand.u32 %v297, 4294901760
        %v3169 = vsub.f32 %v297, %v3168
        %v3170 = vand.u32 %v3169, 4294901760
        %v3171 = vsub.f32 %v3169, %v3170
        %v3172 = vand.u32 %v3171, 4294901760
        %3173 = vmatpush1.msra.mxu0 %v3172
        %3174 = vmatprep.subr.mxu0 0.0
        %v3175 = vand.u32 %v298, 4294901760
        %v3176 = vsub.f32 %v298, %v3175
        %v3177 = vand.u32 %v3176, 4294901760
        %v3178 = vsub.f32 %v3176, %v3177
        %v3179 = vand.u32 %v3178, 4294901760
        %3180 = vmatpush1.msra.mxu0 %v3179
        %3181 = vmatprep.subr.mxu0 0.0
        %v3182 = vand.u32 %v299, 4294901760
        %v3183 = vsub.f32 %v299, %v3182
        %v3184 = vand.u32 %v3183, 4294901760
        %v3185 = vsub.f32 %v3183, %v3184
        %v3186 = vand.u32 %v3185, 4294901760
        %3187 = vmatpush1.msra.mxu0 %v3186
        %3188 = vmatprep.subr.mxu0 0.0
        %v3189 = vand.u32 %v300, 4294901760
        %v3190 = vsub.f32 %v300, %v3189
        %v3191 = vand.u32 %v3190, 4294901760
        %v3192 = vsub.f32 %v3190, %v3191
        %v3193 = vand.u32 %v3192, 4294901760
        %3194 = vmatpush1.msra.mxu0 %v3193
        %3195 = vmatprep.subr.mxu0 0.0
        %v3196 = vand.u32 %v301, 4294901760
        %v3197 = vsub.f32 %v301, %v3196
        %v3198 = vand.u32 %v3197, 4294901760
        %v3199 = vsub.f32 %v3197, %v3198
        %v3200 = vand.u32 %v3199, 4294901760
        %3201 = vmatpush1.msra.mxu0 %v3200
        %3202 = vmatprep.subr.mxu0 0.0
        %v3203 = vand.u32 %v302, 4294901760
        %v3204 = vsub.f32 %v302, %v3203
        %v3205 = vand.u32 %v3204, 4294901760
        %v3206 = vsub.f32 %v3204, %v3205
        %v3207 = vand.u32 %v3206, 4294901760
        %3208 = vmatpush1.msra.mxu0 %v3207
        %3209 = vmatprep.subr.mxu0 0.0
        %v3210 = vand.u32 %v303, 4294901760
        %v3211 = vsub.f32 %v303, %v3210
        %v3212 = vand.u32 %v3211, 4294901760
        %v3213 = vsub.f32 %v3211, %v3212
        %v3214 = vand.u32 %v3213, 4294901760
        %3215 = vmatpush1.msra.mxu0 %v3214
        %3216 = vmatprep.subr.mxu0 0.0
        %v3217 = vand.u32 %v304, 4294901760
        %v3218 = vsub.f32 %v304, %v3217
        %v3219 = vand.u32 %v3218, 4294901760
        %v3220 = vsub.f32 %v3218, %v3219
        %v3221 = vand.u32 %v3220, 4294901760
        %3222 = vmatpush1.msra.mxu0 %v3221
        %3223 = vmatprep.subr.mxu0 0.0
        %v3224 = vand.u32 %v305, 4294901760
        %v3225 = vsub.f32 %v305, %v3224
        %v3226 = vand.u32 %v3225, 4294901760
        %v3227 = vsub.f32 %v3225, %v3226
        %v3228 = vand.u32 %v3227, 4294901760
        %3229 = vmatpush1.msra.mxu0 %v3228
        %v3230 = vand.u32 %v177, 4294901760
        %3231 = vmatprep.mubr.f32.mxu0 %v3230
        %v3232 = vand.u32 %v176, 4294901760
        %3233 = vmatmul.mubr.f32.gmra.mrb[0].mxu0 %v3232
        %v3234 = vpop.f32.mrb[0].mxu0
        %v3235 = vadd.f32 %v3003, %v3234
        %v3236 = vpop.f32.mrb[0].mxu0
        %3237 = vdwg.mxu0
        %3238 = vmatprep.subr.mxu0 0.0
        %v3239 = vand.u32 %v274, 4294901760
        %v3240 = vsub.f32 %v274, %v3239
        %3241 = vmatpush1.msra.mxu0 %v3240
        %3242 = vmatprep.subr.mxu0 0.0
        %v3243 = vand.u32 %v275, 4294901760
        %v3244 = vsub.f32 %v275, %v3243
        %3245 = vmatpush1.msra.mxu0 %v3244
        %3246 = vmatprep.subr.mxu0 0.0
        %v3247 = vand.u32 %v276, 4294901760
        %v3248 = vsub.f32 %v276, %v3247
        %3249 = vmatpush1.msra.mxu0 %v3248
        %3250 = vmatprep.subr.mxu0 0.0
        %v3251 = vand.u32 %v277, 4294901760
        %v3252 = vsub.f32 %v277, %v3251
        %3253 = vmatpush1.msra.mxu0 %v3252
        %3254 = vmatprep.subr.mxu0 0.0
        %v3255 = vand.u32 %v278, 4294901760
        %v3256 = vsub.f32 %v278, %v3255
        %3257 = vmatpush1.msra.mxu0 %v3256
        %3258 = vmatprep.subr.mxu0 0.0
        %v3259 = vand.u32 %v279, 4294901760
        %v3260 = vsub.f32 %v279, %v3259
        %3261 = vmatpush1.msra.mxu0 %v3260
        %3262 = vmatprep.subr.mxu0 0.0
        %v3263 = vand.u32 %v280, 4294901760
        %v3264 = vsub.f32 %v280, %v3263
        %3265 = vmatpush1.msra.mxu0 %v3264
        %3266 = vmatprep.subr.mxu0 0.0
        %v3267 = vand.u32 %v281, 4294901760
        %v3268 = vsub.f32 %v281, %v3267
        %3269 = vmatpush1.msra.mxu0 %v3268
        %3270 = vmatprep.subr.mxu0 0.0
        %v3271 = vand.u32 %v282, 4294901760
        %v3272 = vsub.f32 %v282, %v3271
        %3273 = vmatpush1.msra.mxu0 %v3272
        %3274 = vmatprep.subr.mxu0 0.0
        %v3275 = vand.u32 %v283, 4294901760
        %v3276 = vsub.f32 %v283, %v3275
        %3277 = vmatpush1.msra.mxu0 %v3276
        %3278 = vmatprep.subr.mxu0 0.0
        %v3279 = vand.u32 %v284, 4294901760
        %v3280 = vsub.f32 %v284, %v3279
        %3281 = vmatpush1.msra.mxu0 %v3280
        %3282 = vmatprep.subr.mxu0 0.0
        %v3283 = vand.u32 %v285, 4294901760
        %v3284 = vsub.f32 %v285, %v3283
        %3285 = vmatpush1.msra.mxu0 %v3284
        %3286 = vmatprep.subr.mxu0 0.0
        %v3287 = vand.u32 %v286, 4294901760
        %v3288 = vsub.f32 %v286, %v3287
        %3289 = vmatpush1.msra.mxu0 %v3288
        %3290 = vmatprep.subr.mxu0 0.0
        %v3291 = vand.u32 %v287, 4294901760
        %v3292 = vsub.f32 %v287, %v3291
        %3293 = vmatpush1.msra.mxu0 %v3292
        %3294 = vmatprep.subr.mxu0 0.0
        %v3295 = vand.u32 %v288, 4294901760
        %v3296 = vsub.f32 %v288, %v3295
        %3297 = vmatpush1.msra.mxu0 %v3296
        %3298 = vmatprep.subr.mxu0 0.0
        %v3299 = vand.u32 %v289, 4294901760
        %v3300 = vsub.f32 %v289, %v3299
        %3301 = vmatpush1.msra.mxu0 %v3300
        %3302 = vmatprep.subr.mxu0 0.0
        %v3303 = vand.u32 %v290, 4294901760
        %v3304 = vsub.f32 %v290, %v3303
        %3305 = vmatpush1.msra.mxu0 %v3304
        %3306 = vmatprep.subr.mxu0 0.0
        %v3307 = vand.u32 %v291, 4294901760
        %v3308 = vsub.f32 %v291, %v3307
        %3309 = vmatpush1.msra.mxu0 %v3308
        %3310 = vmatprep.subr.mxu0 0.0
        %v3311 = vand.u32 %v292, 4294901760
        %v3312 = vsub.f32 %v292, %v3311
        %3313 = vmatpush1.msra.mxu0 %v3312
        %3314 = vmatprep.subr.mxu0 0.0
        %v3315 = vand.u32 %v293, 4294901760
        %v3316 = vsub.f32 %v293, %v3315
        %3317 = vmatpush1.msra.mxu0 %v3316
        %3318 = vmatprep.subr.mxu0 0.0
        %v3319 = vand.u32 %v294, 4294901760
        %v3320 = vsub.f32 %v294, %v3319
        %3321 = vmatpush1.msra.mxu0 %v3320
        %3322 = vmatprep.subr.mxu0 0.0
        %v3323 = vand.u32 %v295, 4294901760
        %v3324 = vsub.f32 %v295, %v3323
        %3325 = vmatpush1.msra.mxu0 %v3324
        %3326 = vmatprep.subr.mxu0 0.0
        %v3327 = vand.u32 %v296, 4294901760
        %v3328 = vsub.f32 %v296, %v3327
        %3329 = vmatpush1.msra.mxu0 %v3328
        %3330 = vmatprep.subr.mxu0 0.0
        %v3331 = vand.u32 %v297, 4294901760
        %v3332 = vsub.f32 %v297, %v3331
        %3333 = vmatpush1.msra.mxu0 %v3332
        %3334 = vmatprep.subr.mxu0 0.0
        %v3335 = vand.u32 %v298, 4294901760
        %v3336 = vsub.f32 %v298, %v3335
        %3337 = vmatpush1.msra.mxu0 %v3336
        %3338 = vmatprep.subr.mxu0 0.0
        %v3339 = vand.u32 %v299, 4294901760
        %v3340 = vsub.f32 %v299, %v3339
        %3341 = vmatpush1.msra.mxu0 %v3340
        %3342 = vmatprep.subr.mxu0 0.0
        %v3343 = vand.u32 %v300, 4294901760
        %v3344 = vsub.f32 %v300, %v3343
        %3345 = vmatpush1.msra.mxu0 %v3344
        %3346 = vmatprep.subr.mxu0 0.0
        %v3347 = vand.u32 %v301, 4294901760
        %v3348 = vsub.f32 %v301, %v3347
        %3349 = vmatpush1.msra.mxu0 %v3348
        %3350 = vmatprep.subr.mxu0 0.0
        %v3351 = vand.u32 %v302, 4294901760
        %v3352 = vsub.f32 %v302, %v3351
        %3353 = vmatpush1.msra.mxu0 %v3352
        %3354 = vmatprep.subr.mxu0 0.0
        %v3355 = vand.u32 %v303, 4294901760
        %v3356 = vsub.f32 %v303, %v3355
        %3357 = vmatpush1.msra.mxu0 %v3356
        %3358 = vmatprep.subr.mxu0 0.0
        %v3359 = vand.u32 %v304, 4294901760
        %v3360 = vsub.f32 %v304, %v3359
        %3361 = vmatpush1.msra.mxu0 %v3360
        %3362 = vmatprep.subr.mxu0 0.0
        %v3363 = vand.u32 %v305, 4294901760
        %v3364 = vsub.f32 %v305, %v3363
        %3365 = vmatpush1.msra.mxu0 %v3364
        %v3366 = vand.u32 %v177, 4294901760
        %v3367 = vsub.f32 %v177, %v3366
        %3368 = vmatprep.mubr.f32.mxu0 %v3367
        %v3369 = vand.u32 %v176, 4294901760
        %v3370 = vsub.f32 %v176, %v3369
        %3371 = vmatmul.mubr.f32.gmra.mrb[0].mxu0 %v3370
        %v3372 = vpop.f32.mrb[0].mxu0
        %v3373 = vadd.f32 %v3235, %v3372
        %v3374 = vpop.f32.mrb[0].mxu0
        %3375 = vdwg.mxu0
        %3376 = vmatprep.subr.mxu0 0.0
        %v3377 = vand.u32 %v274, 4294901760
        %3378 = vmatpush1.msra.mxu0 %v3377
        %3379 = vmatprep.subr.mxu0 0.0
        %v3380 = vand.u32 %v275, 4294901760
        %3381 = vmatpush1.msra.mxu0 %v3380
        %3382 = vmatprep.subr.mxu0 0.0
        %v3383 = vand.u32 %v276, 4294901760
        %3384 = vmatpush1.msra.mxu0 %v3383
        %3385 = vmatprep.subr.mxu0 0.0
        %v3386 = vand.u32 %v277, 4294901760
        %3387 = vmatpush1.msra.mxu0 %v3386
        %3388 = vmatprep.subr.mxu0 0.0
        %v3389 = vand.u32 %v278, 4294901760
        %3390 = vmatpush1.msra.mxu0 %v3389
        %3391 = vmatprep.subr.mxu0 0.0
        %v3392 = vand.u32 %v279, 4294901760
        %3393 = vmatpush1.msra.mxu0 %v3392
        %3394 = vmatprep.subr.mxu0 0.0
        %v3395 = vand.u32 %v280, 4294901760
        %3396 = vmatpush1.msra.mxu0 %v3395
        %3397 = vmatprep.subr.mxu0 0.0
        %v3398 = vand.u32 %v281, 4294901760
        %3399 = vmatpush1.msra.mxu0 %v3398
        %3400 = vmatprep.subr.mxu0 0.0
        %v3401 = vand.u32 %v282, 4294901760
        %3402 = vmatpush1.msra.mxu0 %v3401
        %3403 = vmatprep.subr.mxu0 0.0
        %v3404 = vand.u32 %v283, 4294901760
        %3405 = vmatpush1.msra.mxu0 %v3404
        %3406 = vmatprep.subr.mxu0 0.0
        %v3407 = vand.u32 %v284, 4294901760
        %3408 = vmatpush1.msra.mxu0 %v3407
        %3409 = vmatprep.subr.mxu0 0.0
        %v3410 = vand.u32 %v285, 4294901760
        %3411 = vmatpush1.msra.mxu0 %v3410
        %3412 = vmatprep.subr.mxu0 0.0
        %v3413 = vand.u32 %v286, 4294901760
        %3414 = vmatpush1.msra.mxu0 %v3413
        %3415 = vmatprep.subr.mxu0 0.0
        %v3416 = vand.u32 %v287, 4294901760
        %3417 = vmatpush1.msra.mxu0 %v3416
        %3418 = vmatprep.subr.mxu0 0.0
        %v3419 = vand.u32 %v288, 4294901760
        %3420 = vmatpush1.msra.mxu0 %v3419
        %3421 = vmatprep.subr.mxu0 0.0
        %v3422 = vand.u32 %v289, 4294901760
        %3423 = vmatpush1.msra.mxu0 %v3422
        %3424 = vmatprep.subr.mxu0 0.0
        %v3425 = vand.u32 %v290, 4294901760
        %3426 = vmatpush1.msra.mxu0 %v3425
        %3427 = vmatprep.subr.mxu0 0.0
        %v3428 = vand.u32 %v291, 4294901760
        %3429 = vmatpush1.msra.mxu0 %v3428
        %3430 = vmatprep.subr.mxu0 0.0
        %v3431 = vand.u32 %v292, 4294901760
        %3432 = vmatpush1.msra.mxu0 %v3431
        %3433 = vmatprep.subr.mxu0 0.0
        %v3434 = vand.u32 %v293, 4294901760
        %3435 = vmatpush1.msra.mxu0 %v3434
        %3436 = vmatprep.subr.mxu0 0.0
        %v3437 = vand.u32 %v294, 4294901760
        %3438 = vmatpush1.msra.mxu0 %v3437
        %3439 = vmatprep.subr.mxu0 0.0
        %v3440 = vand.u32 %v295, 4294901760
        %3441 = vmatpush1.msra.mxu0 %v3440
        %3442 = vmatprep.subr.mxu0 0.0
        %v3443 = vand.u32 %v296, 4294901760
        %3444 = vmatpush1.msra.mxu0 %v3443
        %3445 = vmatprep.subr.mxu0 0.0
        %v3446 = vand.u32 %v297, 4294901760
        %3447 = vmatpush1.msra.mxu0 %v3446
        %3448 = vmatprep.subr.mxu0 0.0
        %v3449 = vand.u32 %v298, 4294901760
        %3450 = vmatpush1.msra.mxu0 %v3449
        %3451 = vmatprep.subr.mxu0 0.0
        %v3452 = vand.u32 %v299, 4294901760
        %3453 = vmatpush1.msra.mxu0 %v3452
        %3454 = vmatprep.subr.mxu0 0.0
        %v3455 = vand.u32 %v300, 4294901760
        %3456 = vmatpush1.msra.mxu0 %v3455
        %3457 = vmatprep.subr.mxu0 0.0
        %v3458 = vand.u32 %v301, 4294901760
        %3459 = vmatpush1.msra.mxu0 %v3458
        %3460 = vmatprep.subr.mxu0 0.0
        %v3461 = vand.u32 %v302, 4294901760
        %3462 = vmatpush1.msra.mxu0 %v3461
        %3463 = vmatprep.subr.mxu0 0.0
        %v3464 = vand.u32 %v303, 4294901760
        %3465 = vmatpush1.msra.mxu0 %v3464
        %3466 = vmatprep.subr.mxu0 0.0
        %v3467 = vand.u32 %v304, 4294901760
        %3468 = vmatpush1.msra.mxu0 %v3467
        %3469 = vmatprep.subr.mxu0 0.0
        %v3470 = vand.u32 %v305, 4294901760
        %3471 = vmatpush1.msra.mxu0 %v3470
        %v3472 = vand.u32 %v177, 4294901760
        %v3473 = vsub.f32 %v177, %v3472
        %v3474 = vand.u32 %v3473, 4294901760
        %3475 = vmatprep.mubr.f32.mxu0 %v3474
        %v3476 = vand.u32 %v176, 4294901760
        %v3477 = vsub.f32 %v176, %v3476
        %v3478 = vand.u32 %v3477, 4294901760
        %3479 = vmatmul.mubr.f32.gmra.mrb[0].mxu0 %v3478
        %v3480 = vpop.f32.mrb[0].mxu0
        %v3481 = vadd.f32 %v3373, %v3480
        %v3482 = vpop.f32.mrb[0].mxu0
        %3483 = vdwg.mxu0
        %3484 = vmatprep.subr.mxu0 0.0
        %v3485 = vand.u32 %v274, 4294901760
        %v3486 = vsub.f32 %v274, %v3485
        %v3487 = vand.u32 %v3486, 4294901760
        %3488 = vmatpush1.msra.mxu0 %v3487
        %3489 = vmatprep.subr.mxu0 0.0
        %v3490 = vand.u32 %v275, 4294901760
        %v3491 = vsub.f32 %v275, %v3490
        %v3492 = vand.u32 %v3491, 4294901760
        %3493 = vmatpush1.msra.mxu0 %v3492
        %3494 = vmatprep.subr.mxu0 0.0
        %v3495 = vand.u32 %v276, 4294901760
        %v3496 = vsub.f32 %v276, %v3495
        %v3497 = vand.u32 %v3496, 4294901760
        %3498 = vmatpush1.msra.mxu0 %v3497
        %3499 = vmatprep.subr.mxu0 0.0
        %v3500 = vand.u32 %v277, 4294901760
        %v3501 = vsub.f32 %v277, %v3500
        %v3502 = vand.u32 %v3501, 4294901760
        %3503 = vmatpush1.msra.mxu0 %v3502
        %3504 = vmatprep.subr.mxu0 0.0
        %v3505 = vand.u32 %v278, 4294901760
        %v3506 = vsub.f32 %v278, %v3505
        %v3507 = vand.u32 %v3506, 4294901760
        %3508 = vmatpush1.msra.mxu0 %v3507
        %3509 = vmatprep.subr.mxu0 0.0
        %v3510 = vand.u32 %v279, 4294901760
        %v3511 = vsub.f32 %v279, %v3510
        %v3512 = vand.u32 %v3511, 4294901760
        %3513 = vmatpush1.msra.mxu0 %v3512
        %3514 = vmatprep.subr.mxu0 0.0
        %v3515 = vand.u32 %v280, 4294901760
        %v3516 = vsub.f32 %v280, %v3515
        %v3517 = vand.u32 %v3516, 4294901760
        %3518 = vmatpush1.msra.mxu0 %v3517
        %3519 = vmatprep.subr.mxu0 0.0
        %v3520 = vand.u32 %v281, 4294901760
        %v3521 = vsub.f32 %v281, %v3520
        %v3522 = vand.u32 %v3521, 4294901760
        %3523 = vmatpush1.msra.mxu0 %v3522
        %3524 = vmatprep.subr.mxu0 0.0
        %v3525 = vand.u32 %v282, 4294901760
        %v3526 = vsub.f32 %v282, %v3525
        %v3527 = vand.u32 %v3526, 4294901760
        %3528 = vmatpush1.msra.mxu0 %v3527
        %3529 = vmatprep.subr.mxu0 0.0
        %v3530 = vand.u32 %v283, 4294901760
        %v3531 = vsub.f32 %v283, %v3530
        %v3532 = vand.u32 %v3531, 4294901760
        %3533 = vmatpush1.msra.mxu0 %v3532
        %3534 = vmatprep.subr.mxu0 0.0
        %v3535 = vand.u32 %v284, 4294901760
        %v3536 = vsub.f32 %v284, %v3535
        %v3537 = vand.u32 %v3536, 4294901760
        %3538 = vmatpush1.msra.mxu0 %v3537
        %3539 = vmatprep.subr.mxu0 0.0
        %v3540 = vand.u32 %v285, 4294901760
        %v3541 = vsub.f32 %v285, %v3540
        %v3542 = vand.u32 %v3541, 4294901760
        %3543 = vmatpush1.msra.mxu0 %v3542
        %3544 = vmatprep.subr.mxu0 0.0
        %v3545 = vand.u32 %v286, 4294901760
        %v3546 = vsub.f32 %v286, %v3545
        %v3547 = vand.u32 %v3546, 4294901760
        %3548 = vmatpush1.msra.mxu0 %v3547
        %3549 = vmatprep.subr.mxu0 0.0
        %v3550 = vand.u32 %v287, 4294901760
        %v3551 = vsub.f32 %v287, %v3550
        %v3552 = vand.u32 %v3551, 4294901760
        %3553 = vmatpush1.msra.mxu0 %v3552
        %3554 = vmatprep.subr.mxu0 0.0
        %v3555 = vand.u32 %v288, 4294901760
        %v3556 = vsub.f32 %v288, %v3555
        %v3557 = vand.u32 %v3556, 4294901760
        %3558 = vmatpush1.msra.mxu0 %v3557
        %3559 = vmatprep.subr.mxu0 0.0
        %v3560 = vand.u32 %v289, 4294901760
        %v3561 = vsub.f32 %v289, %v3560
        %v3562 = vand.u32 %v3561, 4294901760
        %3563 = vmatpush1.msra.mxu0 %v3562
        %3564 = vmatprep.subr.mxu0 0.0
        %v3565 = vand.u32 %v290, 4294901760
        %v3566 = vsub.f32 %v290, %v3565
        %v3567 = vand.u32 %v3566, 4294901760
        %3568 = vmatpush1.msra.mxu0 %v3567
        %3569 = vmatprep.subr.mxu0 0.0
        %v3570 = vand.u32 %v291, 4294901760
        %v3571 = vsub.f32 %v291, %v3570
        %v3572 = vand.u32 %v3571, 4294901760
        %3573 = vmatpush1.msra.mxu0 %v3572
        %3574 = vmatprep.subr.mxu0 0.0
        %v3575 = vand.u32 %v292, 4294901760
        %v3576 = vsub.f32 %v292, %v3575
        %v3577 = vand.u32 %v3576, 4294901760
        %3578 = vmatpush1.msra.mxu0 %v3577
        %3579 = vmatprep.subr.mxu0 0.0
        %v3580 = vand.u32 %v293, 4294901760
        %v3581 = vsub.f32 %v293, %v3580
        %v3582 = vand.u32 %v3581, 4294901760
        %3583 = vmatpush1.msra.mxu0 %v3582
        %3584 = vmatprep.subr.mxu0 0.0
        %v3585 = vand.u32 %v294, 4294901760
        %v3586 = vsub.f32 %v294, %v3585
        %v3587 = vand.u32 %v3586, 4294901760
        %3588 = vmatpush1.msra.mxu0 %v3587
        %3589 = vmatprep.subr.mxu0 0.0
        %v3590 = vand.u32 %v295, 4294901760
        %v3591 = vsub.f32 %v295, %v3590
        %v3592 = vand.u32 %v3591, 4294901760
        %3593 = vmatpush1.msra.mxu0 %v3592
        %3594 = vmatprep.subr.mxu0 0.0
        %v3595 = vand.u32 %v296, 4294901760
        %v3596 = vsub.f32 %v296, %v3595
        %v3597 = vand.u32 %v3596, 4294901760
        %3598 = vmatpush1.msra.mxu0 %v3597
        %3599 = vmatprep.subr.mxu0 0.0
        %v3600 = vand.u32 %v297, 4294901760
        %v3601 = vsub.f32 %v297, %v3600
        %v3602 = vand.u32 %v3601, 4294901760
        %3603 = vmatpush1.msra.mxu0 %v3602
        %3604 = vmatprep.subr.mxu0 0.0
        %v3605 = vand.u32 %v298, 4294901760
        %v3606 = vsub.f32 %v298, %v3605
        %v3607 = vand.u32 %v3606, 4294901760
        %3608 = vmatpush1.msra.mxu0 %v3607
        %3609 = vmatprep.subr.mxu0 0.0
        %v3610 = vand.u32 %v299, 4294901760
        %v3611 = vsub.f32 %v299, %v3610
        %v3612 = vand.u32 %v3611, 4294901760
        %3613 = vmatpush1.msra.mxu0 %v3612
        %3614 = vmatprep.subr.mxu0 0.0
        %v3615 = vand.u32 %v300, 4294901760
        %v3616 = vsub.f32 %v300, %v3615
        %v3617 = vand.u32 %v3616, 4294901760
        %3618 = vmatpush1.msra.mxu0 %v3617
        %3619 = vmatprep.subr.mxu0 0.0
        %v3620 = vand.u32 %v301, 4294901760
        %v3621 = vsub.f32 %v301, %v3620
        %v3622 = vand.u32 %v3621, 4294901760
        %3623 = vmatpush1.msra.mxu0 %v3622
        %3624 = vmatprep.subr.mxu0 0.0
        %v3625 = vand.u32 %v302, 4294901760
        %v3626 = vsub.f32 %v302, %v3625
        %v3627 = vand.u32 %v3626, 4294901760
        %3628 = vmatpush1.msra.mxu0 %v3627
        %3629 = vmatprep.subr.mxu0 0.0
        %v3630 = vand.u32 %v303, 4294901760
        %v3631 = vsub.f32 %v303, %v3630
        %v3632 = vand.u32 %v3631, 4294901760
        %3633 = vmatpush1.msra.mxu0 %v3632
        %3634 = vmatprep.subr.mxu0 0.0
        %v3635 = vand.u32 %v304, 4294901760
        %v3636 = vsub.f32 %v304, %v3635
        %v3637 = vand.u32 %v3636, 4294901760
        %3638 = vmatpush1.msra.mxu0 %v3637
        %3639 = vmatprep.subr.mxu0 0.0
        %v3640 = vand.u32 %v305, 4294901760
        %v3641 = vsub.f32 %v305, %v3640
        %v3642 = vand.u32 %v3641, 4294901760
        %3643 = vmatpush1.msra.mxu0 %v3642
        %v3644 = vand.u32 %v177, 4294901760
        %3645 = vmatprep.mubr.f32.mxu0 %v3644
        %v3646 = vand.u32 %v176, 4294901760
        %3647 = vmatmul.mubr.f32.gmra.mrb[0].mxu0 %v3646
        %v3648 = vpop.f32.mrb[0].mxu0
        %v3649 = vadd.f32 %v3481, %v3648
        %v3650 = vpop.f32.mrb[0].mxu0
        %3651 = vdwg.mxu0
        %3652 = vmatprep.subr.mxu0 0.0
        %v3653 = vand.u32 %v274, 4294901760
        %3654 = vmatpush1.msra.mxu0 %v3653
        %3655 = vmatprep.subr.mxu0 0.0
        %v3656 = vand.u32 %v275, 4294901760
        %3657 = vmatpush1.msra.mxu0 %v3656
        %3658 = vmatprep.subr.mxu0 0.0
        %v3659 = vand.u32 %v276, 4294901760
        %3660 = vmatpush1.msra.mxu0 %v3659
        %3661 = vmatprep.subr.mxu0 0.0
        %v3662 = vand.u32 %v277, 4294901760
        %3663 = vmatpush1.msra.mxu0 %v3662
        %3664 = vmatprep.subr.mxu0 0.0
        %v3665 = vand.u32 %v278, 4294901760
        %3666 = vmatpush1.msra.mxu0 %v3665
        %3667 = vmatprep.subr.mxu0 0.0
        %v3668 = vand.u32 %v279, 4294901760
        %3669 = vmatpush1.msra.mxu0 %v3668
        %3670 = vmatprep.subr.mxu0 0.0
        %v3671 = vand.u32 %v280, 4294901760
        %3672 = vmatpush1.msra.mxu0 %v3671
        %3673 = vmatprep.subr.mxu0 0.0
        %v3674 = vand.u32 %v281, 4294901760
        %3675 = vmatpush1.msra.mxu0 %v3674
        %3676 = vmatprep.subr.mxu0 0.0
        %v3677 = vand.u32 %v282, 4294901760
        %3678 = vmatpush1.msra.mxu0 %v3677
        %3679 = vmatprep.subr.mxu0 0.0
        %v3680 = vand.u32 %v283, 4294901760
        %3681 = vmatpush1.msra.mxu0 %v3680
        %3682 = vmatprep.subr.mxu0 0.0
        %v3683 = vand.u32 %v284, 4294901760
        %3684 = vmatpush1.msra.mxu0 %v3683
        %3685 = vmatprep.subr.mxu0 0.0
        %v3686 = vand.u32 %v285, 4294901760
        %3687 = vmatpush1.msra.mxu0 %v3686
        %3688 = vmatprep.subr.mxu0 0.0
        %v3689 = vand.u32 %v286, 4294901760
        %3690 = vmatpush1.msra.mxu0 %v3689
        %3691 = vmatprep.subr.mxu0 0.0
        %v3692 = vand.u32 %v287, 4294901760
        %3693 = vmatpush1.msra.mxu0 %v3692
        %3694 = vmatprep.subr.mxu0 0.0
        %v3695 = vand.u32 %v288, 4294901760
        %3696 = vmatpush1.msra.mxu0 %v3695
        %3697 = vmatprep.subr.mxu0 0.0
        %v3698 = vand.u32 %v289, 4294901760
        %3699 = vmatpush1.msra.mxu0 %v3698
        %3700 = vmatprep.subr.mxu0 0.0
        %v3701 = vand.u32 %v290, 4294901760
        %3702 = vmatpush1.msra.mxu0 %v3701
        %3703 = vmatprep.subr.mxu0 0.0
        %v3704 = vand.u32 %v291, 4294901760
        %3705 = vmatpush1.msra.mxu0 %v3704
        %3706 = vmatprep.subr.mxu0 0.0
        %v3707 = vand.u32 %v292, 4294901760
        %3708 = vmatpush1.msra.mxu0 %v3707
        %3709 = vmatprep.subr.mxu0 0.0
        %v3710 = vand.u32 %v293, 4294901760
        %3711 = vmatpush1.msra.mxu0 %v3710
        %3712 = vmatprep.subr.mxu0 0.0
        %v3713 = vand.u32 %v294, 4294901760
        %3714 = vmatpush1.msra.mxu0 %v3713
        %3715 = vmatprep.subr.mxu0 0.0
        %v3716 = vand.u32 %v295, 4294901760
        %3717 = vmatpush1.msra.mxu0 %v3716
        %3718 = vmatprep.subr.mxu0 0.0
        %v3719 = vand.u32 %v296, 4294901760
        %3720 = vmatpush1.msra.mxu0 %v3719
        %3721 = vmatprep.subr.mxu0 0.0
        %v3722 = vand.u32 %v297, 4294901760
        %3723 = vmatpush1.msra.mxu0 %v3722
        %3724 = vmatprep.subr.mxu0 0.0
        %v3725 = vand.u32 %v298, 4294901760
        %3726 = vmatpush1.msra.mxu0 %v3725
        %3727 = vmatprep.subr.mxu0 0.0
        %v3728 = vand.u32 %v299, 4294901760
        %3729 = vmatpush1.msra.mxu0 %v3728
        %3730 = vmatprep.subr.mxu0 0.0
        %v3731 = vand.u32 %v300, 4294901760
        %3732 = vmatpush1.msra.mxu0 %v3731
        %3733 = vmatprep.subr.mxu0 0.0
        %v3734 = vand.u32 %v301, 4294901760
        %3735 = vmatpush1.msra.mxu0 %v3734
        %3736 = vmatprep.subr.mxu0 0.0
        %v3737 = vand.u32 %v302, 4294901760
        %3738 = vmatpush1.msra.mxu0 %v3737
        %3739 = vmatprep.subr.mxu0 0.0
        %v3740 = vand.u32 %v303, 4294901760
        %3741 = vmatpush1.msra.mxu0 %v3740
        %3742 = vmatprep.subr.mxu0 0.0
        %v3743 = vand.u32 %v304, 4294901760
        %3744 = vmatpush1.msra.mxu0 %v3743
        %3745 = vmatprep.subr.mxu0 0.0
        %v3746 = vand.u32 %v305, 4294901760
        %3747 = vmatpush1.msra.mxu0 %v3746
        %v3748 = vand.u32 %v177, 4294901760
        %3749 = vmatprep.mubr.f32.mxu0 %v3748
        %v3750 = vand.u32 %v176, 4294901760
        %3751 = vmatmul.mubr.f32.gmra.mrb[0].mxu0 %v3750
        %v3752 = vpop.f32.mrb[0].mxu0
        %v3753 = vadd.f32 %v3649, %v3752
        %v3754 = vpop.f32.mrb[0].mxu0
        %3755 = vdwg.mxu0
        %v3756 = vsub.f32 0.0, %v3753
        %v3757 = vmul.f32 %v3756, 1.442695
        %v3758 = vpow.pop %v3757
        %v3759 = vadd.f32 %v3758, 1.0
        %v3760 = vrcp.pop %v3759
        %v3761 = vmul.f32 1.0, %v3760
        %vm3762 = vcmask 261120
        %3763 = vst.msk [vmem:[%s164] sm:$0xff] %vm3762, %v3761
        %s3764 = sand.u32 %s94, 1
        %s3765 = scalar_lea.sflag [#allocation4], %s3764
        %s3766 = sand.u32 %s94, 1
        %s3767 = smul.addr %s3766, 8
        %s3768 = scalar_lea.vmem [#allocation3], %s3767
        // Predicated region
        $region33: #{tpu_custom_call.1} parent=31 // pred_check
          %p3769 = pneg %p104
        $region34: #{tpu_custom_call.1} parent=31 // pred_check_branch
          %3771 = sbr.rel (%p3769) target = $region36
        $region35: #{tpu_custom_call.1} parent=31 // pred_region
          %s3773 = ssub.s32 128, 128
          %3774 = vsyncadd %s3765, %s3773
          %s3775 = smul.addr %s18, 128
          %s3776 = scalar_lea.hbm %s3, %s3775
          %s3778 = sshll.u32 %s3768, 4
          %s3779 = int_to_ptr.vmem [resolvable:$true] %s3778
          %3781 = dma.vmem_to_hbm [thread:$0]  %s3779, 128, %s3776, %s3765
        $region36: #{tpu_custom_call.1} parent=31 // pred_fallthru
          _
      $region32: #{tpu_custom_call.1} parent=5 // pred_fallthru
        _
      %p3782 = scmp.le.s32.totalorder 2, %s13
      // Predicated region
      $region37: #{tpu_custom_call.1} parent=5 // pred_check
        %p3783 = pneg %p3782
      $region38: #{tpu_custom_call.1} parent=5 // pred_check_branch
        %3785 = sbr.rel (%p3783) target = $region40
      $region39: #{tpu_custom_call.1} parent=5 // pred_region
        %s3786 = ssub.s32 %s13, 2
        // Predicated region
        $region41: #{tpu_custom_call.1} parent=39 // pred_check
          %p3787 = pneg %p110
        $region42: #{tpu_custom_call.1} parent=39 // pred_check_branch
          %3789 = sbr.rel (%p3787) target = $region44
        $region43: #{tpu_custom_call.1} parent=39 // pred_region
          %s3790 = sand.u32 %s95, 1
          %s3791 = scalar_lea.sflag [#allocation4], %s3790
          %s3792 = sand.u32 %s95, 1
          %s3793 = smul.addr %s3792, 8
          %s3794 = scalar_lea.vmem [#allocation3], %s3793
          %3795 = dma.done %s3791, 128
        $region44: #{tpu_custom_call.1} parent=39 // pred_fallthru
          _
      $region40: #{tpu_custom_call.1} parent=5 // pred_fallthru
        _
    $region6: #{tpu_custom_call.1} parent=1 // loop_footer
      %s17 = sadd.s32 1, %s13
    $region7: #{tpu_custom_call.1} parent=1 // loop_footer_branch
      %12 = sbr.rel target = $region3
    $region8: #{tpu_custom_call.1} parent=1 // loop_exit
      _
    %3796 = vsyncpa [#allocation4], 1
    %s3797 = scalar_lea.sflag [#allocation4], 1
    %3798 = vsyncpa %s3797, 1

</llo_original>
